<compile_context>
chip_gen: v7x
topology: tpu7x:2x2x1
jax: 0.10.0
libtpu: 0.0.40
codegen_flags: <defaults>
</compile_context>

<pallas_src>
import functools
import numpy as np

import jax
import jax.numpy as jnp
from jax.experimental import pallas as pl
from jax.experimental.pallas import tpu as pltpu


# ----------------------------- the Pallas kernel ------------------------------

def attention_kernel(x_ref, wq_ref, wk_ref, wv_ref, wout_ref, bout_ref,
                     o_ref, k_scr, v_scr,
                     *, heads, dim_head, block_q, block_k):
    """One grid step = (one batch element, one query tile).

    K/V are projected once per batch element (iq == 0) into head-major VMEM scratch;
    attention runs as an online-softmax (flash) loop over KV chunks of that cache.
    """
    dt = x_ref.dtype                       # MXU operand dtype (input dtype; bf16-ready)
    n = x_ref.shape[1]                     # full sequence length
    inner = heads * dim_head
    iq = pl.program_id(1)

    # --- K/V projection: once per batch element, reused across all query tiles ---
    @pl.when(iq == 0)
    def _build_kv_cache():
        x_all = x_ref[0]                                                         # (n, dim)
        k = jnp.dot(x_all, wk_ref[...], preferred_element_type=jnp.float32).astype(dt)
        v = jnp.dot(x_all, wv_ref[...], preferred_element_type=jnp.float32).astype(dt)
        # One transpose per batch -> head-major layout; all later einsums have a
        # leading (head) batch dim, so no per-chunk relayout is needed.
        k_scr[...] = k.reshape(n, heads, dim_head).transpose(1, 0, 2)            # (h, n, d)
        v_scr[...] = v.reshape(n, heads, dim_head).transpose(1, 0, 2)            # (h, n, d)

    # --- Q projection for this query tile (softmax scale already folded into Wq) ---
    q_start = pl.multiple_of(iq * block_q, block_q)
    x_q = x_ref[0, pl.ds(q_start, block_q), :]                                   # (bq, dim)
    q = jnp.dot(x_q, wq_ref[...], preferred_element_type=jnp.float32).astype(dt) # (bq, inner)
    qh = q.reshape(block_q, heads, dim_head).transpose(1, 0, 2)                  # (h, bq, d)

    # --- online-softmax (flash) over KV chunks: no (h, bq, n) f32 slab ---
    num_k = n // block_k

    def kv_step(jk, carry):
        m, l, acc = carry
        k_start = pl.multiple_of(jk * block_k, block_k)
        kc = k_scr[:, pl.ds(k_start, block_k), :]                                # (h, bk, d)
        vc = v_scr[:, pl.ds(k_start, block_k), :]
        s = jnp.einsum('hqd,hkd->hqk', qh, kc,
                       preferred_element_type=jnp.float32)                       # (h, bq, bk) f32
        m_new = jnp.maximum(m, jnp.max(s, axis=-1, keepdims=True))
        alpha = jnp.exp(m - m_new)
        p = jnp.exp(s - m_new)
        l_new = alpha * l + jnp.sum(p, axis=-1, keepdims=True)
        acc_new = alpha * acc + jnp.einsum('hqk,hkd->hqd', p.astype(dt), vc,
                                           preferred_element_type=jnp.float32)
        return m_new, l_new, acc_new

    m0 = jnp.full((heads, block_q, 1), -jnp.inf, jnp.float32)
    l0 = jnp.zeros((heads, block_q, 1), jnp.float32)
    a0 = jnp.zeros((heads, block_q, dim_head), jnp.float32)
    _, l_fin, acc = jax.lax.fori_loop(0, num_k, kv_step, (m0, l0, a0),
                                      unroll=num_k <= 4)

    # Exact normalization (replaces approx reciprocal -> matches reference softmax).
    o = (acc / l_fin).astype(dt)                                                 # (h, bq, d)
    o = o.transpose(1, 0, 2).reshape(block_q, inner)                             # lane-dense (bq, inner)

    # --- to_out Linear (+ Dropout p=0 -> identity); bias add in f32 ---
    y = jnp.dot(o, wout_ref[...], preferred_element_type=jnp.float32) + bout_ref[...]
    o_ref[0] = y.astype(o_ref.dtype)


# ----------------------------- host-side wrapper ------------------------------

def _vmem_capacity_bytes():
    """Per-core physical VMEM; conservative 64 MiB (v7x) default if no TPU attached."""
    try:
        return int(pltpu.get_tpu_info().vmem_capacity_bytes)
    except Exception:
        return 64 << 20


def attention_forward(x, params, *, heads, dim_head, block_q=None, block_k=None):
    b, n, dim = x.shape
    inner = heads * dim_head
    scale = float(dim) ** -0.5                              # matches PyTorch: dim ** -0.5

    # Generation-aware VMEM cap (leave headroom for compiler scratch / semaphores).
    vmem_phys = _vmem_capacity_bytes()
    vmem_cap = min(int(vmem_phys * 0.8), max(vmem_phys - (8 << 20), 16 << 20))

    # Query / KV tiling: bounds the flash working set; smaller default tile on 64 MiB parts.
    if block_q is None:
        block_q = n if n <= 256 else (256 if vmem_cap <= (56 << 20) else 512)
    if block_k is None:
        block_k = n if n <= 512 else 512
    assert n % block_q == 0, "sequence length must be divisible by block_q"
    assert n % block_k == 0, "sequence length must be divisible by block_k"
    nq = n // block_q

    # One-time host-side weight transform: torch (out,in) -> (in,out), split q/k/v,
    # fold the softmax scale into Wq, cast MXU operands to the activation dtype.
    wqkv = params["wqkv"]                                   # (3*inner, dim) torch layout
    wq_t = (wqkv[:inner, :].T * scale).astype(x.dtype)      # (dim, inner), scale folded in
    wk_t = wqkv[inner:2 * inner, :].T.astype(x.dtype)       # (dim, inner)
    wv_t = wqkv[2 * inner:, :].T.astype(x.dtype)            # (dim, inner)
    wout_t = params["wout"].T.astype(x.dtype)               # (inner, dim)
    bout = params["bout"].reshape(1, dim).astype(jnp.float32)

    kernel = functools.partial(attention_kernel, heads=heads, dim_head=dim_head,
                               block_q=block_q, block_k=block_k)

    # --- VMEM budget: single-buffered weights, double-buffered x/out slabs, K/V scratch,
    #     flash intermediates; clamped under the per-generation physical capacity. ---
    itemsize = jnp.dtype(x.dtype).itemsize
    weight_bytes = (3 * dim * inner + inner * dim) * itemsize + dim * 4
    x_bytes = 2 * n * dim * itemsize
    out_bytes = 2 * block_q * dim * itemsize
    kv_scratch_bytes = 2 * n * inner * itemsize
    flash_bytes = (block_q * inner * itemsize
                   + heads * block_q * (block_k + 2 * dim_head + 2) * 4)
    vmem_limit = int(min(max(weight_bytes + x_bytes + out_bytes + kv_scratch_bytes
                             + 2 * flash_bytes + (4 << 20), 16 << 20), vmem_cap))

    # --- advisory cost estimate (K/V projections now run once per batch element) ---
    flops = (2 * b * n * dim * 3 * inner              # qkv projections
             + 4 * b * heads * n * n * dim_head       # scores + attn@V
             + 2 * b * n * inner * dim)               # to_out
    bytes_accessed = 2 * b * n * dim * itemsize + weight_bytes
    cost = pl.CostEstimate(flops=int(flops), transcendentals=int(b * heads * n * n),
                           bytes_accessed=int(bytes_accessed))

    def _call(single_buffer_invariants):
        inv = {"pipeline_mode": pl.Buffered(1)} if single_buffer_invariants else {}
        grid_spec = pltpu.PrefetchScalarGridSpec(
            num_scalar_prefetch=0,
            grid=(b, nq),
            in_specs=[
                pl.BlockSpec((1, n, dim), lambda ib, iq: (ib, 0, 0)),        # x: full seq per batch
                pl.BlockSpec((dim, inner), lambda ib, iq: (0, 0), **inv),    # Wq^T * scale
                pl.BlockSpec((dim, inner), lambda ib, iq: (0, 0), **inv),    # Wk^T
                pl.BlockSpec((dim, inner), lambda ib, iq: (0, 0), **inv),    # Wv^T
                pl.BlockSpec((inner, dim), lambda ib, iq: (0, 0), **inv),    # Wout^T
                pl.BlockSpec((1, dim), lambda ib, iq: (0, 0), **inv),        # b_out (f32)
            ],
            out_specs=pl.BlockSpec((1, block_q, dim), lambda ib, iq: (ib, iq, 0)),
            scratch_shapes=[pltpu.VMEM((heads, n, dim_head), x.dtype),       # K cache (per batch)
                            pltpu.VMEM((heads, n, dim_head), x.dtype)],      # V cache (per batch)
        )
        return pl.pallas_call(
            kernel,
            out_shape=jax.ShapeDtypeStruct((b, n, dim), x.dtype),
            grid_spec=grid_spec,
            compiler_params=pltpu.CompilerParams(
                # K/V scratch reuse requires the query-tile axis to run sequentially per
                # batch element -> "arbitrary"; batch stays "parallel" (megacore sharding).
                dimension_semantics=("parallel", "arbitrary"),
                vmem_limit_bytes=vmem_limit),
            cost_estimate=cost,
        )(x, wq_t, wk_t, wv_t, wout_t, bout)

    try:
        return _call(True)
    except Exception:
        # Fallback if single-buffering via pl.Buffered(1) is unsupported on this backend;
        # default double-buffering is functionally identical (just uses more VMEM).
        return _call(False)


# ----------------------------- params + reference ------------------------------

def init_params(key, dim, heads, dim_head):
    inner = heads * dim_head
    k0, k1, k2 = jax.random.split(key, 3)
    return {
        "wqkv": 0.2 * jax.random.normal(k0, (3 * inner, dim), jnp.float32),   # torch (out, in)
        "wout": 0.2 * jax.random.normal(k1, (dim, inner), jnp.float32),       # torch (out, in)
        "bout": 0.2 * jax.random.normal(k2, (dim,), jnp.float32),
    }


def reference_attention(x, params, heads, dim_head):
    """Pure-JAX mirror of the PyTorch module (mask=None, dropout=0)."""
    b, n, dim = x.shape
    inner = heads * dim_head
    scale = float(dim) ** -0.5
    qkv = x @ params["wqkv"].T
    q, k, v = jnp.split(qkv, 3, axis=-1)

    def to_heads(t):
        return t.reshape(b, n, heads, dim_head).transpose(0, 2, 1, 3)

    q, k, v = map(to_heads, (q, k, v))
    dots = jnp.einsum("bhid,bhjd->bhij", q, k) * scale
    attn = jax.nn.softmax(dots, axis=-1)
    o = jnp.einsum("bhij,bhjd->bhid", attn, v)
    o = o.transpose(0, 2, 1, 3).reshape(b, n, inner)
    return o @ params["wout"].T + params["bout"]


# ----------------------------------- main --------------------------------------

if __name__ == "__main__":
    key = jax.random.PRNGKey(0)
    kx, kp, kx2 = jax.random.split(key, 3)

    # --- test 1: single query tile / single KV chunk (B=2, N=8, DIM=32, H=4, D=8) ---
    B, N, DIM, HEADS, DIM_HEAD = 2, 8, 32, 4, 8
    x = jax.random.normal(kx, (B, N, DIM), jnp.float32)
    params = init_params(kp, DIM, HEADS, DIM_HEAD)
    ref = reference_attention(x, params, HEADS, DIM_HEAD)

    out = attention_forward(x, params, heads=HEADS, dim_head=DIM_HEAD)
    out = jax.block_until_ready(out)
    assert out.shape == (B, N, DIM)
    np.testing.assert_allclose(np.asarray(out), np.asarray(ref), rtol=2e-3, atol=2e-3)

    # --- test 2: multiple query tiles + multiple KV chunks (exercises the K/V cache
    #     reuse across iq and the online-softmax loop) ---
    N2 = 16
    x2 = jax.random.normal(kx2, (B, N2, DIM), jnp.float32)
    ref2 = reference_attention(x2, params, HEADS, DIM_HEAD)
    out2 = attention_forward(x2, params, heads=HEADS, dim_head=DIM_HEAD,
                             block_q=8, block_k=8)
    out2 = jax.block_until_ready(out2)
    np.testing.assert_allclose(np.asarray(out2), np.asarray(ref2), rtol=2e-3, atol=2e-3)

    # --- bf16 smoke test: MXU operands in bf16 (f32 accumulation), softmax stats in f32 ---
    out_bf16 = attention_forward(x.astype(jnp.bfloat16), params, heads=HEADS, dim_head=DIM_HEAD)
    out_bf16 = jax.block_until_ready(out_bf16)
    np.testing.assert_allclose(np.asarray(out_bf16, dtype=np.float32), np.asarray(ref),
                               rtol=1e-1, atol=1e-1)

    print("KERNEL_OK")
</pallas_src>

<mosaic_0001>
module attributes {stable_mosaic.version = 11 : i64} {
  func.func @attention_kernel(%arg0: i32, %arg1: i32, %arg2: memref<1x8x32xf32, #tpu.memory_space<vmem>>, %arg3: memref<32x32xf32, #tpu.memory_space<vmem>>, %arg4: memref<32x32xf32, #tpu.memory_space<vmem>>, %arg5: memref<32x32xf32, #tpu.memory_space<vmem>>, %arg6: memref<32x32xf32, #tpu.memory_space<vmem>>, %arg7: memref<1x32xf32, #tpu.memory_space<vmem>>, %arg8: memref<1x8x32xf32, #tpu.memory_space<vmem>>, %arg9: memref<4x8x8xf32, #tpu.memory_space<vmem>>, %arg10: memref<4x8x8xf32, #tpu.memory_space<vmem>>) attributes {dimension_semantics = [#tpu.dimension_semantics<parallel>, #tpu.dimension_semantics<arbitrary>], iteration_bounds = array<i64: 2, 1>, scalar_prefetch = 0 : i64, scratch_operands = 2 : i64, tpu.core_type = #tpu.core_type<tc>, window_params = [{transform_indices = @transform_0, window_bounds = array<i64: 1, 8, 32>}, {pipeline_mode = #tpu.pipeline_mode<synchronous>, transform_indices = @transform_1, window_bounds = array<i64: 32, 32>}, {pipeline_mode = #tpu.pipeline_mode<synchronous>, transform_indices = @transform_2, window_bounds = array<i64: 32, 32>}, {pipeline_mode = #tpu.pipeline_mode<synchronous>, transform_indices = @transform_3, window_bounds = array<i64: 32, 32>}, {pipeline_mode = #tpu.pipeline_mode<synchronous>, transform_indices = @transform_4, window_bounds = array<i64: 32, 32>}, {pipeline_mode = #tpu.pipeline_mode<synchronous>, transform_indices = @transform_5, window_bounds = array<i64: 1, 32>}, {transform_indices = @transform_6, window_bounds = array<i64: 1, 8, 32>}]} {
    %c0_i32 = arith.constant 0 : i32
    %0 = arith.cmpi eq, %arg1, %c0_i32 : i32
    %1 = arith.extui %0 : i1 to i32
    %c0_i32_0 = arith.constant 0 : i32
    %2 = arith.cmpi ne, %1, %c0_i32_0 : i32
    scf.if %2 {
      %c0_25 = arith.constant 0 : index
      %c0_26 = arith.constant 0 : index
      %c0_27 = arith.constant 0 : index
      %50 = vector.load %arg2[%c0_25, %c0_26, %c0_27] : memref<1x8x32xf32, #tpu.memory_space<vmem>>, vector<1x8x32xf32>
      %51 = vector.shape_cast %50 : vector<1x8x32xf32> to vector<8x32xf32>
      %c0_28 = arith.constant 0 : index
      %c0_29 = arith.constant 0 : index
      %52 = vector.load %arg4[%c0_28, %c0_29] : memref<32x32xf32, #tpu.memory_space<vmem>>, vector<32x32xf32>
      %cst_30 = arith.constant dense<0.000000e+00> : vector<8x32xf32>
      %53 = tpu.matmul %51, %52, %cst_30 {dimension_numbers = #tpu.dot_dimension_numbers<[1], [0], [0], [1], [0, 0, 1, 1], [], []>} : vector<8x32xf32>, vector<32x32xf32>, vector<8x32xf32> -> vector<8x32xf32>
      %c0_31 = arith.constant 0 : index
      %c0_32 = arith.constant 0 : index
      %54 = vector.load %arg5[%c0_31, %c0_32] : memref<32x32xf32, #tpu.memory_space<vmem>>, vector<32x32xf32>
      %cst_33 = arith.constant dense<0.000000e+00> : vector<8x32xf32>
      %55 = tpu.matmul %51, %54, %cst_33 {dimension_numbers = #tpu.dot_dimension_numbers<[1], [0], [0], [1], [0, 0, 1, 1], [], []>} : vector<8x32xf32>, vector<32x32xf32>, vector<8x32xf32> -> vector<8x32xf32>
      %56 = vector.shape_cast %53 : vector<8x32xf32> to vector<8x4x8xf32>
      %57 = tpu.transpose %56, [1, 0, 2] : vector<8x4x8xf32> -> vector<4x8x8xf32>
      %c0_34 = arith.constant 0 : index
      %c0_35 = arith.constant 0 : index
      %c0_36 = arith.constant 0 : index
      %58 = vector.load %arg9[%c0_34, %c0_35, %c0_36] : memref<4x8x8xf32, #tpu.memory_space<vmem>>, vector<4x8x8xf32>
      tpu.vector_store %arg9[%c0_34, %c0_35, %c0_36], %57 {strides = array<i32>} : memref<4x8x8xf32, #tpu.memory_space<vmem>>, vector<4x8x8xf32>,
      %59 = vector.shape_cast %55 : vector<8x32xf32> to vector<8x4x8xf32>
      %60 = tpu.transpose %59, [1, 0, 2] : vector<8x4x8xf32> -> vector<4x8x8xf32>
      %c0_37 = arith.constant 0 : index
      %c0_38 = arith.constant 0 : index
      %c0_39 = arith.constant 0 : index
      %61 = vector.load %arg10[%c0_37, %c0_38, %c0_39] : memref<4x8x8xf32, #tpu.memory_space<vmem>>, vector<4x8x8xf32>
      tpu.vector_store %arg10[%c0_37, %c0_38, %c0_39], %60 {strides = array<i32>} : memref<4x8x8xf32, #tpu.memory_space<vmem>>, vector<4x8x8xf32>,
    } else {
    }
    %c8_i32 = arith.constant 8 : i32
    %3 = arith.muli %arg1, %c8_i32 : i32
    %4 = tpu.assume_multiple %3, 8 : i32
    %c0 = arith.constant 0 : index
    %5 = arith.index_cast %4 : i32 to index
    %c0_1 = arith.constant 0 : index
    %6 = vector.load %arg2[%c0, %5, %c0_1] : memref<1x8x32xf32, #tpu.memory_space<vmem>>, vector<1x8x32xf32>
    %7 = vector.shape_cast %6 : vector<1x8x32xf32> to vector<8x32xf32>
    %c0_2 = arith.constant 0 : index
    %c0_3 = arith.constant 0 : index
    %8 = vector.load %arg3[%c0_2, %c0_3] : memref<32x32xf32, #tpu.memory_space<vmem>>, vector<32x32xf32>
    %cst = arith.constant dense<0.000000e+00> : vector<8x32xf32>
    %9 = tpu.matmul %7, %8, %cst {dimension_numbers = #tpu.dot_dimension_numbers<[1], [0], [0], [1], [0, 0, 1, 1], [], []>} : vector<8x32xf32>, vector<32x32xf32>, vector<8x32xf32> -> vector<8x32xf32>
    %10 = vector.shape_cast %9 : vector<8x32xf32> to vector<8x4x8xf32>
    %11 = tpu.transpose %10, [1, 0, 2] : vector<8x4x8xf32> -> vector<4x8x8xf32>
    %cst_4 = arith.constant 0xFF800000 : f32
    %12 = vector.broadcast %cst_4 : f32 to vector<4x8x1xf32>
    %cst_5 = arith.constant 0.000000e+00 : f32
    %13 = vector.broadcast %cst_5 : f32 to vector<4x8x1xf32>
    %cst_6 = arith.constant 0.000000e+00 : f32
    %14 = vector.broadcast %cst_6 : f32 to vector<4x8x8xf32>
    %c0_i32_7 = arith.constant 0 : i32
    %c8_i32_8 = arith.constant 8 : i32
    %15 = arith.muli %c0_i32_7, %c8_i32_8 : i32
    %16 = tpu.assume_multiple %15, 8 : i32
    %c0_9 = arith.constant 0 : index
    %17 = arith.index_cast %16 : i32 to index
    %c0_10 = arith.constant 0 : index
    %18 = vector.load %arg9[%c0_9, %17, %c0_10] : memref<4x8x8xf32, #tpu.memory_space<vmem>>, vector<4x8x8xf32>
    %c0_11 = arith.constant 0 : index
    %19 = arith.index_cast %16 : i32 to index
    %c0_12 = arith.constant 0 : index
    %20 = vector.load %arg10[%c0_11, %19, %c0_12] : memref<4x8x8xf32, #tpu.memory_space<vmem>>, vector<4x8x8xf32>
    "tpu.trace_start"() <{level = 10 : i32, message = "hqd,hkd->hqk"}> : () -> ()
    %cst_13 = arith.constant dense<0.000000e+00> : vector<4x8x8xf32>
    %21 = tpu.matmul %11, %18, %cst_13 {dimension_numbers = #tpu.dot_dimension_numbers<[2], [2], [1], [1], [0, 0, 0, 1, 1, 1], [0], [0]>} : vector<4x8x8xf32>, vector<4x8x8xf32>, vector<4x8x8xf32> -> vector<4x8x8xf32>
    "tpu.trace_stop"() : () -> ()
    %cst_14 = arith.constant dense<0xFF800000> : vector<4x8xf32>
    %22 = vector.multi_reduction <maximumf>, %21, %cst_14 [2] : vector<4x8x8xf32> to vector<4x8xf32>
    %23 = vector.shape_cast %22 : vector<4x8xf32> to vector<4x8x1xf32>
    %24 = arith.maximumf %12, %23 : vector<4x8x1xf32>
    %25 = arith.subf %12, %24 : vector<4x8x1xf32>
    %26 = math.exp %25 : vector<4x8x1xf32>
    %27 = vector.broadcast %24 : vector<4x8x1xf32> to vector<4x8x8xf32>
    %28 = arith.subf %21, %27 : vector<4x8x8xf32>
    %29 = math.exp %28 : vector<4x8x8xf32>
    %30 = arith.mulf %26, %13 : vector<4x8x1xf32>
    %cst_15 = arith.constant dense<0.000000e+00> : vector<4x8xf32>
    %31 = vector.multi_reduction <add>, %29, %cst_15 [2] : vector<4x8x8xf32> to vector<4x8xf32>
    %32 = vector.shape_cast %31 : vector<4x8xf32> to vector<4x8x1xf32>
    %33 = arith.addf %30, %32 : vector<4x8x1xf32>
    %34 = vector.broadcast %26 : vector<4x8x1xf32> to vector<4x8x8xf32>
    %35 = arith.mulf %34, %14 : vector<4x8x8xf32>
    "tpu.trace_start"() <{level = 10 : i32, message = "hqk,hkd->hqd"}> : () -> ()
    %cst_16 = arith.constant dense<0.000000e+00> : vector<4x8x8xf32>
    %36 = tpu.matmul %29, %20, %cst_16 {dimension_numbers = #tpu.dot_dimension_numbers<[2], [1], [1], [2], [0, 0, 0, 1, 1, 2], [0], [0]>} : vector<4x8x8xf32>, vector<4x8x8xf32>, vector<4x8x8xf32> -> vector<4x8x8xf32>
    "tpu.trace_stop"() : () -> ()
    %37 = arith.addf %35, %36 : vector<4x8x8xf32>
    %c1_i32 = arith.constant 1 : i32
    %38 = vector.broadcast %33 : vector<4x8x1xf32> to vector<4x8x8xf32>
    %39 = arith.divf %37, %38 : vector<4x8x8xf32>
    %40 = tpu.transpose %39, [1, 0, 2] : vector<4x8x8xf32> -> vector<8x4x8xf32>
    %41 = vector.shape_cast %40 : vector<8x4x8xf32> to vector<8x32xf32>
    %c0_17 = arith.constant 0 : index
    %c0_18 = arith.constant 0 : index
    %42 = vector.load %arg6[%c0_17, %c0_18] : memref<32x32xf32, #tpu.memory_space<vmem>>, vector<32x32xf32>
    %cst_19 = arith.constant dense<0.000000e+00> : vector<8x32xf32>
    %43 = tpu.matmul %41, %42, %cst_19 {dimension_numbers = #tpu.dot_dimension_numbers<[1], [0], [0], [1], [0, 0, 1, 1], [], []>} : vector<8x32xf32>, vector<32x32xf32>, vector<8x32xf32> -> vector<8x32xf32>
    %c0_20 = arith.constant 0 : index
    %c0_21 = arith.constant 0 : index
    %44 = vector.load %arg7[%c0_20, %c0_21] : memref<1x32xf32, #tpu.memory_space<vmem>>, vector<1x32xf32>
    %45 = vector.broadcast %44 : vector<1x32xf32> to vector<8x32xf32>
    %46 = arith.addf %43, %45 : vector<8x32xf32>
    %c0_22 = arith.constant 0 : index
    %c0_23 = arith.constant 0 : index
    %c0_24 = arith.constant 0 : index
    %47 = vector.load %arg8[%c0_22, %c0_23, %c0_24] : memref<1x8x32xf32, #tpu.memory_space<vmem>>, vector<1x8x32xf32>
    %48 = vector.shape_cast %47 : vector<1x8x32xf32> to vector<8x32xf32>
    %49 = vector.shape_cast %46 : vector<8x32xf32> to vector<1x8x32xf32>
    tpu.vector_store %arg8[%c0_22, %c0_23, %c0_24], %49 {strides = array<i32>} : memref<1x8x32xf32, #tpu.memory_space<vmem>>, vector<1x8x32xf32>,
    return
  }
  func.func @transform_0(%arg0: i32, %arg1: i32) -> (i32, i32, i32) {
    %c0_i32 = arith.constant 0 : i32
    %c0_i32_0 = arith.constant 0 : i32
    %c0_i32_1 = arith.constant 0 : i32
    return %arg0, %c0_i32, %c0_i32_0 : i32, i32, i32
  }
  func.func @transform_1(%arg0: i32, %arg1: i32) -> (i32, i32) {
    %c0_i32 = arith.constant 0 : i32
    %c0_i32_0 = arith.constant 0 : i32
    %c0_i32_1 = arith.constant 0 : i32
    return %c0_i32, %c0_i32_0 : i32, i32
  }
  func.func @transform_2(%arg0: i32, %arg1: i32) -> (i32, i32) {
    %c0_i32 = arith.constant 0 : i32
    %c0_i32_0 = arith.constant 0 : i32
    %c0_i32_1 = arith.constant 0 : i32
    return %c0_i32, %c0_i32_0 : i32, i32
  }
  func.func @transform_3(%arg0: i32, %arg1: i32) -> (i32, i32) {
    %c0_i32 = arith.constant 0 : i32
    %c0_i32_0 = arith.constant 0 : i32
    %c0_i32_1 = arith.constant 0 : i32
    return %c0_i32, %c0_i32_0 : i32, i32
  }
  func.func @transform_4(%arg0: i32, %arg1: i32) -> (i32, i32) {
    %c0_i32 = arith.constant 0 : i32
    %c0_i32_0 = arith.constant 0 : i32
    %c0_i32_1 = arith.constant 0 : i32
    return %c0_i32, %c0_i32_0 : i32, i32
  }
  func.func @transform_5(%arg0: i32, %arg1: i32) -> (i32, i32) {
    %c0_i32 = arith.constant 0 : i32
    %c0_i32_0 = arith.constant 0 : i32
    %c0_i32_1 = arith.constant 0 : i32
    return %c0_i32, %c0_i32_0 : i32, i32
  }
  func.func @transform_6(%arg0: i32, %arg1: i32) -> (i32, i32, i32) {
    %c0_i32 = arith.constant 0 : i32
    %c0_i32_0 = arith.constant 0 : i32
    return %arg0, %arg1, %c0_i32 : i32, i32, i32
  }
}

module attributes {stable_mosaic.version = 11 : i64} {
  func.func @attention_kernel(%arg0: i32, %arg1: i32, %arg2: memref<1x8x32xf32, #tpu.memory_space<vmem>>, %arg3: memref<32x32xf32, #tpu.memory_space<vmem>>, %arg4: memref<32x32xf32, #tpu.memory_space<vmem>>, %arg5: memref<32x32xf32, #tpu.memory_space<vmem>>, %arg6: memref<32x32xf32, #tpu.memory_space<vmem>>, %arg7: memref<1x32xf32, #tpu.memory_space<vmem>>, %arg8: memref<1x8x32xf32, #tpu.memory_space<vmem>>, %arg9: memref<4x8x8xf32, #tpu.memory_space<vmem>>, %arg10: memref<4x8x8xf32, #tpu.memory_space<vmem>>) attributes {dimension_semantics = [#tpu.dimension_semantics<parallel>, #tpu.dimension_semantics<arbitrary>], iteration_bounds = array<i64: 2, 1>, scalar_prefetch = 0 : i64, scratch_operands = 2 : i64, tpu.core_type = #tpu.core_type<tc>, window_params = [{transform_indices = @transform_0, window_bounds = array<i64: 1, 8, 32>}, {pipeline_mode = #tpu.pipeline_mode<synchronous>, transform_indices = @transform_1, window_bounds = array<i64: 32, 32>}, {pipeline_mode = #tpu.pipeline_mode<synchronous>, transform_indices = @transform_2, window_bounds = array<i64: 32, 32>}, {pipeline_mode = #tpu.pipeline_mode<synchronous>, transform_indices = @transform_3, window_bounds = array<i64: 32, 32>}, {pipeline_mode = #tpu.pipeline_mode<synchronous>, transform_indices = @transform_4, window_bounds = array<i64: 32, 32>}, {pipeline_mode = #tpu.pipeline_mode<synchronous>, transform_indices = @transform_5, window_bounds = array<i64: 1, 32>}, {transform_indices = @transform_6, window_bounds = array<i64: 1, 8, 32>}]} {
    %c0_i32 = arith.constant 0 : i32
    %0 = arith.cmpi eq, %arg1, %c0_i32 : i32
    %1 = arith.extui %0 : i1 to i32
    %c0_i32_0 = arith.constant 0 : i32
    %2 = arith.cmpi ne, %1, %c0_i32_0 : i32
    scf.if %2 {
      %c0_25 = arith.constant 0 : index
      %c0_26 = arith.constant 0 : index
      %c0_27 = arith.constant 0 : index
      %50 = vector.load %arg2[%c0_25, %c0_26, %c0_27] : memref<1x8x32xf32, #tpu.memory_space<vmem>>, vector<1x8x32xf32>
      %51 = vector.shape_cast %50 : vector<1x8x32xf32> to vector<8x32xf32>
      %c0_28 = arith.constant 0 : index
      %c0_29 = arith.constant 0 : index
      %52 = vector.load %arg4[%c0_28, %c0_29] : memref<32x32xf32, #tpu.memory_space<vmem>>, vector<32x32xf32>
      %cst_30 = arith.constant dense<0.000000e+00> : vector<8x32xf32>
      %53 = tpu.matmul %51, %52, %cst_30 {dimension_numbers = #tpu.dot_dimension_numbers<[1], [0], [0], [1], [0, 0, 1, 1], [], []>} : vector<8x32xf32>, vector<32x32xf32>, vector<8x32xf32> -> vector<8x32xf32>
      %c0_31 = arith.constant 0 : index
      %c0_32 = arith.constant 0 : index
      %54 = vector.load %arg5[%c0_31, %c0_32] : memref<32x32xf32, #tpu.memory_space<vmem>>, vector<32x32xf32>
      %cst_33 = arith.constant dense<0.000000e+00> : vector<8x32xf32>
      %55 = tpu.matmul %51, %54, %cst_33 {dimension_numbers = #tpu.dot_dimension_numbers<[1], [0], [0], [1], [0, 0, 1, 1], [], []>} : vector<8x32xf32>, vector<32x32xf32>, vector<8x32xf32> -> vector<8x32xf32>
      %56 = vector.shape_cast %53 : vector<8x32xf32> to vector<8x4x8xf32>
      %57 = tpu.transpose %56, [1, 0, 2] : vector<8x4x8xf32> -> vector<4x8x8xf32>
      %c0_34 = arith.constant 0 : index
      %c0_35 = arith.constant 0 : index
      %c0_36 = arith.constant 0 : index
      %58 = vector.load %arg9[%c0_34, %c0_35, %c0_36] : memref<4x8x8xf32, #tpu.memory_space<vmem>>, vector<4x8x8xf32>
      tpu.vector_store %arg9[%c0_34, %c0_35, %c0_36], %57 {strides = array<i32>} : memref<4x8x8xf32, #tpu.memory_space<vmem>>, vector<4x8x8xf32>,
      %59 = vector.shape_cast %55 : vector<8x32xf32> to vector<8x4x8xf32>
      %60 = tpu.transpose %59, [1, 0, 2] : vector<8x4x8xf32> -> vector<4x8x8xf32>
      %c0_37 = arith.constant 0 : index
      %c0_38 = arith.constant 0 : index
      %c0_39 = arith.constant 0 : index
      %61 = vector.load %arg10[%c0_37, %c0_38, %c0_39] : memref<4x8x8xf32, #tpu.memory_space<vmem>>, vector<4x8x8xf32>
      tpu.vector_store %arg10[%c0_37, %c0_38, %c0_39], %60 {strides = array<i32>} : memref<4x8x8xf32, #tpu.memory_space<vmem>>, vector<4x8x8xf32>,
    } else {
    }
    %c8_i32 = arith.constant 8 : i32
    %3 = arith.muli %arg1, %c8_i32 : i32
    %4 = tpu.assume_multiple %3, 8 : i32
    %c0 = arith.constant 0 : index
    %5 = arith.index_cast %4 : i32 to index
    %c0_1 = arith.constant 0 : index
    %6 = vector.load %arg2[%c0, %5, %c0_1] : memref<1x8x32xf32, #tpu.memory_space<vmem>>, vector<1x8x32xf32>
    %7 = vector.shape_cast %6 : vector<1x8x32xf32> to vector<8x32xf32>
    %c0_2 = arith.constant 0 : index
    %c0_3 = arith.constant 0 : index
    %8 = vector.load %arg3[%c0_2, %c0_3] : memref<32x32xf32, #tpu.memory_space<vmem>>, vector<32x32xf32>
    %cst = arith.constant dense<0.000000e+00> : vector<8x32xf32>
    %9 = tpu.matmul %7, %8, %cst {dimension_numbers = #tpu.dot_dimension_numbers<[1], [0], [0], [1], [0, 0, 1, 1], [], []>} : vector<8x32xf32>, vector<32x32xf32>, vector<8x32xf32> -> vector<8x32xf32>
    %10 = vector.shape_cast %9 : vector<8x32xf32> to vector<8x4x8xf32>
    %11 = tpu.transpose %10, [1, 0, 2] : vector<8x4x8xf32> -> vector<4x8x8xf32>
    %cst_4 = arith.constant 0xFF800000 : f32
    %12 = vector.broadcast %cst_4 : f32 to vector<4x8x1xf32>
    %cst_5 = arith.constant 0.000000e+00 : f32
    %13 = vector.broadcast %cst_5 : f32 to vector<4x8x1xf32>
    %cst_6 = arith.constant 0.000000e+00 : f32
    %14 = vector.broadcast %cst_6 : f32 to vector<4x8x8xf32>
    %c0_i32_7 = arith.constant 0 : i32
    %c8_i32_8 = arith.constant 8 : i32
    %15 = arith.muli %c0_i32_7, %c8_i32_8 : i32
    %16 = tpu.assume_multiple %15, 8 : i32
    %c0_9 = arith.constant 0 : index
    %17 = arith.index_cast %16 : i32 to index
    %c0_10 = arith.constant 0 : index
    %18 = vector.load %arg9[%c0_9, %17, %c0_10] : memref<4x8x8xf32, #tpu.memory_space<vmem>>, vector<4x8x8xf32>
    %c0_11 = arith.constant 0 : index
    %19 = arith.index_cast %16 : i32 to index
    %c0_12 = arith.constant 0 : index
    %20 = vector.load %arg10[%c0_11, %19, %c0_12] : memref<4x8x8xf32, #tpu.memory_space<vmem>>, vector<4x8x8xf32>
    "tpu.trace_start"() <{level = 10 : i32, message = "hqd,hkd->hqk"}> : () -> ()
    %cst_13 = arith.constant dense<0.000000e+00> : vector<4x8x8xf32>
    %21 = tpu.matmul %11, %18, %cst_13 {dimension_numbers = #tpu.dot_dimension_numbers<[2], [2], [1], [1], [0, 0, 0, 1, 1, 1], [0], [0]>} : vector<4x8x8xf32>, vector<4x8x8xf32>, vector<4x8x8xf32> -> vector<4x8x8xf32>
    "tpu.trace_stop"() : () -> ()
    %cst_14 = arith.constant dense<0xFF800000> : vector<4x8xf32>
    %22 = vector.multi_reduction <maximumf>, %21, %cst_14 [2] : vector<4x8x8xf32> to vector<4x8xf32>
    %23 = vector.shape_cast %22 : vector<4x8xf32> to vector<4x8x1xf32>
    %24 = arith.maximumf %12, %23 : vector<4x8x1xf32>
    %25 = arith.subf %12, %24 : vector<4x8x1xf32>
    %26 = math.exp %25 : vector<4x8x1xf32>
    %27 = vector.broadcast %24 : vector<4x8x1xf32> to vector<4x8x8xf32>
    %28 = arith.subf %21, %27 : vector<4x8x8xf32>
    %29 = math.exp %28 : vector<4x8x8xf32>
    %30 = arith.mulf %26, %13 : vector<4x8x1xf32>
    %cst_15 = arith.constant dense<0.000000e+00> : vector<4x8xf32>
    %31 = vector.multi_reduction <add>, %29, %cst_15 [2] : vector<4x8x8xf32> to vector<4x8xf32>
    %32 = vector.shape_cast %31 : vector<4x8xf32> to vector<4x8x1xf32>
    %33 = arith.addf %30, %32 : vector<4x8x1xf32>
    %34 = vector.broadcast %26 : vector<4x8x1xf32> to vector<4x8x8xf32>
    %35 = arith.mulf %34, %14 : vector<4x8x8xf32>
    "tpu.trace_start"() <{level = 10 : i32, message = "hqk,hkd->hqd"}> : () -> ()
    %cst_16 = arith.constant dense<0.000000e+00> : vector<4x8x8xf32>
    %36 = tpu.matmul %29, %20, %cst_16 {dimension_numbers = #tpu.dot_dimension_numbers<[2], [1], [1], [2], [0, 0, 0, 1, 1, 2], [0], [0]>} : vector<4x8x8xf32>, vector<4x8x8xf32>, vector<4x8x8xf32> -> vector<4x8x8xf32>
    "tpu.trace_stop"() : () -> ()
    %37 = arith.addf %35, %36 : vector<4x8x8xf32>
    %c1_i32 = arith.constant 1 : i32
    %38 = vector.broadcast %33 : vector<4x8x1xf32> to vector<4x8x8xf32>
    %39 = arith.divf %37, %38 : vector<4x8x8xf32>
    %40 = tpu.transpose %39, [1, 0, 2] : vector<4x8x8xf32> -> vector<8x4x8xf32>
    %41 = vector.shape_cast %40 : vector<8x4x8xf32> to vector<8x32xf32>
    %c0_17 = arith.constant 0 : index
    %c0_18 = arith.constant 0 : index
    %42 = vector.load %arg6[%c0_17, %c0_18] : memref<32x32xf32, #tpu.memory_space<vmem>>, vector<32x32xf32>
    %cst_19 = arith.constant dense<0.000000e+00> : vector<8x32xf32>
    %43 = tpu.matmul %41, %42, %cst_19 {dimension_numbers = #tpu.dot_dimension_numbers<[1], [0], [0], [1], [0, 0, 1, 1], [], []>} : vector<8x32xf32>, vector<32x32xf32>, vector<8x32xf32> -> vector<8x32xf32>
    %c0_20 = arith.constant 0 : index
    %c0_21 = arith.constant 0 : index
    %44 = vector.load %arg7[%c0_20, %c0_21] : memref<1x32xf32, #tpu.memory_space<vmem>>, vector<1x32xf32>
    %45 = vector.broadcast %44 : vector<1x32xf32> to vector<8x32xf32>
    %46 = arith.addf %43, %45 : vector<8x32xf32>
    %c0_22 = arith.constant 0 : index
    %c0_23 = arith.constant 0 : index
    %c0_24 = arith.constant 0 : index
    %47 = vector.load %arg8[%c0_22, %c0_23, %c0_24] : memref<1x8x32xf32, #tpu.memory_space<vmem>>, vector<1x8x32xf32>
    %48 = vector.shape_cast %47 : vector<1x8x32xf32> to vector<8x32xf32>
    %49 = vector.shape_cast %46 : vector<8x32xf32> to vector<1x8x32xf32>
    tpu.vector_store %arg8[%c0_22, %c0_23, %c0_24], %49 {strides = array<i32>} : memref<1x8x32xf32, #tpu.memory_space<vmem>>, vector<1x8x32xf32>,
    return
  }
  func.func @transform_0(%arg0: i32, %arg1: i32) -> (i32, i32, i32) {
    %c0_i32 = arith.constant 0 : i32
    %c0_i32_0 = arith.constant 0 : i32
    %c0_i32_1 = arith.constant 0 : i32
    return %arg0, %c0_i32, %c0_i32_0 : i32, i32, i32
  }
  func.func @transform_1(%arg0: i32, %arg1: i32) -> (i32, i32) {
    %c0_i32 = arith.constant 0 : i32
    %c0_i32_0 = arith.constant 0 : i32
    %c0_i32_1 = arith.constant 0 : i32
    return %c0_i32, %c0_i32_0 : i32, i32
  }
  func.func @transform_2(%arg0: i32, %arg1: i32) -> (i32, i32) {
    %c0_i32 = arith.constant 0 : i32
    %c0_i32_0 = arith.constant 0 : i32
    %c0_i32_1 = arith.constant 0 : i32
    return %c0_i32, %c0_i32_0 : i32, i32
  }
  func.func @transform_3(%arg0: i32, %arg1: i32) -> (i32, i32) {
    %c0_i32 = arith.constant 0 : i32
    %c0_i32_0 = arith.constant 0 : i32
    %c0_i32_1 = arith.constant 0 : i32
    return %c0_i32, %c0_i32_0 : i32, i32
  }
  func.func @transform_4(%arg0: i32, %arg1: i32) -> (i32, i32) {
    %c0_i32 = arith.constant 0 : i32
    %c0_i32_0 = arith.constant 0 : i32
    %c0_i32_1 = arith.constant 0 : i32
    return %c0_i32, %c0_i32_0 : i32, i32
  }
  func.func @transform_5(%arg0: i32, %arg1: i32) -> (i32, i32) {
    %c0_i32 = arith.constant 0 : i32
    %c0_i32_0 = arith.constant 0 : i32
    %c0_i32_1 = arith.constant 0 : i32
    return %c0_i32, %c0_i32_0 : i32, i32
  }
  func.func @transform_6(%arg0: i32, %arg1: i32) -> (i32, i32, i32) {
    %c0_i32 = arith.constant 0 : i32
    %c0_i32_0 = arith.constant 0 : i32
    return %arg0, %arg1, %c0_i32 : i32, i32, i32
  }
}

</mosaic_0001>

<llo_original>
// kernel: tpu_custom_call.1
$region0: #{tpu_custom_call.1}
  #allocation0 [shape = 'u32[]', space=smem, size = 0x4, offset = 0x4, fixed_abs, tag = 'smem constant byte address 0x4 - core index']
  #allocation1 [shape = 'u32[144,128]{1,0:T(1,128)}', space=vmem, size = 0x12000, scoped, tag = 'internal scratch']
  #allocation2 [shape = 'f32[4,8,8]{2,1,0:T(8,128)}', space=vmem, size = 0x4000, scoped, tag = 'scratch operand']
  #allocation3 [shape = 'f32[4,8,8]{2,1,0:T(8,128)}', space=vmem, size = 0x4000, scoped, tag = 'scratch operand']
  %s0 = inlined_call_operand.hbm [shape: f32[2,8,32], index: 0, kind: input, shape index: {}]
  %s1 = inlined_call_operand.hbm [shape: f32[32,32], index: 1, kind: input, shape index: {}]
  %s2 = inlined_call_operand.hbm [shape: f32[32,32], index: 2, kind: input, shape index: {}]
  %s3 = inlined_call_operand.hbm [shape: f32[32,32], index: 3, kind: input, shape index: {}]
  %s4 = inlined_call_operand.hbm [shape: f32[32,32], index: 4, kind: input, shape index: {}]
  %s5 = inlined_call_operand.vmem [shape: f32[1,32], index: 5, kind: input, shape index: {}]
  %s6 = inlined_call_operand.hbm [shape: f32[2,8,32], index: 6, kind: output, shape index: {}]
  %s7 = sld [smem:[#allocation0]]
  $region81: #{tpu_custom_call.1} parent=0
    _
  %s9 = ssub.s32 1, %s7
  %s10 = scalar_select 0, %s9, %s7
  $region1: #{tpu_custom_call.1} parent=0
    #allocation4 [shape = 'u8[8192]{0}', space=vmem, size = 0x2000, scoped, tag = 'input window, operand 0']
    #allocation5 [shape = 's32[2]{0}', space=sflag, size = 0x8, scoped, tag = 'scoped memory for tpu_custom_call.1']
    #allocation6 [shape = 's32[2]{0}', space=sflag, size = 0x8, scoped, tag = 'scoped memory for tpu_custom_call.1']
    #allocation7 [shape = 'u8[16384]{0}', space=vmem, size = 0x4000, scoped, tag = 'input window, operand 1, single buffered']
    #allocation8 [shape = 's32[1]{0}', space=sflag, size = 0x4, scoped, tag = 'scoped memory for tpu_custom_call.1']
    #allocation9 [shape = 'u8[16384]{0}', space=vmem, size = 0x4000, scoped, tag = 'input window, operand 2, single buffered']
    #allocation10 [shape = 'u8[16384]{0}', space=vmem, size = 0x4000, scoped, tag = 'input window, operand 3, single buffered']
    #allocation11 [shape = 's32[1]{0}', space=sflag, size = 0x4, scoped, tag = 'scoped memory for tpu_custom_call.1']
    #allocation12 [shape = 'u8[16384]{0}', space=vmem, size = 0x4000, scoped, tag = 'input window, operand 4, single buffered']
    #allocation13 [shape = 'u8[8192]{0}', space=vmem, size = 0x2000, scoped, tag = 'output window, operand 0']
    %11 = vsyncpa [#allocation5], 0
    %s12 = scalar_lea.sflag [#allocation5], 1
    %13 = vsyncpa %s12, 0
    %14 = vsyncpa [#allocation8], 0
    %15 = vsyncpa [#allocation11], 0
    %16 = vsyncpa [#allocation6], 0
    %s17 = scalar_lea.sflag [#allocation6], 1
    %18 = vsyncpa %s17, 0
    loop: start=0, step=1, limit=4
    $region2: #{tpu_custom_call.1} parent=1 // loop_pre_header
      _
    $region3: #{tpu_custom_call.1} parent=1 // loop_header
      %s20 = sphi 0, %s24
      %p21 = scmp.ge.s32.totalorder %s20, 4
      %s27 = sphi 0, %s39
      %s28 = sphi 0, %s35
      %s29 = sphi 0, %s27
      %s30 = sphi 0, %s28
      %s31 = sphi 0, %s29
      %s32 = sphi 0, %s30
      %s42 = sphi 0, %s44
      %s45 = sphi 0, %s42
      %s46 = sphi 0, %s45
      %s62 = sphi 0, %s46
      %s66 = sphi 0, %s66
      %s68 = sphi 0, %s66
      %s69 = sphi 0, %s68
      %s83 = sphi 0, %s69
      %s87 = sphi 0, %s87
      %s89 = sphi 0, %s87
      %s90 = sphi 0, %s89
      %s104 = sphi 0, %s90
      %s108 = sphi 0, %s108
      %s110 = sphi 0, %s108
      %s111 = sphi 0, %s110
      %s125 = sphi 0, %s111
      %s129 = sphi 0, %s129
      %s131 = sphi 0, %s129
      %s132 = sphi 0, %s131
      %s146 = sphi 0, %s132
      %s150 = sphi 0, %s150
      %s152 = sphi 0, %s150
      %s153 = sphi 0, %s152
      %s167 = sphi 0, %s153
      %s175 = sphi 0, %s177
      %s178 = sphi 0, %s175
      %s179 = sphi 0, %s178
      %s195 = sphi 0, %s179
    $region4: #{tpu_custom_call.1} parent=1 // loop_header_branch
      %23 = sbr.rel (%p21) target = $region8
    $region5: #{tpu_custom_call.1} parent=1 // loop_body
      %s25 = ssub.s32 %s20, 1
      %s26 = ssub.s32 %s20, 2
      %s33 = sadd.s32 1, %s28
      %p34 = scmp.ge.s32.totalorder %s33, 1
      %s35 = scalar_select %p34, 0, %s33
      %s36 = sadd.s32 1, %s27
      %s37 = scalar_select %p34, %s36, %s27
      %p38 = scmp.ge.s32.totalorder %s37, 2
      %s39 = scalar_select %p38, 0, %s37
      %s40 = ssub.s32 %s27, %s39
      %p41 = scmp.eq.s32.totalorder %s40, 0
      %s43 = sadd.s32 %s42, 1
      %s44 = scalar_select %p41, %s42, %s43
      %p47 = pneg %p41
      %p48 = scmp.eq.s32.totalorder %s20, 1
      %p49 = por %p47, %p48
      %p50 = scmp.ne.s32.totalorder %s42, %s45
      %p51 = scmp.eq.s32.totalorder %s20, 0
      %p52 = por %p50, %p51
      %p53 = scmp.ne.s32.totalorder %s42, %s45
      %p54 = scmp.eq.s32.totalorder %s25, 1
      %p55 = por %p53, %p54
      %p56 = scmp.ne.s32.totalorder %s45, %s46
      %p57 = scmp.eq.s32.totalorder %s25, 0
      %p58 = por %p56, %p57
      %p59 = scmp.ne.s32.totalorder %s45, %s46
      %p60 = scmp.eq.s32.totalorder %s26, 1
      %p61 = por %p59, %p60
      %p63 = scmp.ne.s32.totalorder %s46, %s62
      %p64 = scmp.eq.s32.totalorder %s26, 0
      %p65 = por %p63, %p64
      %s67 = sadd.s32 %s66, 1
      %p70 = scmp.eq.s32.totalorder %s20, 1
      %p71 = scmp.ne.s32.totalorder %s66, %s68
      %p72 = scmp.eq.s32.totalorder %s20, 0
      %p73 = por %p71, %p72
      %p74 = scmp.ne.s32.totalorder %s66, %s68
      %p75 = scmp.eq.s32.totalorder %s25, 1
      %p76 = por %p74, %p75
      %p77 = scmp.ne.s32.totalorder %s68, %s69
      %p78 = scmp.eq.s32.totalorder %s25, 0
      %p79 = por %p77, %p78
      %p80 = scmp.ne.s32.totalorder %s68, %s69
      %p81 = scmp.eq.s32.totalorder %s26, 1
      %p82 = por %p80, %p81
      %p84 = scmp.ne.s32.totalorder %s69, %s83
      %p85 = scmp.eq.s32.totalorder %s26, 0
      %p86 = por %p84, %p85
      %s88 = sadd.s32 %s87, 1
      %p91 = scmp.eq.s32.totalorder %s20, 1
      %p92 = scmp.ne.s32.totalorder %s87, %s89
      %p93 = scmp.eq.s32.totalorder %s20, 0
      %p94 = por %p92, %p93
      %p95 = scmp.ne.s32.totalorder %s87, %s89
      %p96 = scmp.eq.s32.totalorder %s25, 1
      %p97 = por %p95, %p96
      %p98 = scmp.ne.s32.totalorder %s89, %s90
      %p99 = scmp.eq.s32.totalorder %s25, 0
      %p100 = por %p98, %p99
      %p101 = scmp.ne.s32.totalorder %s89, %s90
      %p102 = scmp.eq.s32.totalorder %s26, 1
      %p103 = por %p101, %p102
      %p105 = scmp.ne.s32.totalorder %s90, %s104
      %p106 = scmp.eq.s32.totalorder %s26, 0
      %p107 = por %p105, %p106
      %s109 = sadd.s32 %s108, 1
      %p112 = scmp.eq.s32.totalorder %s20, 1
      %p113 = scmp.ne.s32.totalorder %s108, %s110
      %p114 = scmp.eq.s32.totalorder %s20, 0
      %p115 = por %p113, %p114
      %p116 = scmp.ne.s32.totalorder %s108, %s110
      %p117 = scmp.eq.s32.totalorder %s25, 1
      %p118 = por %p116, %p117
      %p119 = scmp.ne.s32.totalorder %s110, %s111
      %p120 = scmp.eq.s32.totalorder %s25, 0
      %p121 = por %p119, %p120
      %p122 = scmp.ne.s32.totalorder %s110, %s111
      %p123 = scmp.eq.s32.totalorder %s26, 1
      %p124 = por %p122, %p123
      %p126 = scmp.ne.s32.totalorder %s111, %s125
      %p127 = scmp.eq.s32.totalorder %s26, 0
      %p128 = por %p126, %p127
      %s130 = sadd.s32 %s129, 1
      %p133 = scmp.eq.s32.totalorder %s20, 1
      %p134 = scmp.ne.s32.totalorder %s129, %s131
      %p135 = scmp.eq.s32.totalorder %s20, 0
      %p136 = por %p134, %p135
      %p137 = scmp.ne.s32.totalorder %s129, %s131
      %p138 = scmp.eq.s32.totalorder %s25, 1
      %p139 = por %p137, %p138
      %p140 = scmp.ne.s32.totalorder %s131, %s132
      %p141 = scmp.eq.s32.totalorder %s25, 0
      %p142 = por %p140, %p141
      %p143 = scmp.ne.s32.totalorder %s131, %s132
      %p144 = scmp.eq.s32.totalorder %s26, 1
      %p145 = por %p143, %p144
      %p147 = scmp.ne.s32.totalorder %s132, %s146
      %p148 = scmp.eq.s32.totalorder %s26, 0
      %p149 = por %p147, %p148
      %s151 = sadd.s32 %s150, 1
      %p154 = scmp.eq.s32.totalorder %s20, 1
      %p155 = scmp.ne.s32.totalorder %s150, %s152
      %p156 = scmp.eq.s32.totalorder %s20, 0
      %p157 = por %p155, %p156
      %p158 = scmp.ne.s32.totalorder %s150, %s152
      %p159 = scmp.eq.s32.totalorder %s25, 1
      %p160 = por %p158, %p159
      %p161 = scmp.ne.s32.totalorder %s152, %s153
      %p162 = scmp.eq.s32.totalorder %s25, 0
      %p163 = por %p161, %p162
      %p164 = scmp.ne.s32.totalorder %s152, %s153
      %p165 = scmp.eq.s32.totalorder %s26, 1
      %p166 = por %p164, %p165
      %p168 = scmp.ne.s32.totalorder %s153, %s167
      %p169 = scmp.eq.s32.totalorder %s26, 0
      %p170 = por %p168, %p169
      %s171 = ssub.s32 %s27, %s39
      %s172 = ssub.s32 %s28, %s35
      %s173 = sor.u32 %s171, %s172
      %p174 = scmp.eq.s32.totalorder %s173, 0
      %s176 = sadd.s32 %s175, 1
      %s177 = scalar_select %p174, %s175, %s176
      %p180 = pneg %p174
      %p181 = scmp.eq.s32.totalorder %s20, 1
      %p182 = por %p180, %p181
      %p183 = scmp.ne.s32.totalorder %s175, %s178
      %p184 = scmp.eq.s32.totalorder %s20, 0
      %p185 = por %p183, %p184
      %p186 = scmp.ne.s32.totalorder %s175, %s178
      %p187 = scmp.eq.s32.totalorder %s25, 1
      %p188 = por %p186, %p187
      %p189 = scmp.ne.s32.totalorder %s178, %s179
      %p190 = scmp.eq.s32.totalorder %s25, 0
      %p191 = por %p189, %p190
      %p192 = scmp.ne.s32.totalorder %s178, %s179
      %p193 = scmp.eq.s32.totalorder %s26, 1
      %p194 = por %p192, %p193
      %p196 = scmp.ne.s32.totalorder %s179, %s195
      %p197 = scmp.eq.s32.totalorder %s26, 0
      %p198 = por %p196, %p197
      %p199 = scmp.le.s32.totalorder 1, %s20
      %p200 = scmp.lt.s32.totalorder %s20, 3
      %p201 = pnand %p199, %p200
      %p202 = pneg %p201
      // Predicated region
      $region9: #{tpu_custom_call.1} parent=5 // pred_check
        _
      $region10: #{tpu_custom_call.1} parent=5 // pred_check_branch
        %204 = sbr.rel (%p201) target = $region12
      $region11: #{tpu_custom_call.1} parent=5 // pred_region
        %s205 = ssub.s32 %s20, 1
        // Predicated region
        $region13: #{tpu_custom_call.1} parent=11 // pred_check
          %p206 = pneg %p79
        $region14: #{tpu_custom_call.1} parent=11 // pred_check_branch
          %208 = sbr.rel (%p206) target = $region16
        $region15: #{tpu_custom_call.1} parent=11 // pred_region
          %s210 = ssub.s32 512, 512
          %211 = vsyncadd [#allocation8], %s210
          %s212 = sshll.u32 [#allocation7], 4
          %s213 = int_to_ptr.vmem [resolvable:$true] %s212
          %218 = dma.hbm_to_vmem [thread:$0]  %s1, 512, %s213, [#allocation8], 128, 128, 8
        $region16: #{tpu_custom_call.1} parent=11 // pred_fallthru
          _
        // Predicated region
        $region17: #{tpu_custom_call.1} parent=11 // pred_check
          %p219 = pneg %p100
        $region18: #{tpu_custom_call.1} parent=11 // pred_check_branch
          %221 = sbr.rel (%p219) target = $region20
        $region19: #{tpu_custom_call.1} parent=11 // pred_region
          %s223 = ssub.s32 512, 512
          %224 = vsyncadd [#allocation8], %s223
          %s225 = sshll.u32 [#allocation9], 4
          %s226 = int_to_ptr.vmem [resolvable:$true] %s225
          %231 = dma.hbm_to_vmem [thread:$0]  %s2, 512, %s226, [#allocation8], 128, 128, 8
        $region20: #{tpu_custom_call.1} parent=11 // pred_fallthru
          _
        // Predicated region
        $region21: #{tpu_custom_call.1} parent=11 // pred_check
          %p232 = pneg %p121
        $region22: #{tpu_custom_call.1} parent=11 // pred_check_branch
          %234 = sbr.rel (%p232) target = $region24
        $region23: #{tpu_custom_call.1} parent=11 // pred_region
          %s236 = ssub.s32 512, 512
          %237 = vsyncadd [#allocation11], %s236
          %s238 = sshll.u32 [#allocation10], 4
          %s239 = int_to_ptr.vmem [resolvable:$true] %s238
          %244 = dma.hbm_to_vmem [thread:$0]  %s3, 512, %s239, [#allocation11], 128, 128, 8
        $region24: #{tpu_custom_call.1} parent=11 // pred_fallthru
          _
        // Predicated region
        $region25: #{tpu_custom_call.1} parent=11 // pred_check
          %p245 = pneg %p142
        $region26: #{tpu_custom_call.1} parent=11 // pred_check_branch
          %247 = sbr.rel (%p245) target = $region28
        $region27: #{tpu_custom_call.1} parent=11 // pred_region
          %s249 = ssub.s32 512, 512
          %250 = vsyncadd [#allocation11], %s249
          %s251 = sshll.u32 [#allocation12], 4
          %s252 = int_to_ptr.vmem [resolvable:$true] %s251
          %257 = dma.hbm_to_vmem [thread:$0]  %s4, 512, %s252, [#allocation11], 128, 128, 8
        $region28: #{tpu_custom_call.1} parent=11 // pred_fallthru
          _
        // Predicated region
        $region29: #{tpu_custom_call.1} parent=11 // pred_check
          %p258 = pneg %p163
        $region30: #{tpu_custom_call.1} parent=11 // pred_check_branch
          %260 = sbr.rel (%p258) target = $region32
        $region31: #{tpu_custom_call.1} parent=11 // pred_region
          _
        $region32: #{tpu_custom_call.1} parent=11 // pred_fallthru
          _
      $region12: #{tpu_custom_call.1} parent=5 // pred_fallthru
        _
      %p261 = scmp.lt.s32.totalorder %s20, 2
      // Predicated region
      $region33: #{tpu_custom_call.1} parent=5 // pred_check
        %p262 = pneg %p261
      $region34: #{tpu_custom_call.1} parent=5 // pred_check_branch
        %264 = sbr.rel (%p262) target = $region36
      $region35: #{tpu_custom_call.1} parent=5 // pred_region
        // Predicated region
        $region37: #{tpu_custom_call.1} parent=35 // pred_check
          %p265 = pneg %p52
        $region38: #{tpu_custom_call.1} parent=35 // pred_check_branch
          %267 = sbr.rel (%p265) target = $region40
        $region39: #{tpu_custom_call.1} parent=35 // pred_region
          %s268 = sand.u32 %s42, 1
          %s269 = scalar_lea.sflag [#allocation5], %s268
          %s270 = sand.u32 %s42, 1
          %s271 = smul.addr %s270, 8
          %s272 = scalar_lea.vmem [#allocation4], %s271
          %s274 = ssub.s32 128, 128
          %275 = vsyncadd %s269, %s274
          %s276 = smul.addr %s27, 128
          %s277 = scalar_lea.hbm %s0, %s276
          %s279 = sshll.u32 %s272, 4
          %s280 = int_to_ptr.vmem [resolvable:$true] %s279
          %282 = dma.hbm_to_vmem [thread:$0]  %s277, 128, %s280, %s269
        $region40: #{tpu_custom_call.1} parent=35 // pred_fallthru
          _
      $region36: #{tpu_custom_call.1} parent=5 // pred_fallthru
        _
      %p283 = scmp.le.s32.totalorder 1, %s20
      %p284 = scmp.lt.s32.totalorder %s20, 3
      %p285 = pnand %p283, %p284
      %p286 = pneg %p285
      // Predicated region
      $region41: #{tpu_custom_call.1} parent=5 // pred_check
        _
      $region42: #{tpu_custom_call.1} parent=5 // pred_check_branch
        %288 = sbr.rel (%p285) target = $region44
      $region43: #{tpu_custom_call.1} parent=5 // pred_region
        %s289 = ssub.s32 %s20, 1
        %s290 = sand.u32 %s45, 1
        %s291 = scalar_lea.sflag [#allocation5], %s290
        %s292 = sand.u32 %s45, 1
        %s293 = smul.addr %s292, 8
        %s294 = scalar_lea.vmem [#allocation4], %s293
        // Predicated region
        $region45: #{tpu_custom_call.1} parent=43 // pred_check
          %p295 = pneg %p58
        $region46: #{tpu_custom_call.1} parent=43 // pred_check_branch
          %297 = sbr.rel (%p295) target = $region48
        $region47: #{tpu_custom_call.1} parent=43 // pred_region
          %298 = dma.done %s291, 128
        $region48: #{tpu_custom_call.1} parent=43 // pred_fallthru
          _
        // Predicated region
        $region49: #{tpu_custom_call.1} parent=43 // pred_check
          %p299 = pneg %p79
        $region50: #{tpu_custom_call.1} parent=43 // pred_check_branch
          %301 = sbr.rel (%p299) target = $region52
        $region51: #{tpu_custom_call.1} parent=43 // pred_region
          %302 = dma.done [#allocation8], 512
        $region52: #{tpu_custom_call.1} parent=43 // pred_fallthru
          _
        // Predicated region
        $region53: #{tpu_custom_call.1} parent=43 // pred_check
          %p303 = pneg %p100
        $region54: #{tpu_custom_call.1} parent=43 // pred_check_branch
          %305 = sbr.rel (%p303) target = $region56
        $region55: #{tpu_custom_call.1} parent=43 // pred_region
          %306 = dma.done [#allocation8], 512
        $region56: #{tpu_custom_call.1} parent=43 // pred_fallthru
          _
        // Predicated region
        $region57: #{tpu_custom_call.1} parent=43 // pred_check
          %p307 = pneg %p121
        $region58: #{tpu_custom_call.1} parent=43 // pred_check_branch
          %309 = sbr.rel (%p307) target = $region60
        $region59: #{tpu_custom_call.1} parent=43 // pred_region
          %310 = dma.done [#allocation11], 512
        $region60: #{tpu_custom_call.1} parent=43 // pred_fallthru
          _
        // Predicated region
        $region61: #{tpu_custom_call.1} parent=43 // pred_check
          %p311 = pneg %p142
        $region62: #{tpu_custom_call.1} parent=43 // pred_check_branch
          %313 = sbr.rel (%p311) target = $region64
        $region63: #{tpu_custom_call.1} parent=43 // pred_region
          %314 = dma.done [#allocation11], 512
        $region64: #{tpu_custom_call.1} parent=43 // pred_fallthru
          _
        %s315 = sand.u32 %s45, 1
        %s316 = scalar_lea.sflag [#allocation5], %s315
        %s317 = sand.u32 %s45, 1
        %s318 = smul.addr %s317, 8
        %s319 = scalar_lea.vmem [#allocation4], %s318
        %p320 = pneg %p58
        %p321 = pneg %p55
        %p322 = pneg %p79
        %p323 = pneg %p76
        %p324 = pneg %p100
        %p325 = pneg %p97
        %p326 = pneg %p121
        %p327 = pneg %p118
        %p328 = pneg %p142
        %p329 = pneg %p139
        %p330 = pneg %p163
        %p331 = pneg %p160
        %p332 = pneg %p191
        %p333 = pneg %p188
        %s334 = sand.u32 %s178, 1
        %s335 = scalar_lea.sflag [#allocation6], %s334
        %s336 = sand.u32 %s178, 1
        %s337 = smul.addr %s336, 8
        %s338 = scalar_lea.vmem [#allocation13], %s337
        %p339 = scmp.eq.s32.totalorder %s30, 0
        // Predicated region
        $region65: #{tpu_custom_call.1} parent=43 // pred_check
          %p340 = pneg %p339
        $region66: #{tpu_custom_call.1} parent=43 // pred_check_branch
          %342 = sbr.rel (%p340) target = $region68
        $region67: #{tpu_custom_call.1} parent=43 // pred_region
          %v343 = vld [vmem:[%s294] sm:$0xff]
          %v344 = vld [vmem:[#allocation9] sm:$0xff]
          %v345 = vld [vmem:[#allocation9 + $0x8] sm:$0xff]
          %v346 = vld [vmem:[#allocation9 + $0x10] sm:$0xff]
          %v347 = vld [vmem:[#allocation9 + $0x18] sm:$0xff]
          %vm348 = vcmask 261120
          %v350 = vsel %vm348, %v343, 0
          %352 = vmatprep.subr.mxu0 0.0
          %353 = vmatpush1.msra.mxu0 %v344
          %354 = vmatprep.subr.mxu0 0.0
          %355 = vmatpush1.msra.mxu0 %v345
          %356 = vmatprep.subr.mxu0 0.0
          %357 = vmatpush1.msra.mxu0 %v346
          %358 = vmatprep.subr.mxu0 0.0
          %359 = vmatpush1.msra.mxu0 %v347
          %360 = vmatprep.subr.mxu0 0.0
          %361 = vmatpush1.msra.mxu0 0.0
          %362 = vmatprep.subr.mxu0 0.0
          %363 = vmatpush1.msra.mxu0 0.0
          %364 = vmatprep.subr.mxu0 0.0
          %365 = vmatpush1.msra.mxu0 0.0
          %366 = vmatprep.subr.mxu0 0.0
          %367 = vmatpush1.msra.mxu0 0.0
          %368 = vmatprep.subr.mxu0 0.0
          %369 = vmatpush1.msra.mxu0 0.0
          %370 = vmatprep.subr.mxu0 0.0
          %371 = vmatpush1.msra.mxu0 0.0
          %372 = vmatprep.subr.mxu0 0.0
          %373 = vmatpush1.msra.mxu0 0.0
          %374 = vmatprep.subr.mxu0 0.0
          %375 = vmatpush1.msra.mxu0 0.0
          %376 = vmatprep.subr.mxu0 0.0
          %377 = vmatpush1.msra.mxu0 0.0
          %378 = vmatprep.subr.mxu0 0.0
          %379 = vmatpush1.msra.mxu0 0.0
          %380 = vmatprep.subr.mxu0 0.0
          %381 = vmatpush1.msra.mxu0 0.0
          %382 = vmatprep.subr.mxu0 0.0
          %383 = vmatpush1.msra.mxu0 0.0
          %384 = vmatprep.subr.mxu0 0.0
          %385 = vmatpush1.msra.mxu0 0.0
          %386 = vmatprep.subr.mxu0 0.0
          %387 = vmatpush1.msra.mxu0 0.0
          %388 = vmatprep.subr.mxu0 0.0
          %389 = vmatpush1.msra.mxu0 0.0
          %390 = vmatprep.subr.mxu0 0.0
          %391 = vmatpush1.msra.mxu0 0.0
          %392 = vmatprep.subr.mxu0 0.0
          %393 = vmatpush1.msra.mxu0 0.0
          %394 = vmatprep.subr.mxu0 0.0
          %395 = vmatpush1.msra.mxu0 0.0
          %396 = vmatprep.subr.mxu0 0.0
          %397 = vmatpush1.msra.mxu0 0.0
          %398 = vmatprep.subr.mxu0 0.0
          %399 = vmatpush1.msra.mxu0 0.0
          %400 = vmatprep.subr.mxu0 0.0
          %401 = vmatpush1.msra.mxu0 0.0
          %402 = vmatprep.subr.mxu0 0.0
          %403 = vmatpush1.msra.mxu0 0.0
          %404 = vmatprep.subr.mxu0 0.0
          %405 = vmatpush1.msra.mxu0 0.0
          %406 = vmatprep.subr.mxu0 0.0
          %407 = vmatpush1.msra.mxu0 0.0
          %408 = vmatprep.subr.mxu0 0.0
          %409 = vmatpush1.msra.mxu0 0.0
          %410 = vmatprep.subr.mxu0 0.0
          %411 = vmatpush1.msra.mxu0 0.0
          %412 = vmatprep.subr.mxu0 0.0
          %413 = vmatpush1.msra.mxu0 0.0
          %414 = vmatprep.subr.mxu0 0.0
          %415 = vmatpush1.msra.mxu0 0.0
          %416 = vmatprep.mubr.f32.mxu0 0.0
          %417 = vmatmul.mubr.f32.gmra.mrb[0].mxu0 %v350
          %v418 = vpop.f32.mrb[0].mxu0
          %v419 = vadd.f32 0.0, %v418
          %v420 = vpop.f32.mrb[0].mxu0
          %421 = vdwg.mxu0
          %v422 = vld [vmem:[#allocation10] sm:$0xff]
          %v423 = vld [vmem:[#allocation10 + $0x8] sm:$0xff]
          %v424 = vld [vmem:[#allocation10 + $0x10] sm:$0xff]
          %v425 = vld [vmem:[#allocation10 + $0x18] sm:$0xff]
          %426 = vmatprep.subr.mxu0 0.0
          %427 = vmatpush1.msra.mxu0 %v422
          %428 = vmatprep.subr.mxu0 0.0
          %429 = vmatpush1.msra.mxu0 %v423
          %430 = vmatprep.subr.mxu0 0.0
          %431 = vmatpush1.msra.mxu0 %v424
          %432 = vmatprep.subr.mxu0 0.0
          %433 = vmatpush1.msra.mxu0 %v425
          %434 = vmatprep.subr.mxu0 0.0
          %435 = vmatpush1.msra.mxu0 0.0
          %436 = vmatprep.subr.mxu0 0.0
          %437 = vmatpush1.msra.mxu0 0.0
          %438 = vmatprep.subr.mxu0 0.0
          %439 = vmatpush1.msra.mxu0 0.0
          %440 = vmatprep.subr.mxu0 0.0
          %441 = vmatpush1.msra.mxu0 0.0
          %442 = vmatprep.subr.mxu0 0.0
          %443 = vmatpush1.msra.mxu0 0.0
          %444 = vmatprep.subr.mxu0 0.0
          %445 = vmatpush1.msra.mxu0 0.0
          %446 = vmatprep.subr.mxu0 0.0
          %447 = vmatpush1.msra.mxu0 0.0
          %448 = vmatprep.subr.mxu0 0.0
          %449 = vmatpush1.msra.mxu0 0.0
          %450 = vmatprep.subr.mxu0 0.0
          %451 = vmatpush1.msra.mxu0 0.0
          %452 = vmatprep.subr.mxu0 0.0
          %453 = vmatpush1.msra.mxu0 0.0
          %454 = vmatprep.subr.mxu0 0.0
          %455 = vmatpush1.msra.mxu0 0.0
          %456 = vmatprep.subr.mxu0 0.0
          %457 = vmatpush1.msra.mxu0 0.0
          %458 = vmatprep.subr.mxu0 0.0
          %459 = vmatpush1.msra.mxu0 0.0
          %460 = vmatprep.subr.mxu0 0.0
          %461 = vmatpush1.msra.mxu0 0.0
          %462 = vmatprep.subr.mxu0 0.0
          %463 = vmatpush1.msra.mxu0 0.0
          %464 = vmatprep.subr.mxu0 0.0
          %465 = vmatpush1.msra.mxu0 0.0
          %466 = vmatprep.subr.mxu0 0.0
          %467 = vmatpush1.msra.mxu0 0.0
          %468 = vmatprep.subr.mxu0 0.0
          %469 = vmatpush1.msra.mxu0 0.0
          %470 = vmatprep.subr.mxu0 0.0
          %471 = vmatpush1.msra.mxu0 0.0
          %472 = vmatprep.subr.mxu0 0.0
          %473 = vmatpush1.msra.mxu0 0.0
          %474 = vmatprep.subr.mxu0 0.0
          %475 = vmatpush1.msra.mxu0 0.0
          %476 = vmatprep.subr.mxu0 0.0
          %477 = vmatpush1.msra.mxu0 0.0
          %478 = vmatprep.subr.mxu0 0.0
          %479 = vmatpush1.msra.mxu0 0.0
          %480 = vmatprep.subr.mxu0 0.0
          %481 = vmatpush1.msra.mxu0 0.0
          %482 = vmatprep.subr.mxu0 0.0
          %483 = vmatpush1.msra.mxu0 0.0
          %484 = vmatprep.subr.mxu0 0.0
          %485 = vmatpush1.msra.mxu0 0.0
          %486 = vmatprep.subr.mxu0 0.0
          %487 = vmatpush1.msra.mxu0 0.0
          %488 = vmatprep.subr.mxu0 0.0
          %489 = vmatpush1.msra.mxu0 0.0
          %490 = vmatprep.mubr.f32.mxu0 0.0
          %491 = vmatmul.mubr.f32.gmra.mrb[0].mxu0 %v350
          %v492 = vpop.f32.mrb[0].mxu0
          %v493 = vadd.f32 0.0, %v492
          %v494 = vpop.f32.mrb[0].mxu0
          %495 = vdwg.mxu0
          %497 = vrot.lane.b32.xlu0 %v419, 120
          %v498 = vpop.permute.xlu0 %497
          %500 = vrot.lane.b32.xlu0 %v419, 112
          %v501 = vpop.permute.xlu0 %500
          %503 = vrot.lane.b32.xlu0 %v419, 104
          %v504 = vpop.permute.xlu0 %503
          %v506 = vcombine.low %v419, %v501
          %v507 = vcombine.high %v419, %v501
          %v509 = vunpack.c.l.s4 1983009808
          %v510 = vunpack.c.0.s8 %v509
          %v511 = vlaneseq
          %v512 = vshrl.u32 %v511, 7
          %v513 = vsub.s32 %v510, %v512
          %v514 = vrot.slane %v506, %v513
          %v516 = vunpack.c.l.s4 1983009808
          %v517 = vunpack.c.0.s8 %v516
          %v518 = vlaneseq
          %v519 = vshrl.u32 %v518, 7
          %v520 = vsub.s32 %v517, %v519
          %v521 = vrot.slane %v507, %v520
          %v522 = vcombine.low %v498, %v504
          %v523 = vcombine.high %v498, %v504
          %v525 = vunpack.c.l.s4 1983009808
          %v526 = vunpack.c.0.s8 %v525
          %v527 = vlaneseq
          %v528 = vshrl.u32 %v527, 7
          %v529 = vsub.s32 %v526, %v528
          %v530 = vrot.slane %v522, %v529
          %v532 = vunpack.c.l.s4 1983009808
          %v533 = vunpack.c.0.s8 %v532
          %v534 = vlaneseq
          %v535 = vshrl.u32 %v534, 7
          %v536 = vsub.s32 %v533, %v535
          %v537 = vrot.slane %v523, %v536
          %v538 = vcombine.low %v514, %v530
          %v539 = vcombine.high %v514, %v530
          %v541 = vunpack.c.l.s4 1934713408
          %v542 = vunpack.c.0.s8 %v541
          %v543 = vlaneseq
          %v544 = vshrl.u32 %v543, 7
          %v545 = vsub.s32 %v542, %v544
          %v546 = vrot.slane %v538, %v545
          %v548 = vunpack.c.l.s4 1934713408
          %v549 = vunpack.c.0.s8 %v548
          %v550 = vlaneseq
          %v551 = vshrl.u32 %v550, 7
          %v552 = vsub.s32 %v549, %v551
          %v553 = vrot.slane %v539, %v552
          %v554 = vcombine.low %v521, %v537
          %v555 = vcombine.high %v521, %v537
          %v557 = vunpack.c.l.s4 1934713408
          %v558 = vunpack.c.0.s8 %v557
          %v559 = vlaneseq
          %v560 = vshrl.u32 %v559, 7
          %v561 = vsub.s32 %v558, %v560
          %v562 = vrot.slane %v554, %v561
          %v564 = vunpack.c.l.s4 1934713408
          %v565 = vunpack.c.0.s8 %v564
          %v566 = vlaneseq
          %v567 = vshrl.u32 %v566, 7
          %v568 = vsub.s32 %v565, %v567
          %v569 = vrot.slane %v555, %v568
          %v570 = vcombine.high %v546, 0.0
          %v571 = vcombine.high %v553, 0.0
          %v572 = vcombine.high %v562, 0.0
          %v573 = vcombine.high %v569, 0.0
          %v574 = vcombine.low %v546, %v553
          %v576 = vunpack.c.l.s4 1983009808
          %v577 = vunpack.c.0.s8 %v576
          %v578 = vlaneseq
          %v579 = vshrl.u32 %v578, 7
          %v580 = vsub.s32 %v577, %v579
          %v581 = vrot.slane %v574, %v580
          %v582 = vcombine.low %v570, %v571
          %v584 = vunpack.c.l.s4 1983009808
          %v585 = vunpack.c.0.s8 %v584
          %v586 = vlaneseq
          %v587 = vshrl.u32 %v586, 7
          %v588 = vsub.s32 %v585, %v587
          %v589 = vrot.slane %v582, %v588
          %v590 = vcombine.low %v562, %v569
          %v592 = vunpack.c.l.s4 1983009808
          %v593 = vunpack.c.0.s8 %v592
          %v594 = vlaneseq
          %v595 = vshrl.u32 %v594, 7
          %v596 = vsub.s32 %v593, %v595
          %v597 = vrot.slane %v590, %v596
          %v598 = vcombine.low %v572, %v573
          %v600 = vunpack.c.l.s4 1983009808
          %v601 = vunpack.c.0.s8 %v600
          %v602 = vlaneseq
          %v603 = vshrl.u32 %v602, 7
          %v604 = vsub.s32 %v601, %v603
          %v605 = vrot.slane %v598, %v604
          %v606 = vcombine.low %v581, %v589
          %v607 = vcombine.high %v581, %v589
          %v609 = vunpack.c.l.s4 1934713408
          %v610 = vunpack.c.0.s8 %v609
          %v611 = vlaneseq
          %v612 = vshrl.u32 %v611, 7
          %v613 = vsub.s32 %v610, %v612
          %v614 = vrot.slane %v606, %v613
          %v616 = vunpack.c.l.s4 1934713408
          %v617 = vunpack.c.0.s8 %v616
          %v618 = vlaneseq
          %v619 = vshrl.u32 %v618, 7
          %v620 = vsub.s32 %v617, %v619
          %v621 = vrot.slane %v607, %v620
          %v622 = vcombine.low %v597, %v605
          %v623 = vcombine.high %v597, %v605
          %v625 = vunpack.c.l.s4 1934713408
          %v626 = vunpack.c.0.s8 %v625
          %v627 = vlaneseq
          %v628 = vshrl.u32 %v627, 7
          %v629 = vsub.s32 %v626, %v628
          %v630 = vrot.slane %v622, %v629
          %v632 = vunpack.c.l.s4 1934713408
          %v633 = vunpack.c.0.s8 %v632
          %v634 = vlaneseq
          %v635 = vshrl.u32 %v634, 7
          %v636 = vsub.s32 %v633, %v635
          %v637 = vrot.slane %v623, %v636
          %v638 = vcombine.low %v614, %v630
          %v639 = vcombine.high %v614, %v630
          %v640 = vcombine.low %v621, %v637
          %v641 = vcombine.high %v621, %v637
          %vm642 = vcmask 64512
          %643 = vst.msk [vmem:[#allocation2] sm:$0xff] %vm642, %v638
          %644 = vst.msk [vmem:[#allocation2 + $0x8] sm:$0xff] %vm642, %v639
          %645 = vst.msk [vmem:[#allocation2 + $0x10] sm:$0xff] %vm642, %v640
          %646 = vst.msk [vmem:[#allocation2 + $0x18] sm:$0xff] %vm642, %v641
          %648 = vrot.lane.b32.xlu0 %v493, 120
          %v649 = vpop.permute.xlu0 %648
          %651 = vrot.lane.b32.xlu0 %v493, 112
          %v652 = vpop.permute.xlu0 %651
          %654 = vrot.lane.b32.xlu0 %v493, 104
          %v655 = vpop.permute.xlu0 %654
          %v657 = vcombine.low %v493, %v652
          %v658 = vcombine.high %v493, %v652
          %v660 = vunpack.c.l.s4 1983009808
          %v661 = vunpack.c.0.s8 %v660
          %v662 = vlaneseq
          %v663 = vshrl.u32 %v662, 7
          %v664 = vsub.s32 %v661, %v663
          %v665 = vrot.slane %v657, %v664
          %v667 = vunpack.c.l.s4 1983009808
          %v668 = vunpack.c.0.s8 %v667
          %v669 = vlaneseq
          %v670 = vshrl.u32 %v669, 7
          %v671 = vsub.s32 %v668, %v670
          %v672 = vrot.slane %v658, %v671
          %v673 = vcombine.low %v649, %v655
          %v674 = vcombine.high %v649, %v655
          %v676 = vunpack.c.l.s4 1983009808
          %v677 = vunpack.c.0.s8 %v676
          %v678 = vlaneseq
          %v679 = vshrl.u32 %v678, 7
          %v680 = vsub.s32 %v677, %v679
          %v681 = vrot.slane %v673, %v680
          %v683 = vunpack.c.l.s4 1983009808
          %v684 = vunpack.c.0.s8 %v683
          %v685 = vlaneseq
          %v686 = vshrl.u32 %v685, 7
          %v687 = vsub.s32 %v684, %v686
          %v688 = vrot.slane %v674, %v687
          %v689 = vcombine.low %v665, %v681
          %v690 = vcombine.high %v665, %v681
          %v692 = vunpack.c.l.s4 1934713408
          %v693 = vunpack.c.0.s8 %v692
          %v694 = vlaneseq
          %v695 = vshrl.u32 %v694, 7
          %v696 = vsub.s32 %v693, %v695
          %v697 = vrot.slane %v689, %v696
          %v699 = vunpack.c.l.s4 1934713408
          %v700 = vunpack.c.0.s8 %v699
          %v701 = vlaneseq
          %v702 = vshrl.u32 %v701, 7
          %v703 = vsub.s32 %v700, %v702
          %v704 = vrot.slane %v690, %v703
          %v705 = vcombine.low %v672, %v688
          %v706 = vcombine.high %v672, %v688
          %v708 = vunpack.c.l.s4 1934713408
          %v709 = vunpack.c.0.s8 %v708
          %v710 = vlaneseq
          %v711 = vshrl.u32 %v710, 7
          %v712 = vsub.s32 %v709, %v711
          %v713 = vrot.slane %v705, %v712
          %v715 = vunpack.c.l.s4 1934713408
          %v716 = vunpack.c.0.s8 %v715
          %v717 = vlaneseq
          %v718 = vshrl.u32 %v717, 7
          %v719 = vsub.s32 %v716, %v718
          %v720 = vrot.slane %v706, %v719
          %v721 = vcombine.high %v697, 0.0
          %v722 = vcombine.high %v704, 0.0
          %v723 = vcombine.high %v713, 0.0
          %v724 = vcombine.high %v720, 0.0
          %v725 = vcombine.low %v697, %v704
          %v727 = vunpack.c.l.s4 1983009808
          %v728 = vunpack.c.0.s8 %v727
          %v729 = vlaneseq
          %v730 = vshrl.u32 %v729, 7
          %v731 = vsub.s32 %v728, %v730
          %v732 = vrot.slane %v725, %v731
          %v733 = vcombine.low %v721, %v722
          %v735 = vunpack.c.l.s4 1983009808
          %v736 = vunpack.c.0.s8 %v735
          %v737 = vlaneseq
          %v738 = vshrl.u32 %v737, 7
          %v739 = vsub.s32 %v736, %v738
          %v740 = vrot.slane %v733, %v739
          %v741 = vcombine.low %v713, %v720
          %v743 = vunpack.c.l.s4 1983009808
          %v744 = vunpack.c.0.s8 %v743
          %v745 = vlaneseq
          %v746 = vshrl.u32 %v745, 7
          %v747 = vsub.s32 %v744, %v746
          %v748 = vrot.slane %v741, %v747
          %v749 = vcombine.low %v723, %v724
          %v751 = vunpack.c.l.s4 1983009808
          %v752 = vunpack.c.0.s8 %v751
          %v753 = vlaneseq
          %v754 = vshrl.u32 %v753, 7
          %v755 = vsub.s32 %v752, %v754
          %v756 = vrot.slane %v749, %v755
          %v757 = vcombine.low %v732, %v740
          %v758 = vcombine.high %v732, %v740
          %v760 = vunpack.c.l.s4 1934713408
          %v761 = vunpack.c.0.s8 %v760
          %v762 = vlaneseq
          %v763 = vshrl.u32 %v762, 7
          %v764 = vsub.s32 %v761, %v763
          %v765 = vrot.slane %v757, %v764
          %v767 = vunpack.c.l.s4 1934713408
          %v768 = vunpack.c.0.s8 %v767
          %v769 = vlaneseq
          %v770 = vshrl.u32 %v769, 7
          %v771 = vsub.s32 %v768, %v770
          %v772 = vrot.slane %v758, %v771
          %v773 = vcombine.low %v748, %v756
          %v774 = vcombine.high %v748, %v756
          %v776 = vunpack.c.l.s4 1934713408
          %v777 = vunpack.c.0.s8 %v776
          %v778 = vlaneseq
          %v779 = vshrl.u32 %v778, 7
          %v780 = vsub.s32 %v777, %v779
          %v781 = vrot.slane %v773, %v780
          %v783 = vunpack.c.l.s4 1934713408
          %v784 = vunpack.c.0.s8 %v783
          %v785 = vlaneseq
          %v786 = vshrl.u32 %v785, 7
          %v787 = vsub.s32 %v784, %v786
          %v788 = vrot.slane %v774, %v787
          %v789 = vcombine.low %v765, %v781
          %v790 = vcombine.high %v765, %v781
          %v791 = vcombine.low %v772, %v788
          %v792 = vcombine.high %v772, %v788
          %793 = vst.msk [vmem:[#allocation3] sm:$0xff] %vm642, %v789
          %794 = vst.msk [vmem:[#allocation3 + $0x8] sm:$0xff] %vm642, %v790
          %795 = vst.msk [vmem:[#allocation3 + $0x10] sm:$0xff] %vm642, %v791
          %796 = vst.msk [vmem:[#allocation3 + $0x18] sm:$0xff] %vm642, %v792
        $region68: #{tpu_custom_call.1} parent=43 // pred_fallthru
          _
        %s797 = smul.u32 %s30, 8
        %s798 = scalar_lea.vmem %s294, %s797 [#allocation4]
        %v799 = vld [vmem:[%s798] sm:$0xff]
        %v800 = vld [vmem:[#allocation7] sm:$0xff]
        %v801 = vld [vmem:[#allocation7 + $0x8] sm:$0xff]
        %v802 = vld [vmem:[#allocation7 + $0x10] sm:$0xff]
        %v803 = vld [vmem:[#allocation7 + $0x18] sm:$0xff]
        %vm804 = vcmask 261120
        %v806 = vsel %vm804, %v799, 0
        %808 = vmatprep.subr.mxu0 0.0
        %809 = vmatpush1.msra.mxu0 %v800
        %810 = vmatprep.subr.mxu0 0.0
        %811 = vmatpush1.msra.mxu0 %v801
        %812 = vmatprep.subr.mxu0 0.0
        %813 = vmatpush1.msra.mxu0 %v802
        %814 = vmatprep.subr.mxu0 0.0
        %815 = vmatpush1.msra.mxu0 %v803
        %816 = vmatprep.subr.mxu0 0.0
        %817 = vmatpush1.msra.mxu0 0.0
        %818 = vmatprep.subr.mxu0 0.0
        %819 = vmatpush1.msra.mxu0 0.0
        %820 = vmatprep.subr.mxu0 0.0
        %821 = vmatpush1.msra.mxu0 0.0
        %822 = vmatprep.subr.mxu0 0.0
        %823 = vmatpush1.msra.mxu0 0.0
        %824 = vmatprep.subr.mxu0 0.0
        %825 = vmatpush1.msra.mxu0 0.0
        %826 = vmatprep.subr.mxu0 0.0
        %827 = vmatpush1.msra.mxu0 0.0
        %828 = vmatprep.subr.mxu0 0.0
        %829 = vmatpush1.msra.mxu0 0.0
        %830 = vmatprep.subr.mxu0 0.0
        %831 = vmatpush1.msra.mxu0 0.0
        %832 = vmatprep.subr.mxu0 0.0
        %833 = vmatpush1.msra.mxu0 0.0
        %834 = vmatprep.subr.mxu0 0.0
        %835 = vmatpush1.msra.mxu0 0.0
        %836 = vmatprep.subr.mxu0 0.0
        %837 = vmatpush1.msra.mxu0 0.0
        %838 = vmatprep.subr.mxu0 0.0
        %839 = vmatpush1.msra.mxu0 0.0
        %840 = vmatprep.subr.mxu0 0.0
        %841 = vmatpush1.msra.mxu0 0.0
        %842 = vmatprep.subr.mxu0 0.0
        %843 = vmatpush1.msra.mxu0 0.0
        %844 = vmatprep.subr.mxu0 0.0
        %845 = vmatpush1.msra.mxu0 0.0
        %846 = vmatprep.subr.mxu0 0.0
        %847 = vmatpush1.msra.mxu0 0.0
        %848 = vmatprep.subr.mxu0 0.0
        %849 = vmatpush1.msra.mxu0 0.0
        %850 = vmatprep.subr.mxu0 0.0
        %851 = vmatpush1.msra.mxu0 0.0
        %852 = vmatprep.subr.mxu0 0.0
        %853 = vmatpush1.msra.mxu0 0.0
        %854 = vmatprep.subr.mxu0 0.0
        %855 = vmatpush1.msra.mxu0 0.0
        %856 = vmatprep.subr.mxu0 0.0
        %857 = vmatpush1.msra.mxu0 0.0
        %858 = vmatprep.subr.mxu0 0.0
        %859 = vmatpush1.msra.mxu0 0.0
        %860 = vmatprep.subr.mxu0 0.0
        %861 = vmatpush1.msra.mxu0 0.0
        %862 = vmatprep.subr.mxu0 0.0
        %863 = vmatpush1.msra.mxu0 0.0
        %864 = vmatprep.subr.mxu0 0.0
        %865 = vmatpush1.msra.mxu0 0.0
        %866 = vmatprep.subr.mxu0 0.0
        %867 = vmatpush1.msra.mxu0 0.0
        %868 = vmatprep.subr.mxu0 0.0
        %869 = vmatpush1.msra.mxu0 0.0
        %870 = vmatprep.subr.mxu0 0.0
        %871 = vmatpush1.msra.mxu0 0.0
        %872 = vmatprep.mubr.f32.mxu0 0.0
        %873 = vmatmul.mubr.f32.gmra.mrb[0].mxu0 %v806
        %v874 = vpop.f32.mrb[0].mxu0
        %v875 = vadd.f32 0.0, %v874
        %v876 = vpop.f32.mrb[0].mxu0
        %877 = vdwg.mxu0
        %879 = vrot.lane.b32.xlu0 %v875, 120
        %v880 = vpop.permute.xlu0 %879
        %882 = vrot.lane.b32.xlu0 %v875, 112
        %v883 = vpop.permute.xlu0 %882
        %885 = vrot.lane.b32.xlu0 %v875, 104
        %v886 = vpop.permute.xlu0 %885
        %v888 = vcombine.low %v875, %v883
        %v889 = vcombine.high %v875, %v883
        %v891 = vunpack.c.l.s4 1983009808
        %v892 = vunpack.c.0.s8 %v891
        %v893 = vlaneseq
        %v894 = vshrl.u32 %v893, 7
        %v895 = vsub.s32 %v892, %v894
        %v896 = vrot.slane %v888, %v895
        %v898 = vunpack.c.l.s4 1983009808
        %v899 = vunpack.c.0.s8 %v898
        %v900 = vlaneseq
        %v901 = vshrl.u32 %v900, 7
        %v902 = vsub.s32 %v899, %v901
        %v903 = vrot.slane %v889, %v902
        %v904 = vcombine.low %v880, %v886
        %v905 = vcombine.high %v880, %v886
        %v907 = vunpack.c.l.s4 1983009808
        %v908 = vunpack.c.0.s8 %v907
        %v909 = vlaneseq
        %v910 = vshrl.u32 %v909, 7
        %v911 = vsub.s32 %v908, %v910
        %v912 = vrot.slane %v904, %v911
        %v914 = vunpack.c.l.s4 1983009808
        %v915 = vunpack.c.0.s8 %v914
        %v916 = vlaneseq
        %v917 = vshrl.u32 %v916, 7
        %v918 = vsub.s32 %v915, %v917
        %v919 = vrot.slane %v905, %v918
        %v920 = vcombine.low %v896, %v912
        %v921 = vcombine.high %v896, %v912
        %v923 = vunpack.c.l.s4 1934713408
        %v924 = vunpack.c.0.s8 %v923
        %v925 = vlaneseq
        %v926 = vshrl.u32 %v925, 7
        %v927 = vsub.s32 %v924, %v926
        %v928 = vrot.slane %v920, %v927
        %v930 = vunpack.c.l.s4 1934713408
        %v931 = vunpack.c.0.s8 %v930
        %v932 = vlaneseq
        %v933 = vshrl.u32 %v932, 7
        %v934 = vsub.s32 %v931, %v933
        %v935 = vrot.slane %v921, %v934
        %v936 = vcombine.low %v903, %v919
        %v937 = vcombine.high %v903, %v919
        %v939 = vunpack.c.l.s4 1934713408
        %v940 = vunpack.c.0.s8 %v939
        %v941 = vlaneseq
        %v942 = vshrl.u32 %v941, 7
        %v943 = vsub.s32 %v940, %v942
        %v944 = vrot.slane %v936, %v943
        %v946 = vunpack.c.l.s4 1934713408
        %v947 = vunpack.c.0.s8 %v946
        %v948 = vlaneseq
        %v949 = vshrl.u32 %v948, 7
        %v950 = vsub.s32 %v947, %v949
        %v951 = vrot.slane %v937, %v950
        %v952 = vcombine.high %v928, 0.0
        %v953 = vcombine.high %v935, 0.0
        %v954 = vcombine.high %v944, 0.0
        %v955 = vcombine.high %v951, 0.0
        %v956 = vcombine.low %v928, %v935
        %v958 = vunpack.c.l.s4 1983009808
        %v959 = vunpack.c.0.s8 %v958
        %v960 = vlaneseq
        %v961 = vshrl.u32 %v960, 7
        %v962 = vsub.s32 %v959, %v961
        %v963 = vrot.slane %v956, %v962
        %v964 = vcombine.low %v952, %v953
        %v966 = vunpack.c.l.s4 1983009808
        %v967 = vunpack.c.0.s8 %v966
        %v968 = vlaneseq
        %v969 = vshrl.u32 %v968, 7
        %v970 = vsub.s32 %v967, %v969
        %v971 = vrot.slane %v964, %v970
        %v972 = vcombine.low %v944, %v951
        %v974 = vunpack.c.l.s4 1983009808
        %v975 = vunpack.c.0.s8 %v974
        %v976 = vlaneseq
        %v977 = vshrl.u32 %v976, 7
        %v978 = vsub.s32 %v975, %v977
        %v979 = vrot.slane %v972, %v978
        %v980 = vcombine.low %v954, %v955
        %v982 = vunpack.c.l.s4 1983009808
        %v983 = vunpack.c.0.s8 %v982
        %v984 = vlaneseq
        %v985 = vshrl.u32 %v984, 7
        %v986 = vsub.s32 %v983, %v985
        %v987 = vrot.slane %v980, %v986
        %v988 = vcombine.low %v963, %v971
        %v989 = vcombine.high %v963, %v971
        %v991 = vunpack.c.l.s4 1934713408
        %v992 = vunpack.c.0.s8 %v991
        %v993 = vlaneseq
        %v994 = vshrl.u32 %v993, 7
        %v995 = vsub.s32 %v992, %v994
        %v996 = vrot.slane %v988, %v995
        %v998 = vunpack.c.l.s4 1934713408
        %v999 = vunpack.c.0.s8 %v998
        %v1000 = vlaneseq
        %v1001 = vshrl.u32 %v1000, 7
        %v1002 = vsub.s32 %v999, %v1001
        %v1003 = vrot.slane %v989, %v1002
        %v1004 = vcombine.low %v979, %v987
        %v1005 = vcombine.high %v979, %v987
        %v1007 = vunpack.c.l.s4 1934713408
        %v1008 = vunpack.c.0.s8 %v1007
        %v1009 = vlaneseq
        %v1010 = vshrl.u32 %v1009, 7
        %v1011 = vsub.s32 %v1008, %v1010
        %v1012 = vrot.slane %v1004, %v1011
        %v1014 = vunpack.c.l.s4 1934713408
        %v1015 = vunpack.c.0.s8 %v1014
        %v1016 = vlaneseq
        %v1017 = vshrl.u32 %v1016, 7
        %v1018 = vsub.s32 %v1015, %v1017
        %v1019 = vrot.slane %v1005, %v1018
        %v1020 = vcombine.low %v996, %v1012
        %v1021 = vcombine.high %v996, %v1012
        %v1022 = vcombine.low %v1003, %v1019
        %v1023 = vcombine.high %v1003, %v1019
        %v1024 = vld [vmem:[#allocation2] sm:$0xff]
        %v1025 = vld [vmem:[#allocation2 + $0x8] sm:$0xff]
        %v1026 = vld [vmem:[#allocation2 + $0x10] sm:$0xff]
        %v1027 = vld [vmem:[#allocation2 + $0x18] sm:$0xff]
        %v1028 = vld [vmem:[#allocation3] sm:$0xff]
        %v1029 = vld [vmem:[#allocation3 + $0x8] sm:$0xff]
        %v1030 = vld [vmem:[#allocation3 + $0x10] sm:$0xff]
        %v1031 = vld [vmem:[#allocation3 + $0x18] sm:$0xff]
        %vm1032 = vcmask 64512
        %v1034 = vsel %vm1032, %v1020, 0
        %v1037 = vsel %vm1032, %v1024, 0
        %1039 = vmatprep.subr.mxu0 0.0
        %1040 = vmatpush1.xpose.msra.mxu0 %v1037
        %1041 = vmatprep.subr.mxu0 0.0
        %1042 = vmatpush1.xpose.msra.mxu0 0.0
        %1043 = vmatprep.subr.mxu0 0.0
        %1044 = vmatpush1.xpose.msra.mxu0 0.0
        %1045 = vmatprep.subr.mxu0 0.0
        %1046 = vmatpush1.xpose.msra.mxu0 0.0
        %1047 = vmatprep.subr.mxu0 0.0
        %1048 = vmatpush1.xpose.msra.mxu0 0.0
        %1049 = vmatprep.subr.mxu0 0.0
        %1050 = vmatpush1.xpose.msra.mxu0 0.0
        %1051 = vmatprep.subr.mxu0 0.0
        %1052 = vmatpush1.xpose.msra.mxu0 0.0
        %1053 = vmatprep.subr.mxu0 0.0
        %1054 = vmatpush1.xpose.msra.mxu0 0.0
        %1055 = vmatprep.subr.mxu0 0.0
        %1056 = vmatpush1.xpose.msra.mxu0 0.0
        %1057 = vmatprep.subr.mxu0 0.0
        %1058 = vmatpush1.xpose.msra.mxu0 0.0
        %1059 = vmatprep.subr.mxu0 0.0
        %1060 = vmatpush1.xpose.msra.mxu0 0.0
        %1061 = vmatprep.subr.mxu0 0.0
        %1062 = vmatpush1.xpose.msra.mxu0 0.0
        %1063 = vmatprep.subr.mxu0 0.0
        %1064 = vmatpush1.xpose.msra.mxu0 0.0
        %1065 = vmatprep.subr.mxu0 0.0
        %1066 = vmatpush1.xpose.msra.mxu0 0.0
        %1067 = vmatprep.subr.mxu0 0.0
        %1068 = vmatpush1.xpose.msra.mxu0 0.0
        %1069 = vmatprep.subr.mxu0 0.0
        %1070 = vmatpush1.xpose.msra.mxu0 0.0
        %1071 = vmatprep.subr.mxu0 0.0
        %1072 = vmatpush1.xpose.msra.mxu0 0.0
        %1073 = vmatprep.subr.mxu0 0.0
        %1074 = vmatpush1.xpose.msra.mxu0 0.0
        %1075 = vmatprep.subr.mxu0 0.0
        %1076 = vmatpush1.xpose.msra.mxu0 0.0
        %1077 = vmatprep.subr.mxu0 0.0
        %1078 = vmatpush1.xpose.msra.mxu0 0.0
        %1079 = vmatprep.subr.mxu0 0.0
        %1080 = vmatpush1.xpose.msra.mxu0 0.0
        %1081 = vmatprep.subr.mxu0 0.0
        %1082 = vmatpush1.xpose.msra.mxu0 0.0
        %1083 = vmatprep.subr.mxu0 0.0
        %1084 = vmatpush1.xpose.msra.mxu0 0.0
        %1085 = vmatprep.subr.mxu0 0.0
        %1086 = vmatpush1.xpose.msra.mxu0 0.0
        %1087 = vmatprep.subr.mxu0 0.0
        %1088 = vmatpush1.xpose.msra.mxu0 0.0
        %1089 = vmatprep.subr.mxu0 0.0
        %1090 = vmatpush1.xpose.msra.mxu0 0.0
        %1091 = vmatprep.subr.mxu0 0.0
        %1092 = vmatpush1.xpose.msra.mxu0 0.0
        %1093 = vmatprep.subr.mxu0 0.0
        %1094 = vmatpush1.xpose.msra.mxu0 0.0
        %1095 = vmatprep.subr.mxu0 0.0
        %1096 = vmatpush1.xpose.msra.mxu0 0.0
        %1097 = vmatprep.subr.mxu0 0.0
        %1098 = vmatpush1.xpose.msra.mxu0 0.0
        %1099 = vmatprep.subr.mxu0 0.0
        %1100 = vmatpush1.xpose.msra.mxu0 0.0
        %1101 = vmatprep.subr.mxu0 0.0
        %1102 = vmatpush1.xpose.msra.mxu0 0.0
        %1103 = vmatprep.mubr.f32.mxu0 0.0
        %1104 = vmatmul.mubr.f32.gmra.mrb[0].mxu0 %v1034
        %v1105 = vpop.f32.mrb[0].mxu0
        %v1106 = vadd.f32 0.0, %v1105
        %v1107 = vpop.f32.mrb[0].mxu0
        %1108 = vdwg.mxu0
        %v1110 = vsel %vm1032, %v1021, 0
        %v1113 = vsel %vm1032, %v1025, 0
        %1115 = vmatprep.subr.mxu0 0.0
        %1116 = vmatpush1.xpose.msra.mxu0 %v1113
        %1117 = vmatprep.subr.mxu0 0.0
        %1118 = vmatpush1.xpose.msra.mxu0 0.0
        %1119 = vmatprep.subr.mxu0 0.0
        %1120 = vmatpush1.xpose.msra.mxu0 0.0
        %1121 = vmatprep.subr.mxu0 0.0
        %1122 = vmatpush1.xpose.msra.mxu0 0.0
        %1123 = vmatprep.subr.mxu0 0.0
        %1124 = vmatpush1.xpose.msra.mxu0 0.0
        %1125 = vmatprep.subr.mxu0 0.0
        %1126 = vmatpush1.xpose.msra.mxu0 0.0
        %1127 = vmatprep.subr.mxu0 0.0
        %1128 = vmatpush1.xpose.msra.mxu0 0.0
        %1129 = vmatprep.subr.mxu0 0.0
        %1130 = vmatpush1.xpose.msra.mxu0 0.0
        %1131 = vmatprep.subr.mxu0 0.0
        %1132 = vmatpush1.xpose.msra.mxu0 0.0
        %1133 = vmatprep.subr.mxu0 0.0
        %1134 = vmatpush1.xpose.msra.mxu0 0.0
        %1135 = vmatprep.subr.mxu0 0.0
        %1136 = vmatpush1.xpose.msra.mxu0 0.0
        %1137 = vmatprep.subr.mxu0 0.0
        %1138 = vmatpush1.xpose.msra.mxu0 0.0
        %1139 = vmatprep.subr.mxu0 0.0
        %1140 = vmatpush1.xpose.msra.mxu0 0.0
        %1141 = vmatprep.subr.mxu0 0.0
        %1142 = vmatpush1.xpose.msra.mxu0 0.0
        %1143 = vmatprep.subr.mxu0 0.0
        %1144 = vmatpush1.xpose.msra.mxu0 0.0
        %1145 = vmatprep.subr.mxu0 0.0
        %1146 = vmatpush1.xpose.msra.mxu0 0.0
        %1147 = vmatprep.subr.mxu0 0.0
        %1148 = vmatpush1.xpose.msra.mxu0 0.0
        %1149 = vmatprep.subr.mxu0 0.0
        %1150 = vmatpush1.xpose.msra.mxu0 0.0
        %1151 = vmatprep.subr.mxu0 0.0
        %1152 = vmatpush1.xpose.msra.mxu0 0.0
        %1153 = vmatprep.subr.mxu0 0.0
        %1154 = vmatpush1.xpose.msra.mxu0 0.0
        %1155 = vmatprep.subr.mxu0 0.0
        %1156 = vmatpush1.xpose.msra.mxu0 0.0
        %1157 = vmatprep.subr.mxu0 0.0
        %1158 = vmatpush1.xpose.msra.mxu0 0.0
        %1159 = vmatprep.subr.mxu0 0.0
        %1160 = vmatpush1.xpose.msra.mxu0 0.0
        %1161 = vmatprep.subr.mxu0 0.0
        %1162 = vmatpush1.xpose.msra.mxu0 0.0
        %1163 = vmatprep.subr.mxu0 0.0
        %1164 = vmatpush1.xpose.msra.mxu0 0.0
        %1165 = vmatprep.subr.mxu0 0.0
        %1166 = vmatpush1.xpose.msra.mxu0 0.0
        %1167 = vmatprep.subr.mxu0 0.0
        %1168 = vmatpush1.xpose.msra.mxu0 0.0
        %1169 = vmatprep.subr.mxu0 0.0
        %1170 = vmatpush1.xpose.msra.mxu0 0.0
        %1171 = vmatprep.subr.mxu0 0.0
        %1172 = vmatpush1.xpose.msra.mxu0 0.0
        %1173 = vmatprep.subr.mxu0 0.0
        %1174 = vmatpush1.xpose.msra.mxu0 0.0
        %1175 = vmatprep.subr.mxu0 0.0
        %1176 = vmatpush1.xpose.msra.mxu0 0.0
        %1177 = vmatprep.subr.mxu0 0.0
        %1178 = vmatpush1.xpose.msra.mxu0 0.0
        %1179 = vmatprep.mubr.f32.mxu0 0.0
        %1180 = vmatmul.mubr.f32.gmra.mrb[0].mxu0 %v1110
        %v1181 = vpop.f32.mrb[0].mxu0
        %v1182 = vadd.f32 0.0, %v1181
        %v1183 = vpop.f32.mrb[0].mxu0
        %1184 = vdwg.mxu0
        %v1186 = vsel %vm1032, %v1022, 0
        %v1189 = vsel %vm1032, %v1026, 0
        %1191 = vmatprep.subr.mxu0 0.0
        %1192 = vmatpush1.xpose.msra.mxu0 %v1189
        %1193 = vmatprep.subr.mxu0 0.0
        %1194 = vmatpush1.xpose.msra.mxu0 0.0
        %1195 = vmatprep.subr.mxu0 0.0
        %1196 = vmatpush1.xpose.msra.mxu0 0.0
        %1197 = vmatprep.subr.mxu0 0.0
        %1198 = vmatpush1.xpose.msra.mxu0 0.0
        %1199 = vmatprep.subr.mxu0 0.0
        %1200 = vmatpush1.xpose.msra.mxu0 0.0
        %1201 = vmatprep.subr.mxu0 0.0
        %1202 = vmatpush1.xpose.msra.mxu0 0.0
        %1203 = vmatprep.subr.mxu0 0.0
        %1204 = vmatpush1.xpose.msra.mxu0 0.0
        %1205 = vmatprep.subr.mxu0 0.0
        %1206 = vmatpush1.xpose.msra.mxu0 0.0
        %1207 = vmatprep.subr.mxu0 0.0
        %1208 = vmatpush1.xpose.msra.mxu0 0.0
        %1209 = vmatprep.subr.mxu0 0.0
        %1210 = vmatpush1.xpose.msra.mxu0 0.0
        %1211 = vmatprep.subr.mxu0 0.0
        %1212 = vmatpush1.xpose.msra.mxu0 0.0
        %1213 = vmatprep.subr.mxu0 0.0
        %1214 = vmatpush1.xpose.msra.mxu0 0.0
        %1215 = vmatprep.subr.mxu0 0.0
        %1216 = vmatpush1.xpose.msra.mxu0 0.0
        %1217 = vmatprep.subr.mxu0 0.0
        %1218 = vmatpush1.xpose.msra.mxu0 0.0
        %1219 = vmatprep.subr.mxu0 0.0
        %1220 = vmatpush1.xpose.msra.mxu0 0.0
        %1221 = vmatprep.subr.mxu0 0.0
        %1222 = vmatpush1.xpose.msra.mxu0 0.0
        %1223 = vmatprep.subr.mxu0 0.0
        %1224 = vmatpush1.xpose.msra.mxu0 0.0
        %1225 = vmatprep.subr.mxu0 0.0
        %1226 = vmatpush1.xpose.msra.mxu0 0.0
        %1227 = vmatprep.subr.mxu0 0.0
        %1228 = vmatpush1.xpose.msra.mxu0 0.0
        %1229 = vmatprep.subr.mxu0 0.0
        %1230 = vmatpush1.xpose.msra.mxu0 0.0
        %1231 = vmatprep.subr.mxu0 0.0
        %1232 = vmatpush1.xpose.msra.mxu0 0.0
        %1233 = vmatprep.subr.mxu0 0.0
        %1234 = vmatpush1.xpose.msra.mxu0 0.0
        %1235 = vmatprep.subr.mxu0 0.0
        %1236 = vmatpush1.xpose.msra.mxu0 0.0
        %1237 = vmatprep.subr.mxu0 0.0
        %1238 = vmatpush1.xpose.msra.mxu0 0.0
        %1239 = vmatprep.subr.mxu0 0.0
        %1240 = vmatpush1.xpose.msra.mxu0 0.0
        %1241 = vmatprep.subr.mxu0 0.0
        %1242 = vmatpush1.xpose.msra.mxu0 0.0
        %1243 = vmatprep.subr.mxu0 0.0
        %1244 = vmatpush1.xpose.msra.mxu0 0.0
        %1245 = vmatprep.subr.mxu0 0.0
        %1246 = vmatpush1.xpose.msra.mxu0 0.0
        %1247 = vmatprep.subr.mxu0 0.0
        %1248 = vmatpush1.xpose.msra.mxu0 0.0
        %1249 = vmatprep.subr.mxu0 0.0
        %1250 = vmatpush1.xpose.msra.mxu0 0.0
        %1251 = vmatprep.subr.mxu0 0.0
        %1252 = vmatpush1.xpose.msra.mxu0 0.0
        %1253 = vmatprep.subr.mxu0 0.0
        %1254 = vmatpush1.xpose.msra.mxu0 0.0
        %1255 = vmatprep.mubr.f32.mxu0 0.0
        %1256 = vmatmul.mubr.f32.gmra.mrb[0].mxu0 %v1186
        %v1257 = vpop.f32.mrb[0].mxu0
        %v1258 = vadd.f32 0.0, %v1257
        %v1259 = vpop.f32.mrb[0].mxu0
        %1260 = vdwg.mxu0
        %v1262 = vsel %vm1032, %v1023, 0
        %v1265 = vsel %vm1032, %v1027, 0
        %1267 = vmatprep.subr.mxu0 0.0
        %1268 = vmatpush1.xpose.msra.mxu0 %v1265
        %1269 = vmatprep.subr.mxu0 0.0
        %1270 = vmatpush1.xpose.msra.mxu0 0.0
        %1271 = vmatprep.subr.mxu0 0.0
        %1272 = vmatpush1.xpose.msra.mxu0 0.0
        %1273 = vmatprep.subr.mxu0 0.0
        %1274 = vmatpush1.xpose.msra.mxu0 0.0
        %1275 = vmatprep.subr.mxu0 0.0
        %1276 = vmatpush1.xpose.msra.mxu0 0.0
        %1277 = vmatprep.subr.mxu0 0.0
        %1278 = vmatpush1.xpose.msra.mxu0 0.0
        %1279 = vmatprep.subr.mxu0 0.0
        %1280 = vmatpush1.xpose.msra.mxu0 0.0
        %1281 = vmatprep.subr.mxu0 0.0
        %1282 = vmatpush1.xpose.msra.mxu0 0.0
        %1283 = vmatprep.subr.mxu0 0.0
        %1284 = vmatpush1.xpose.msra.mxu0 0.0
        %1285 = vmatprep.subr.mxu0 0.0
        %1286 = vmatpush1.xpose.msra.mxu0 0.0
        %1287 = vmatprep.subr.mxu0 0.0
        %1288 = vmatpush1.xpose.msra.mxu0 0.0
        %1289 = vmatprep.subr.mxu0 0.0
        %1290 = vmatpush1.xpose.msra.mxu0 0.0
        %1291 = vmatprep.subr.mxu0 0.0
        %1292 = vmatpush1.xpose.msra.mxu0 0.0
        %1293 = vmatprep.subr.mxu0 0.0
        %1294 = vmatpush1.xpose.msra.mxu0 0.0
        %1295 = vmatprep.subr.mxu0 0.0
        %1296 = vmatpush1.xpose.msra.mxu0 0.0
        %1297 = vmatprep.subr.mxu0 0.0
        %1298 = vmatpush1.xpose.msra.mxu0 0.0
        %1299 = vmatprep.subr.mxu0 0.0
        %1300 = vmatpush1.xpose.msra.mxu0 0.0
        %1301 = vmatprep.subr.mxu0 0.0
        %1302 = vmatpush1.xpose.msra.mxu0 0.0
        %1303 = vmatprep.subr.mxu0 0.0
        %1304 = vmatpush1.xpose.msra.mxu0 0.0
        %1305 = vmatprep.subr.mxu0 0.0
        %1306 = vmatpush1.xpose.msra.mxu0 0.0
        %1307 = vmatprep.subr.mxu0 0.0
        %1308 = vmatpush1.xpose.msra.mxu0 0.0
        %1309 = vmatprep.subr.mxu0 0.0
        %1310 = vmatpush1.xpose.msra.mxu0 0.0
        %1311 = vmatprep.subr.mxu0 0.0
        %1312 = vmatpush1.xpose.msra.mxu0 0.0
        %1313 = vmatprep.subr.mxu0 0.0
        %1314 = vmatpush1.xpose.msra.mxu0 0.0
        %1315 = vmatprep.subr.mxu0 0.0
        %1316 = vmatpush1.xpose.msra.mxu0 0.0
        %1317 = vmatprep.subr.mxu0 0.0
        %1318 = vmatpush1.xpose.msra.mxu0 0.0
        %1319 = vmatprep.subr.mxu0 0.0
        %1320 = vmatpush1.xpose.msra.mxu0 0.0
        %1321 = vmatprep.subr.mxu0 0.0
        %1322 = vmatpush1.xpose.msra.mxu0 0.0
        %1323 = vmatprep.subr.mxu0 0.0
        %1324 = vmatpush1.xpose.msra.mxu0 0.0
        %1325 = vmatprep.subr.mxu0 0.0
        %1326 = vmatpush1.xpose.msra.mxu0 0.0
        %1327 = vmatprep.subr.mxu0 0.0
        %1328 = vmatpush1.xpose.msra.mxu0 0.0
        %1329 = vmatprep.subr.mxu0 0.0
        %1330 = vmatpush1.xpose.msra.mxu0 0.0
        %1331 = vmatprep.mubr.f32.mxu0 0.0
        %1332 = vmatmul.mubr.f32.gmra.mrb[0].mxu0 %v1262
        %v1333 = vpop.f32.mrb[0].mxu0
        %v1334 = vadd.f32 0.0, %v1333
        %v1335 = vpop.f32.mrb[0].mxu0
        %1336 = vdwg.mxu0
        %v1337 = vsel %vm1032, %v1106, -inf
        %1338 = vmax.xlane.f32.xlu0 %v1337
        %v1339 = vpop.xlane.xlu0 %1338
        %v1340 = vsel %vm1032, %v1182, -inf
        %1341 = vmax.xlane.f32.xlu0 %v1340
        %v1342 = vpop.xlane.xlu0 %1341
        %v1343 = vsel %vm1032, %v1258, -inf
        %1344 = vmax.xlane.f32.xlu0 %v1343
        %v1345 = vpop.xlane.xlu0 %1344
        %v1346 = vsel %vm1032, %v1334, -inf
        %1347 = vmax.xlane.f32.xlu0 %v1346
        %v1348 = vpop.xlane.xlu0 %1347
        %v1349 = vsub.f32 -inf, %v1339
        %v1350 = vsub.f32 -inf, %v1342
        %v1351 = vsub.f32 -inf, %v1345
        %v1352 = vsub.f32 -inf, %v1348
        %v1353 = vmul.f32 %v1349, 1.442695
        %v1354 = vpow.pop %v1353
        %v1355 = vmul.f32 %v1350, 1.442695
        %v1356 = vpow.pop %v1355
        %v1357 = vmul.f32 %v1351, 1.442695
        %v1358 = vpow.pop %v1357
        %v1359 = vmul.f32 %v1352, 1.442695
        %v1360 = vpow.pop %v1359
        %v1361 = vsub.f32 %v1106, %v1339
        %v1362 = vsub.f32 %v1182, %v1342
        %v1363 = vsub.f32 %v1258, %v1345
        %v1364 = vsub.f32 %v1334, %v1348
        %v1365 = vmul.f32 %v1361, 1.442695
        %v1366 = vpow.pop %v1365
        %v1367 = vmul.f32 %v1362, 1.442695
        %v1368 = vpow.pop %v1367
        %v1369 = vmul.f32 %v1363, 1.442695
        %v1370 = vpow.pop %v1369
        %v1371 = vmul.f32 %v1364, 1.442695
        %v1372 = vpow.pop %v1371
        %v1373 = vmul.f32 %v1354, 0.0
        %v1374 = vmul.f32 %v1356, 0.0
        %v1375 = vmul.f32 %v1358, 0.0
        %v1376 = vmul.f32 %v1360, 0.0
        %v1377 = vsel %vm1032, %v1366, 0.0
        %1378 = vadd.xlane.f32.xlu0 %v1377
        %v1379 = vpop.xlane.xlu0 %1378
        %v1380 = vsel %vm1032, %v1368, 0.0
        %1381 = vadd.xlane.f32.xlu0 %v1380
        %v1382 = vpop.xlane.xlu0 %1381
        %v1383 = vsel %vm1032, %v1370, 0.0
        %1384 = vadd.xlane.f32.xlu0 %v1383
        %v1385 = vpop.xlane.xlu0 %1384
        %v1386 = vsel %vm1032, %v1372, 0.0
        %1387 = vadd.xlane.f32.xlu0 %v1386
        %v1388 = vpop.xlane.xlu0 %1387
        %v1389 = vadd.f32 %v1373, %v1379
        %v1390 = vadd.f32 %v1374, %v1382
        %v1391 = vadd.f32 %v1375, %v1385
        %v1392 = vadd.f32 %v1376, %v1388
        %v1394 = vsel %vm1032, %v1366, 0
        %1396 = vmatprep.subr.mxu0 0.0
        %1397 = vmatpush1.msra.mxu0 %v1028
        %1398 = vmatprep.subr.mxu0 0.0
        %1399 = vmatpush1.msra.mxu0 0.0
        %1400 = vmatprep.subr.mxu0 0.0
        %1401 = vmatpush1.msra.mxu0 0.0
        %1402 = vmatprep.subr.mxu0 0.0
        %1403 = vmatpush1.msra.mxu0 0.0
        %1404 = vmatprep.subr.mxu0 0.0
        %1405 = vmatpush1.msra.mxu0 0.0
        %1406 = vmatprep.subr.mxu0 0.0
        %1407 = vmatpush1.msra.mxu0 0.0
        %1408 = vmatprep.subr.mxu0 0.0
        %1409 = vmatpush1.msra.mxu0 0.0
        %1410 = vmatprep.subr.mxu0 0.0
        %1411 = vmatpush1.msra.mxu0 0.0
        %1412 = vmatprep.subr.mxu0 0.0
        %1413 = vmatpush1.msra.mxu0 0.0
        %1414 = vmatprep.subr.mxu0 0.0
        %1415 = vmatpush1.msra.mxu0 0.0
        %1416 = vmatprep.subr.mxu0 0.0
        %1417 = vmatpush1.msra.mxu0 0.0
        %1418 = vmatprep.subr.mxu0 0.0
        %1419 = vmatpush1.msra.mxu0 0.0
        %1420 = vmatprep.subr.mxu0 0.0
        %1421 = vmatpush1.msra.mxu0 0.0
        %1422 = vmatprep.subr.mxu0 0.0
        %1423 = vmatpush1.msra.mxu0 0.0
        %1424 = vmatprep.subr.mxu0 0.0
        %1425 = vmatpush1.msra.mxu0 0.0
        %1426 = vmatprep.subr.mxu0 0.0
        %1427 = vmatpush1.msra.mxu0 0.0
        %1428 = vmatprep.subr.mxu0 0.0
        %1429 = vmatpush1.msra.mxu0 0.0
        %1430 = vmatprep.subr.mxu0 0.0
        %1431 = vmatpush1.msra.mxu0 0.0
        %1432 = vmatprep.subr.mxu0 0.0
        %1433 = vmatpush1.msra.mxu0 0.0
        %1434 = vmatprep.subr.mxu0 0.0
        %1435 = vmatpush1.msra.mxu0 0.0
        %1436 = vmatprep.subr.mxu0 0.0
        %1437 = vmatpush1.msra.mxu0 0.0
        %1438 = vmatprep.subr.mxu0 0.0
        %1439 = vmatpush1.msra.mxu0 0.0
        %1440 = vmatprep.subr.mxu0 0.0
        %1441 = vmatpush1.msra.mxu0 0.0
        %1442 = vmatprep.subr.mxu0 0.0
        %1443 = vmatpush1.msra.mxu0 0.0
        %1444 = vmatprep.subr.mxu0 0.0
        %1445 = vmatpush1.msra.mxu0 0.0
        %1446 = vmatprep.subr.mxu0 0.0
        %1447 = vmatpush1.msra.mxu0 0.0
        %1448 = vmatprep.subr.mxu0 0.0
        %1449 = vmatpush1.msra.mxu0 0.0
        %1450 = vmatprep.subr.mxu0 0.0
        %1451 = vmatpush1.msra.mxu0 0.0
        %1452 = vmatprep.subr.mxu0 0.0
        %1453 = vmatpush1.msra.mxu0 0.0
        %1454 = vmatprep.subr.mxu0 0.0
        %1455 = vmatpush1.msra.mxu0 0.0
        %1456 = vmatprep.subr.mxu0 0.0
        %1457 = vmatpush1.msra.mxu0 0.0
        %1458 = vmatprep.subr.mxu0 0.0
        %1459 = vmatpush1.msra.mxu0 0.0
        %1460 = vmatprep.mubr.f32.mxu0 0.0
        %1461 = vmatmul.mubr.f32.gmra.mrb[0].mxu0 %v1394
        %v1462 = vpop.f32.mrb[0].mxu0
        %v1463 = vadd.f32 0.0, %v1462
        %v1464 = vpop.f32.mrb[0].mxu0
        %1465 = vdwg.mxu0
        %v1467 = vsel %vm1032, %v1368, 0
        %1469 = vmatprep.subr.mxu0 0.0
        %1470 = vmatpush1.msra.mxu0 %v1029
        %1471 = vmatprep.subr.mxu0 0.0
        %1472 = vmatpush1.msra.mxu0 0.0
        %1473 = vmatprep.subr.mxu0 0.0
        %1474 = vmatpush1.msra.mxu0 0.0
        %1475 = vmatprep.subr.mxu0 0.0
        %1476 = vmatpush1.msra.mxu0 0.0
        %1477 = vmatprep.subr.mxu0 0.0
        %1478 = vmatpush1.msra.mxu0 0.0
        %1479 = vmatprep.subr.mxu0 0.0
        %1480 = vmatpush1.msra.mxu0 0.0
        %1481 = vmatprep.subr.mxu0 0.0
        %1482 = vmatpush1.msra.mxu0 0.0
        %1483 = vmatprep.subr.mxu0 0.0
        %1484 = vmatpush1.msra.mxu0 0.0
        %1485 = vmatprep.subr.mxu0 0.0
        %1486 = vmatpush1.msra.mxu0 0.0
        %1487 = vmatprep.subr.mxu0 0.0
        %1488 = vmatpush1.msra.mxu0 0.0
        %1489 = vmatprep.subr.mxu0 0.0
        %1490 = vmatpush1.msra.mxu0 0.0
        %1491 = vmatprep.subr.mxu0 0.0
        %1492 = vmatpush1.msra.mxu0 0.0
        %1493 = vmatprep.subr.mxu0 0.0
        %1494 = vmatpush1.msra.mxu0 0.0
        %1495 = vmatprep.subr.mxu0 0.0
        %1496 = vmatpush1.msra.mxu0 0.0
        %1497 = vmatprep.subr.mxu0 0.0
        %1498 = vmatpush1.msra.mxu0 0.0
        %1499 = vmatprep.subr.mxu0 0.0
        %1500 = vmatpush1.msra.mxu0 0.0
        %1501 = vmatprep.subr.mxu0 0.0
        %1502 = vmatpush1.msra.mxu0 0.0
        %1503 = vmatprep.subr.mxu0 0.0
        %1504 = vmatpush1.msra.mxu0 0.0
        %1505 = vmatprep.subr.mxu0 0.0
        %1506 = vmatpush1.msra.mxu0 0.0
        %1507 = vmatprep.subr.mxu0 0.0
        %1508 = vmatpush1.msra.mxu0 0.0
        %1509 = vmatprep.subr.mxu0 0.0
        %1510 = vmatpush1.msra.mxu0 0.0
        %1511 = vmatprep.subr.mxu0 0.0
        %1512 = vmatpush1.msra.mxu0 0.0
        %1513 = vmatprep.subr.mxu0 0.0
        %1514 = vmatpush1.msra.mxu0 0.0
        %1515 = vmatprep.subr.mxu0 0.0
        %1516 = vmatpush1.msra.mxu0 0.0
        %1517 = vmatprep.subr.mxu0 0.0
        %1518 = vmatpush1.msra.mxu0 0.0
        %1519 = vmatprep.subr.mxu0 0.0
        %1520 = vmatpush1.msra.mxu0 0.0
        %1521 = vmatprep.subr.mxu0 0.0
        %1522 = vmatpush1.msra.mxu0 0.0
        %1523 = vmatprep.subr.mxu0 0.0
        %1524 = vmatpush1.msra.mxu0 0.0
        %1525 = vmatprep.subr.mxu0 0.0
        %1526 = vmatpush1.msra.mxu0 0.0
        %1527 = vmatprep.subr.mxu0 0.0
        %1528 = vmatpush1.msra.mxu0 0.0
        %1529 = vmatprep.subr.mxu0 0.0
        %1530 = vmatpush1.msra.mxu0 0.0
        %1531 = vmatprep.subr.mxu0 0.0
        %1532 = vmatpush1.msra.mxu0 0.0
        %1533 = vmatprep.mubr.f32.mxu0 0.0
        %1534 = vmatmul.mubr.f32.gmra.mrb[0].mxu0 %v1467
        %v1535 = vpop.f32.mrb[0].mxu0
        %v1536 = vadd.f32 0.0, %v1535
        %v1537 = vpop.f32.mrb[0].mxu0
        %1538 = vdwg.mxu0
        %v1540 = vsel %vm1032, %v1370, 0
        %1542 = vmatprep.subr.mxu0 0.0
        %1543 = vmatpush1.msra.mxu0 %v1030
        %1544 = vmatprep.subr.mxu0 0.0
        %1545 = vmatpush1.msra.mxu0 0.0
        %1546 = vmatprep.subr.mxu0 0.0
        %1547 = vmatpush1.msra.mxu0 0.0
        %1548 = vmatprep.subr.mxu0 0.0
        %1549 = vmatpush1.msra.mxu0 0.0
        %1550 = vmatprep.subr.mxu0 0.0
        %1551 = vmatpush1.msra.mxu0 0.0
        %1552 = vmatprep.subr.mxu0 0.0
        %1553 = vmatpush1.msra.mxu0 0.0
        %1554 = vmatprep.subr.mxu0 0.0
        %1555 = vmatpush1.msra.mxu0 0.0
        %1556 = vmatprep.subr.mxu0 0.0
        %1557 = vmatpush1.msra.mxu0 0.0
        %1558 = vmatprep.subr.mxu0 0.0
        %1559 = vmatpush1.msra.mxu0 0.0
        %1560 = vmatprep.subr.mxu0 0.0
        %1561 = vmatpush1.msra.mxu0 0.0
        %1562 = vmatprep.subr.mxu0 0.0
        %1563 = vmatpush1.msra.mxu0 0.0
        %1564 = vmatprep.subr.mxu0 0.0
        %1565 = vmatpush1.msra.mxu0 0.0
        %1566 = vmatprep.subr.mxu0 0.0
        %1567 = vmatpush1.msra.mxu0 0.0
        %1568 = vmatprep.subr.mxu0 0.0
        %1569 = vmatpush1.msra.mxu0 0.0
        %1570 = vmatprep.subr.mxu0 0.0
        %1571 = vmatpush1.msra.mxu0 0.0
        %1572 = vmatprep.subr.mxu0 0.0
        %1573 = vmatpush1.msra.mxu0 0.0
        %1574 = vmatprep.subr.mxu0 0.0
        %1575 = vmatpush1.msra.mxu0 0.0
        %1576 = vmatprep.subr.mxu0 0.0
        %1577 = vmatpush1.msra.mxu0 0.0
        %1578 = vmatprep.subr.mxu0 0.0
        %1579 = vmatpush1.msra.mxu0 0.0
        %1580 = vmatprep.subr.mxu0 0.0
        %1581 = vmatpush1.msra.mxu0 0.0
        %1582 = vmatprep.subr.mxu0 0.0
        %1583 = vmatpush1.msra.mxu0 0.0
        %1584 = vmatprep.subr.mxu0 0.0
        %1585 = vmatpush1.msra.mxu0 0.0
        %1586 = vmatprep.subr.mxu0 0.0
        %1587 = vmatpush1.msra.mxu0 0.0
        %1588 = vmatprep.subr.mxu0 0.0
        %1589 = vmatpush1.msra.mxu0 0.0
        %1590 = vmatprep.subr.mxu0 0.0
        %1591 = vmatpush1.msra.mxu0 0.0
        %1592 = vmatprep.subr.mxu0 0.0
        %1593 = vmatpush1.msra.mxu0 0.0
        %1594 = vmatprep.subr.mxu0 0.0
        %1595 = vmatpush1.msra.mxu0 0.0
        %1596 = vmatprep.subr.mxu0 0.0
        %1597 = vmatpush1.msra.mxu0 0.0
        %1598 = vmatprep.subr.mxu0 0.0
        %1599 = vmatpush1.msra.mxu0 0.0
        %1600 = vmatprep.subr.mxu0 0.0
        %1601 = vmatpush1.msra.mxu0 0.0
        %1602 = vmatprep.subr.mxu0 0.0
        %1603 = vmatpush1.msra.mxu0 0.0
        %1604 = vmatprep.subr.mxu0 0.0
        %1605 = vmatpush1.msra.mxu0 0.0
        %1606 = vmatprep.mubr.f32.mxu0 0.0
        %1607 = vmatmul.mubr.f32.gmra.mrb[0].mxu0 %v1540
        %v1608 = vpop.f32.mrb[0].mxu0
        %v1609 = vadd.f32 0.0, %v1608
        %v1610 = vpop.f32.mrb[0].mxu0
        %1611 = vdwg.mxu0
        %v1613 = vsel %vm1032, %v1372, 0
        %1615 = vmatprep.subr.mxu0 0.0
        %1616 = vmatpush1.msra.mxu0 %v1031
        %1617 = vmatprep.subr.mxu0 0.0
        %1618 = vmatpush1.msra.mxu0 0.0
        %1619 = vmatprep.subr.mxu0 0.0
        %1620 = vmatpush1.msra.mxu0 0.0
        %1621 = vmatprep.subr.mxu0 0.0
        %1622 = vmatpush1.msra.mxu0 0.0
        %1623 = vmatprep.subr.mxu0 0.0
        %1624 = vmatpush1.msra.mxu0 0.0
        %1625 = vmatprep.subr.mxu0 0.0
        %1626 = vmatpush1.msra.mxu0 0.0
        %1627 = vmatprep.subr.mxu0 0.0
        %1628 = vmatpush1.msra.mxu0 0.0
        %1629 = vmatprep.subr.mxu0 0.0
        %1630 = vmatpush1.msra.mxu0 0.0
        %1631 = vmatprep.subr.mxu0 0.0
        %1632 = vmatpush1.msra.mxu0 0.0
        %1633 = vmatprep.subr.mxu0 0.0
        %1634 = vmatpush1.msra.mxu0 0.0
        %1635 = vmatprep.subr.mxu0 0.0
        %1636 = vmatpush1.msra.mxu0 0.0
        %1637 = vmatprep.subr.mxu0 0.0
        %1638 = vmatpush1.msra.mxu0 0.0
        %1639 = vmatprep.subr.mxu0 0.0
        %1640 = vmatpush1.msra.mxu0 0.0
        %1641 = vmatprep.subr.mxu0 0.0
        %1642 = vmatpush1.msra.mxu0 0.0
        %1643 = vmatprep.subr.mxu0 0.0
        %1644 = vmatpush1.msra.mxu0 0.0
        %1645 = vmatprep.subr.mxu0 0.0
        %1646 = vmatpush1.msra.mxu0 0.0
        %1647 = vmatprep.subr.mxu0 0.0
        %1648 = vmatpush1.msra.mxu0 0.0
        %1649 = vmatprep.subr.mxu0 0.0
        %1650 = vmatpush1.msra.mxu0 0.0
        %1651 = vmatprep.subr.mxu0 0.0
        %1652 = vmatpush1.msra.mxu0 0.0
        %1653 = vmatprep.subr.mxu0 0.0
        %1654 = vmatpush1.msra.mxu0 0.0
        %1655 = vmatprep.subr.mxu0 0.0
        %1656 = vmatpush1.msra.mxu0 0.0
        %1657 = vmatprep.subr.mxu0 0.0
        %1658 = vmatpush1.msra.mxu0 0.0
        %1659 = vmatprep.subr.mxu0 0.0
        %1660 = vmatpush1.msra.mxu0 0.0
        %1661 = vmatprep.subr.mxu0 0.0
        %1662 = vmatpush1.msra.mxu0 0.0
        %1663 = vmatprep.subr.mxu0 0.0
        %1664 = vmatpush1.msra.mxu0 0.0
        %1665 = vmatprep.subr.mxu0 0.0
        %1666 = vmatpush1.msra.mxu0 0.0
        %1667 = vmatprep.subr.mxu0 0.0
        %1668 = vmatpush1.msra.mxu0 0.0
        %1669 = vmatprep.subr.mxu0 0.0
        %1670 = vmatpush1.msra.mxu0 0.0
        %1671 = vmatprep.subr.mxu0 0.0
        %1672 = vmatpush1.msra.mxu0 0.0
        %1673 = vmatprep.subr.mxu0 0.0
        %1674 = vmatpush1.msra.mxu0 0.0
        %1675 = vmatprep.subr.mxu0 0.0
        %1676 = vmatpush1.msra.mxu0 0.0
        %1677 = vmatprep.subr.mxu0 0.0
        %1678 = vmatpush1.msra.mxu0 0.0
        %1679 = vmatprep.mubr.f32.mxu0 0.0
        %1680 = vmatmul.mubr.f32.gmra.mrb[0].mxu0 %v1613
        %v1681 = vpop.f32.mrb[0].mxu0
        %v1682 = vadd.f32 0.0, %v1681
        %v1683 = vpop.f32.mrb[0].mxu0
        %1684 = vdwg.mxu0
        %v1685 = vadd.f32 %v1373, %v1463
        %v1686 = vadd.f32 %v1374, %v1536
        %v1687 = vadd.f32 %v1375, %v1609
        %v1688 = vadd.f32 %v1376, %v1682
        %v1689 = vrcp.pop %v1389
        %v1690 = vmul.f32 %v1685, %v1689
        %v1691 = vrcp.pop %v1390
        %v1692 = vmul.f32 %v1686, %v1691
        %v1693 = vrcp.pop %v1391
        %v1694 = vmul.f32 %v1687, %v1693
        %v1695 = vrcp.pop %v1392
        %v1696 = vmul.f32 %v1688, %v1695
        %v1697 = vcombine.low %v1690, %v1694
        %v1698 = vcombine.high %v1690, %v1694
        %v1700 = vunpack.c.l.s4 1983009808
        %v1701 = vunpack.c.0.s8 %v1700
        %v1702 = vlaneseq
        %v1703 = vshrl.u32 %v1702, 7
        %v1704 = vsub.s32 %v1701, %v1703
        %v1705 = vrot.slane %v1697, %v1704
        %v1707 = vunpack.c.l.s4 1983009808
        %v1708 = vunpack.c.0.s8 %v1707
        %v1709 = vlaneseq
        %v1710 = vshrl.u32 %v1709, 7
        %v1711 = vsub.s32 %v1708, %v1710
        %v1712 = vrot.slane %v1698, %v1711
        %v1713 = vcombine.low %v1692, %v1696
        %v1714 = vcombine.high %v1692, %v1696
        %v1716 = vunpack.c.l.s4 1983009808
        %v1717 = vunpack.c.0.s8 %v1716
        %v1718 = vlaneseq
        %v1719 = vshrl.u32 %v1718, 7
        %v1720 = vsub.s32 %v1717, %v1719
        %v1721 = vrot.slane %v1713, %v1720
        %v1723 = vunpack.c.l.s4 1983009808
        %v1724 = vunpack.c.0.s8 %v1723
        %v1725 = vlaneseq
        %v1726 = vshrl.u32 %v1725, 7
        %v1727 = vsub.s32 %v1724, %v1726
        %v1728 = vrot.slane %v1714, %v1727
        %v1729 = vcombine.low %v1705, %v1721
        %v1730 = vcombine.high %v1705, %v1721
        %v1732 = vunpack.c.l.s4 1934713408
        %v1733 = vunpack.c.0.s8 %v1732
        %v1734 = vlaneseq
        %v1735 = vshrl.u32 %v1734, 7
        %v1736 = vsub.s32 %v1733, %v1735
        %v1737 = vrot.slane %v1729, %v1736
        %v1739 = vunpack.c.l.s4 1934713408
        %v1740 = vunpack.c.0.s8 %v1739
        %v1741 = vlaneseq
        %v1742 = vshrl.u32 %v1741, 7
        %v1743 = vsub.s32 %v1740, %v1742
        %v1744 = vrot.slane %v1730, %v1743
        %v1745 = vcombine.low %v1712, %v1728
        %v1746 = vcombine.high %v1712, %v1728
        %v1748 = vunpack.c.l.s4 1934713408
        %v1749 = vunpack.c.0.s8 %v1748
        %v1750 = vlaneseq
        %v1751 = vshrl.u32 %v1750, 7
        %v1752 = vsub.s32 %v1749, %v1751
        %v1753 = vrot.slane %v1745, %v1752
        %v1755 = vunpack.c.l.s4 1934713408
        %v1756 = vunpack.c.0.s8 %v1755
        %v1757 = vlaneseq
        %v1758 = vshrl.u32 %v1757, 7
        %v1759 = vsub.s32 %v1756, %v1758
        %v1760 = vrot.slane %v1746, %v1759
        %v1761 = vcombine.high %v1737, 0.0
        %v1762 = vcombine.high %v1744, 0.0
        %v1763 = vcombine.high %v1753, 0.0
        %v1764 = vcombine.high %v1760, 0.0
        %v1765 = vcombine.low %v1737, %v1744
        %v1767 = vunpack.c.l.s4 1983009808
        %v1768 = vunpack.c.0.s8 %v1767
        %v1769 = vlaneseq
        %v1770 = vshrl.u32 %v1769, 7
        %v1771 = vsub.s32 %v1768, %v1770
        %v1772 = vrot.slane %v1765, %v1771
        %v1773 = vcombine.low %v1761, %v1762
        %v1775 = vunpack.c.l.s4 1983009808
        %v1776 = vunpack.c.0.s8 %v1775
        %v1777 = vlaneseq
        %v1778 = vshrl.u32 %v1777, 7
        %v1779 = vsub.s32 %v1776, %v1778
        %v1780 = vrot.slane %v1773, %v1779
        %v1781 = vcombine.low %v1753, %v1760
        %v1783 = vunpack.c.l.s4 1983009808
        %v1784 = vunpack.c.0.s8 %v1783
        %v1785 = vlaneseq
        %v1786 = vshrl.u32 %v1785, 7
        %v1787 = vsub.s32 %v1784, %v1786
        %v1788 = vrot.slane %v1781, %v1787
        %v1789 = vcombine.low %v1763, %v1764
        %v1791 = vunpack.c.l.s4 1983009808
        %v1792 = vunpack.c.0.s8 %v1791
        %v1793 = vlaneseq
        %v1794 = vshrl.u32 %v1793, 7
        %v1795 = vsub.s32 %v1792, %v1794
        %v1796 = vrot.slane %v1789, %v1795
        %v1797 = vcombine.low %v1772, %v1780
        %v1798 = vcombine.high %v1772, %v1780
        %v1800 = vunpack.c.l.s4 1934713408
        %v1801 = vunpack.c.0.s8 %v1800
        %v1802 = vlaneseq
        %v1803 = vshrl.u32 %v1802, 7
        %v1804 = vsub.s32 %v1801, %v1803
        %v1805 = vrot.slane %v1797, %v1804
        %v1807 = vunpack.c.l.s4 1934713408
        %v1808 = vunpack.c.0.s8 %v1807
        %v1809 = vlaneseq
        %v1810 = vshrl.u32 %v1809, 7
        %v1811 = vsub.s32 %v1808, %v1810
        %v1812 = vrot.slane %v1798, %v1811
        %v1813 = vcombine.low %v1788, %v1796
        %v1814 = vcombine.high %v1788, %v1796
        %v1816 = vunpack.c.l.s4 1934713408
        %v1817 = vunpack.c.0.s8 %v1816
        %v1818 = vlaneseq
        %v1819 = vshrl.u32 %v1818, 7
        %v1820 = vsub.s32 %v1817, %v1819
        %v1821 = vrot.slane %v1813, %v1820
        %v1823 = vunpack.c.l.s4 1934713408
        %v1824 = vunpack.c.0.s8 %v1823
        %v1825 = vlaneseq
        %v1826 = vshrl.u32 %v1825, 7
        %v1827 = vsub.s32 %v1824, %v1826
        %v1828 = vrot.slane %v1814, %v1827
        %v1829 = vcombine.low %v1805, %v1821
        %v1830 = vcombine.high %v1805, %v1821
        %v1831 = vcombine.low %v1812, %v1828
        %v1832 = vcombine.high %v1812, %v1828
        %1834 = vrot.lane.b32.xlu0 %v1830, 8
        %v1835 = vpop.permute.xlu0 %1834
        %1838 = vrot.lane.b32.xlu0 %v1831, 16
        %v1839 = vpop.permute.xlu0 %1838
        %1842 = vrot.lane.b32.xlu0 %v1832, 24
        %v1843 = vpop.permute.xlu0 %1842
        %v1845 = vsel %vm1032, %v1829, %v1835
        %vm1846 = vcmask 130048
        %v1847 = vsel %vm1846, %v1845, %v1839
        %vm1848 = vcmask 195584
        %v1849 = vsel %vm1848, %v1847, %v1843
        %v1850 = vld [vmem:[#allocation12] sm:$0xff]
        %v1851 = vld [vmem:[#allocation12 + $0x8] sm:$0xff]
        %v1852 = vld [vmem:[#allocation12 + $0x10] sm:$0xff]
        %v1853 = vld [vmem:[#allocation12 + $0x18] sm:$0xff]
        %v1854 = vld [vmem:[%s5] sm:$0x1]
        %v1856 = vlaneseq
        %v1857 = vshrl.u32 %v1856, 7
        %v1858 = vsub.s32 0, %v1857
        %v1859 = vrot.slane %v1854, %v1858
        %v1862 = vsel %vm804, %v1849, 0
        %1864 = vmatprep.subr.mxu0 0.0
        %1865 = vmatpush1.msra.mxu0 %v1850
        %1866 = vmatprep.subr.mxu0 0.0
        %1867 = vmatpush1.msra.mxu0 %v1851
        %1868 = vmatprep.subr.mxu0 0.0
        %1869 = vmatpush1.msra.mxu0 %v1852
        %1870 = vmatprep.subr.mxu0 0.0
        %1871 = vmatpush1.msra.mxu0 %v1853
        %1872 = vmatprep.subr.mxu0 0.0
        %1873 = vmatpush1.msra.mxu0 0.0
        %1874 = vmatprep.subr.mxu0 0.0
        %1875 = vmatpush1.msra.mxu0 0.0
        %1876 = vmatprep.subr.mxu0 0.0
        %1877 = vmatpush1.msra.mxu0 0.0
        %1878 = vmatprep.subr.mxu0 0.0
        %1879 = vmatpush1.msra.mxu0 0.0
        %1880 = vmatprep.subr.mxu0 0.0
        %1881 = vmatpush1.msra.mxu0 0.0
        %1882 = vmatprep.subr.mxu0 0.0
        %1883 = vmatpush1.msra.mxu0 0.0
        %1884 = vmatprep.subr.mxu0 0.0
        %1885 = vmatpush1.msra.mxu0 0.0
        %1886 = vmatprep.subr.mxu0 0.0
        %1887 = vmatpush1.msra.mxu0 0.0
        %1888 = vmatprep.subr.mxu0 0.0
        %1889 = vmatpush1.msra.mxu0 0.0
        %1890 = vmatprep.subr.mxu0 0.0
        %1891 = vmatpush1.msra.mxu0 0.0
        %1892 = vmatprep.subr.mxu0 0.0
        %1893 = vmatpush1.msra.mxu0 0.0
        %1894 = vmatprep.subr.mxu0 0.0
        %1895 = vmatpush1.msra.mxu0 0.0
        %1896 = vmatprep.subr.mxu0 0.0
        %1897 = vmatpush1.msra.mxu0 0.0
        %1898 = vmatprep.subr.mxu0 0.0
        %1899 = vmatpush1.msra.mxu0 0.0
        %1900 = vmatprep.subr.mxu0 0.0
        %1901 = vmatpush1.msra.mxu0 0.0
        %1902 = vmatprep.subr.mxu0 0.0
        %1903 = vmatpush1.msra.mxu0 0.0
        %1904 = vmatprep.subr.mxu0 0.0
        %1905 = vmatpush1.msra.mxu0 0.0
        %1906 = vmatprep.subr.mxu0 0.0
        %1907 = vmatpush1.msra.mxu0 0.0
        %1908 = vmatprep.subr.mxu0 0.0
        %1909 = vmatpush1.msra.mxu0 0.0
        %1910 = vmatprep.subr.mxu0 0.0
        %1911 = vmatpush1.msra.mxu0 0.0
        %1912 = vmatprep.subr.mxu0 0.0
        %1913 = vmatpush1.msra.mxu0 0.0
        %1914 = vmatprep.subr.mxu0 0.0
        %1915 = vmatpush1.msra.mxu0 0.0
        %1916 = vmatprep.subr.mxu0 0.0
        %1917 = vmatpush1.msra.mxu0 0.0
        %1918 = vmatprep.subr.mxu0 0.0
        %1919 = vmatpush1.msra.mxu0 0.0
        %1920 = vmatprep.subr.mxu0 0.0
        %1921 = vmatpush1.msra.mxu0 0.0
        %1922 = vmatprep.subr.mxu0 0.0
        %1923 = vmatpush1.msra.mxu0 0.0
        %1924 = vmatprep.subr.mxu0 0.0
        %1925 = vmatpush1.msra.mxu0 0.0
        %1926 = vmatprep.subr.mxu0 0.0
        %1927 = vmatpush1.msra.mxu0 0.0
        %1928 = vmatprep.mubr.f32.mxu0 0.0
        %1929 = vmatmul.mubr.f32.gmra.mrb[0].mxu0 %v1862
        %v1930 = vpop.f32.mrb[0].mxu0
        %v1931 = vadd.f32 %v1859, %v1930
        %v1932 = vpop.f32.mrb[0].mxu0
        %1933 = vdwg.mxu0
        %1934 = vst.msk [vmem:[%s338] sm:$0xff] %vm804, %v1931
        %s1935 = sand.u32 %s178, 1
        %s1936 = scalar_lea.sflag [#allocation6], %s1935
        %s1937 = sand.u32 %s178, 1
        %s1938 = smul.addr %s1937, 8
        %s1939 = scalar_lea.vmem [#allocation13], %s1938
        // Predicated region
        $region69: #{tpu_custom_call.1} parent=43 // pred_check
          %p1940 = pneg %p188
        $region70: #{tpu_custom_call.1} parent=43 // pred_check_branch
          %1942 = sbr.rel (%p1940) target = $region72
        $region71: #{tpu_custom_call.1} parent=43 // pred_region
          %s1944 = ssub.s32 128, 128
          %1945 = vsyncadd %s1936, %s1944
          %s1946 = sadd.s32 %s30, %s29
          %s1947 = smul.addr %s1946, 128
          %s1948 = scalar_lea.hbm %s6, %s1947
          %s1950 = sshll.u32 %s1939, 4
          %s1951 = int_to_ptr.vmem [resolvable:$true] %s1950
          %1953 = dma.vmem_to_hbm [thread:$0]  %s1951, 128, %s1948, %s1936
        $region72: #{tpu_custom_call.1} parent=43 // pred_fallthru
          _
      $region44: #{tpu_custom_call.1} parent=5 // pred_fallthru
        _
      %p1954 = scmp.le.s32.totalorder 2, %s20
      // Predicated region
      $region73: #{tpu_custom_call.1} parent=5 // pred_check
        %p1955 = pneg %p1954
      $region74: #{tpu_custom_call.1} parent=5 // pred_check_branch
        %1957 = sbr.rel (%p1955) target = $region76
      $region75: #{tpu_custom_call.1} parent=5 // pred_region
        %s1958 = ssub.s32 %s20, 2
        // Predicated region
        $region77: #{tpu_custom_call.1} parent=75 // pred_check
          %p1959 = pneg %p194
        $region78: #{tpu_custom_call.1} parent=75 // pred_check_branch
          %1961 = sbr.rel (%p1959) target = $region80
        $region79: #{tpu_custom_call.1} parent=75 // pred_region
          %s1962 = sand.u32 %s179, 1
          %s1963 = scalar_lea.sflag [#allocation6], %s1962
          %s1964 = sand.u32 %s179, 1
          %s1965 = smul.addr %s1964, 8
          %s1966 = scalar_lea.vmem [#allocation13], %s1965
          %1967 = dma.done %s1963, 128
        $region80: #{tpu_custom_call.1} parent=75 // pred_fallthru
          _
      $region76: #{tpu_custom_call.1} parent=5 // pred_fallthru
        _
    $region6: #{tpu_custom_call.1} parent=1 // loop_footer
      %s24 = sadd.s32 1, %s20
    $region7: #{tpu_custom_call.1} parent=1 // loop_footer_branch
      %19 = sbr.rel target = $region3
    $region8: #{tpu_custom_call.1} parent=1 // loop_exit
      _
    %1968 = vsyncpa [#allocation5], 1
    %s1969 = scalar_lea.sflag [#allocation5], 1
    %1970 = vsyncpa %s1969, 1
    %1971 = vsyncpa [#allocation8], 1
    %1972 = vsyncpa [#allocation11], 1
    %1973 = vsyncpa [#allocation6], 1
    %s1974 = scalar_lea.sflag [#allocation6], 1
    %1975 = vsyncpa %s1974, 1

// kernel: tpu_custom_call.1
$region0: #{tpu_custom_call.1}
  #allocation0 [shape = 'u32[]', space=smem, size = 0x4, offset = 0x4, fixed_abs, tag = 'smem constant byte address 0x4 - core index']
  #allocation1 [shape = 'u32[144,128]{1,0:T(1,128)}', space=vmem, size = 0x12000, scoped, tag = 'internal scratch']
  #allocation2 [shape = 'f32[4,8,8]{2,1,0:T(8,128)}', space=vmem, size = 0x4000, scoped, tag = 'scratch operand']
  #allocation3 [shape = 'f32[4,8,8]{2,1,0:T(8,128)}', space=vmem, size = 0x4000, scoped, tag = 'scratch operand']
  %s0 = inlined_call_operand.hbm [shape: f32[2,8,32], index: 0, kind: input, shape index: {}]
  %s1 = inlined_call_operand.hbm [shape: f32[32,32], index: 1, kind: input, shape index: {}]
  %s2 = inlined_call_operand.hbm [shape: f32[32,32], index: 2, kind: input, shape index: {}]
  %s3 = inlined_call_operand.hbm [shape: f32[32,32], index: 3, kind: input, shape index: {}]
  %s4 = inlined_call_operand.hbm [shape: f32[32,32], index: 4, kind: input, shape index: {}]
  %s5 = inlined_call_operand.vmem [shape: f32[1,32], index: 5, kind: input, shape index: {}]
  %s6 = inlined_call_operand.hbm [shape: f32[2,8,32], index: 6, kind: output, shape index: {}]
  %s7 = sld [smem:[#allocation0]]
  $region81: #{tpu_custom_call.1} parent=0
    _
  %s9 = ssub.s32 1, %s7
  %s10 = scalar_select 0, %s9, %s7
  $region1: #{tpu_custom_call.1} parent=0
    #allocation4 [shape = 'u8[8192]{0}', space=vmem, size = 0x2000, scoped, tag = 'input window, operand 0']
    #allocation5 [shape = 's32[2]{0}', space=sflag, size = 0x8, scoped, tag = 'scoped memory for tpu_custom_call.1']
    #allocation6 [shape = 's32[2]{0}', space=sflag, size = 0x8, scoped, tag = 'scoped memory for tpu_custom_call.1']
    #allocation7 [shape = 'u8[16384]{0}', space=vmem, size = 0x4000, scoped, tag = 'input window, operand 1, single buffered']
    #allocation8 [shape = 's32[1]{0}', space=sflag, size = 0x4, scoped, tag = 'scoped memory for tpu_custom_call.1']
    #allocation9 [shape = 'u8[16384]{0}', space=vmem, size = 0x4000, scoped, tag = 'input window, operand 2, single buffered']
    #allocation10 [shape = 'u8[16384]{0}', space=vmem, size = 0x4000, scoped, tag = 'input window, operand 3, single buffered']
    #allocation11 [shape = 's32[1]{0}', space=sflag, size = 0x4, scoped, tag = 'scoped memory for tpu_custom_call.1']
    #allocation12 [shape = 'u8[16384]{0}', space=vmem, size = 0x4000, scoped, tag = 'input window, operand 4, single buffered']
    #allocation13 [shape = 'u8[8192]{0}', space=vmem, size = 0x2000, scoped, tag = 'output window, operand 0']
    %11 = vsyncpa [#allocation5], 0
    %s12 = scalar_lea.sflag [#allocation5], 1
    %13 = vsyncpa %s12, 0
    %14 = vsyncpa [#allocation8], 0
    %15 = vsyncpa [#allocation11], 0
    %16 = vsyncpa [#allocation6], 0
    %s17 = scalar_lea.sflag [#allocation6], 1
    %18 = vsyncpa %s17, 0
    loop: start=0, step=1, limit=4
    $region2: #{tpu_custom_call.1} parent=1 // loop_pre_header
      _
    $region3: #{tpu_custom_call.1} parent=1 // loop_header
      %s20 = sphi 0, %s24
      %p21 = scmp.ge.s32.totalorder %s20, 4
      %s27 = sphi 0, %s39
      %s28 = sphi 0, %s35
      %s29 = sphi 0, %s27
      %s30 = sphi 0, %s28
      %s31 = sphi 0, %s29
      %s32 = sphi 0, %s30
      %s42 = sphi 0, %s44
      %s45 = sphi 0, %s42
      %s46 = sphi 0, %s45
      %s62 = sphi 0, %s46
      %s66 = sphi 0, %s66
      %s68 = sphi 0, %s66
      %s69 = sphi 0, %s68
      %s83 = sphi 0, %s69
      %s87 = sphi 0, %s87
      %s89 = sphi 0, %s87
      %s90 = sphi 0, %s89
      %s104 = sphi 0, %s90
      %s108 = sphi 0, %s108
      %s110 = sphi 0, %s108
      %s111 = sphi 0, %s110
      %s125 = sphi 0, %s111
      %s129 = sphi 0, %s129
      %s131 = sphi 0, %s129
      %s132 = sphi 0, %s131
      %s146 = sphi 0, %s132
      %s150 = sphi 0, %s150
      %s152 = sphi 0, %s150
      %s153 = sphi 0, %s152
      %s167 = sphi 0, %s153
      %s175 = sphi 0, %s177
      %s178 = sphi 0, %s175
      %s179 = sphi 0, %s178
      %s195 = sphi 0, %s179
    $region4: #{tpu_custom_call.1} parent=1 // loop_header_branch
      %23 = sbr.rel (%p21) target = $region8
    $region5: #{tpu_custom_call.1} parent=1 // loop_body
      %s25 = ssub.s32 %s20, 1
      %s26 = ssub.s32 %s20, 2
      %s33 = sadd.s32 1, %s28
      %p34 = scmp.ge.s32.totalorder %s33, 1
      %s35 = scalar_select %p34, 0, %s33
      %s36 = sadd.s32 1, %s27
      %s37 = scalar_select %p34, %s36, %s27
      %p38 = scmp.ge.s32.totalorder %s37, 2
      %s39 = scalar_select %p38, 0, %s37
      %s40 = ssub.s32 %s27, %s39
      %p41 = scmp.eq.s32.totalorder %s40, 0
      %s43 = sadd.s32 %s42, 1
      %s44 = scalar_select %p41, %s42, %s43
      %p47 = pneg %p41
      %p48 = scmp.eq.s32.totalorder %s20, 1
      %p49 = por %p47, %p48
      %p50 = scmp.ne.s32.totalorder %s42, %s45
      %p51 = scmp.eq.s32.totalorder %s20, 0
      %p52 = por %p50, %p51
      %p53 = scmp.ne.s32.totalorder %s42, %s45
      %p54 = scmp.eq.s32.totalorder %s25, 1
      %p55 = por %p53, %p54
      %p56 = scmp.ne.s32.totalorder %s45, %s46
      %p57 = scmp.eq.s32.totalorder %s25, 0
      %p58 = por %p56, %p57
      %p59 = scmp.ne.s32.totalorder %s45, %s46
      %p60 = scmp.eq.s32.totalorder %s26, 1
      %p61 = por %p59, %p60
      %p63 = scmp.ne.s32.totalorder %s46, %s62
      %p64 = scmp.eq.s32.totalorder %s26, 0
      %p65 = por %p63, %p64
      %s67 = sadd.s32 %s66, 1
      %p70 = scmp.eq.s32.totalorder %s20, 1
      %p71 = scmp.ne.s32.totalorder %s66, %s68
      %p72 = scmp.eq.s32.totalorder %s20, 0
      %p73 = por %p71, %p72
      %p74 = scmp.ne.s32.totalorder %s66, %s68
      %p75 = scmp.eq.s32.totalorder %s25, 1
      %p76 = por %p74, %p75
      %p77 = scmp.ne.s32.totalorder %s68, %s69
      %p78 = scmp.eq.s32.totalorder %s25, 0
      %p79 = por %p77, %p78
      %p80 = scmp.ne.s32.totalorder %s68, %s69
      %p81 = scmp.eq.s32.totalorder %s26, 1
      %p82 = por %p80, %p81
      %p84 = scmp.ne.s32.totalorder %s69, %s83
      %p85 = scmp.eq.s32.totalorder %s26, 0
      %p86 = por %p84, %p85
      %s88 = sadd.s32 %s87, 1
      %p91 = scmp.eq.s32.totalorder %s20, 1
      %p92 = scmp.ne.s32.totalorder %s87, %s89
      %p93 = scmp.eq.s32.totalorder %s20, 0
      %p94 = por %p92, %p93
      %p95 = scmp.ne.s32.totalorder %s87, %s89
      %p96 = scmp.eq.s32.totalorder %s25, 1
      %p97 = por %p95, %p96
      %p98 = scmp.ne.s32.totalorder %s89, %s90
      %p99 = scmp.eq.s32.totalorder %s25, 0
      %p100 = por %p98, %p99
      %p101 = scmp.ne.s32.totalorder %s89, %s90
      %p102 = scmp.eq.s32.totalorder %s26, 1
      %p103 = por %p101, %p102
      %p105 = scmp.ne.s32.totalorder %s90, %s104
      %p106 = scmp.eq.s32.totalorder %s26, 0
      %p107 = por %p105, %p106
      %s109 = sadd.s32 %s108, 1
      %p112 = scmp.eq.s32.totalorder %s20, 1
      %p113 = scmp.ne.s32.totalorder %s108, %s110
      %p114 = scmp.eq.s32.totalorder %s20, 0
      %p115 = por %p113, %p114
      %p116 = scmp.ne.s32.totalorder %s108, %s110
      %p117 = scmp.eq.s32.totalorder %s25, 1
      %p118 = por %p116, %p117
      %p119 = scmp.ne.s32.totalorder %s110, %s111
      %p120 = scmp.eq.s32.totalorder %s25, 0
      %p121 = por %p119, %p120
      %p122 = scmp.ne.s32.totalorder %s110, %s111
      %p123 = scmp.eq.s32.totalorder %s26, 1
      %p124 = por %p122, %p123
      %p126 = scmp.ne.s32.totalorder %s111, %s125
      %p127 = scmp.eq.s32.totalorder %s26, 0
      %p128 = por %p126, %p127
      %s130 = sadd.s32 %s129, 1
      %p133 = scmp.eq.s32.totalorder %s20, 1
      %p134 = scmp.ne.s32.totalorder %s129, %s131
      %p135 = scmp.eq.s32.totalorder %s20, 0
      %p136 = por %p134, %p135
      %p137 = scmp.ne.s32.totalorder %s129, %s131
      %p138 = scmp.eq.s32.totalorder %s25, 1
      %p139 = por %p137, %p138
      %p140 = scmp.ne.s32.totalorder %s131, %s132
      %p141 = scmp.eq.s32.totalorder %s25, 0
      %p142 = por %p140, %p141
      %p143 = scmp.ne.s32.totalorder %s131, %s132
      %p144 = scmp.eq.s32.totalorder %s26, 1
      %p145 = por %p143, %p144
      %p147 = scmp.ne.s32.totalorder %s132, %s146
      %p148 = scmp.eq.s32.totalorder %s26, 0
      %p149 = por %p147, %p148
      %s151 = sadd.s32 %s150, 1
      %p154 = scmp.eq.s32.totalorder %s20, 1
      %p155 = scmp.ne.s32.totalorder %s150, %s152
      %p156 = scmp.eq.s32.totalorder %s20, 0
      %p157 = por %p155, %p156
      %p158 = scmp.ne.s32.totalorder %s150, %s152
      %p159 = scmp.eq.s32.totalorder %s25, 1
      %p160 = por %p158, %p159
      %p161 = scmp.ne.s32.totalorder %s152, %s153
      %p162 = scmp.eq.s32.totalorder %s25, 0
      %p163 = por %p161, %p162
      %p164 = scmp.ne.s32.totalorder %s152, %s153
      %p165 = scmp.eq.s32.totalorder %s26, 1
      %p166 = por %p164, %p165
      %p168 = scmp.ne.s32.totalorder %s153, %s167
      %p169 = scmp.eq.s32.totalorder %s26, 0
      %p170 = por %p168, %p169
      %s171 = ssub.s32 %s27, %s39
      %s172 = ssub.s32 %s28, %s35
      %s173 = sor.u32 %s171, %s172
      %p174 = scmp.eq.s32.totalorder %s173, 0
      %s176 = sadd.s32 %s175, 1
      %s177 = scalar_select %p174, %s175, %s176
      %p180 = pneg %p174
      %p181 = scmp.eq.s32.totalorder %s20, 1
      %p182 = por %p180, %p181
      %p183 = scmp.ne.s32.totalorder %s175, %s178
      %p184 = scmp.eq.s32.totalorder %s20, 0
      %p185 = por %p183, %p184
      %p186 = scmp.ne.s32.totalorder %s175, %s178
      %p187 = scmp.eq.s32.totalorder %s25, 1
      %p188 = por %p186, %p187
      %p189 = scmp.ne.s32.totalorder %s178, %s179
      %p190 = scmp.eq.s32.totalorder %s25, 0
      %p191 = por %p189, %p190
      %p192 = scmp.ne.s32.totalorder %s178, %s179
      %p193 = scmp.eq.s32.totalorder %s26, 1
      %p194 = por %p192, %p193
      %p196 = scmp.ne.s32.totalorder %s179, %s195
      %p197 = scmp.eq.s32.totalorder %s26, 0
      %p198 = por %p196, %p197
      %p199 = scmp.le.s32.totalorder 1, %s20
      %p200 = scmp.lt.s32.totalorder %s20, 3
      %p201 = pnand %p199, %p200
      %p202 = pneg %p201
      // Predicated region
      $region9: #{tpu_custom_call.1} parent=5 // pred_check
        _
      $region10: #{tpu_custom_call.1} parent=5 // pred_check_branch
        %204 = sbr.rel (%p201) target = $region12
      $region11: #{tpu_custom_call.1} parent=5 // pred_region
        %s205 = ssub.s32 %s20, 1
        // Predicated region
        $region13: #{tpu_custom_call.1} parent=11 // pred_check
          %p206 = pneg %p79
        $region14: #{tpu_custom_call.1} parent=11 // pred_check_branch
          %208 = sbr.rel (%p206) target = $region16
        $region15: #{tpu_custom_call.1} parent=11 // pred_region
          %s210 = ssub.s32 512, 512
          %211 = vsyncadd [#allocation8], %s210
          %s212 = sshll.u32 [#allocation7], 4
          %s213 = int_to_ptr.vmem [resolvable:$true] %s212
          %218 = dma.hbm_to_vmem [thread:$0]  %s1, 512, %s213, [#allocation8], 128, 128, 8
        $region16: #{tpu_custom_call.1} parent=11 // pred_fallthru
          _
        // Predicated region
        $region17: #{tpu_custom_call.1} parent=11 // pred_check
          %p219 = pneg %p100
        $region18: #{tpu_custom_call.1} parent=11 // pred_check_branch
          %221 = sbr.rel (%p219) target = $region20
        $region19: #{tpu_custom_call.1} parent=11 // pred_region
          %s223 = ssub.s32 512, 512
          %224 = vsyncadd [#allocation8], %s223
          %s225 = sshll.u32 [#allocation9], 4
          %s226 = int_to_ptr.vmem [resolvable:$true] %s225
          %231 = dma.hbm_to_vmem [thread:$0]  %s2, 512, %s226, [#allocation8], 128, 128, 8
        $region20: #{tpu_custom_call.1} parent=11 // pred_fallthru
          _
        // Predicated region
        $region21: #{tpu_custom_call.1} parent=11 // pred_check
          %p232 = pneg %p121
        $region22: #{tpu_custom_call.1} parent=11 // pred_check_branch
          %234 = sbr.rel (%p232) target = $region24
        $region23: #{tpu_custom_call.1} parent=11 // pred_region
          %s236 = ssub.s32 512, 512
          %237 = vsyncadd [#allocation11], %s236
          %s238 = sshll.u32 [#allocation10], 4
          %s239 = int_to_ptr.vmem [resolvable:$true] %s238
          %244 = dma.hbm_to_vmem [thread:$0]  %s3, 512, %s239, [#allocation11], 128, 128, 8
        $region24: #{tpu_custom_call.1} parent=11 // pred_fallthru
          _
        // Predicated region
        $region25: #{tpu_custom_call.1} parent=11 // pred_check
          %p245 = pneg %p142
        $region26: #{tpu_custom_call.1} parent=11 // pred_check_branch
          %247 = sbr.rel (%p245) target = $region28
        $region27: #{tpu_custom_call.1} parent=11 // pred_region
          %s249 = ssub.s32 512, 512
          %250 = vsyncadd [#allocation11], %s249
          %s251 = sshll.u32 [#allocation12], 4
          %s252 = int_to_ptr.vmem [resolvable:$true] %s251
          %257 = dma.hbm_to_vmem [thread:$0]  %s4, 512, %s252, [#allocation11], 128, 128, 8
        $region28: #{tpu_custom_call.1} parent=11 // pred_fallthru
          _
        // Predicated region
        $region29: #{tpu_custom_call.1} parent=11 // pred_check
          %p258 = pneg %p163
        $region30: #{tpu_custom_call.1} parent=11 // pred_check_branch
          %260 = sbr.rel (%p258) target = $region32
        $region31: #{tpu_custom_call.1} parent=11 // pred_region
          _
        $region32: #{tpu_custom_call.1} parent=11 // pred_fallthru
          _
      $region12: #{tpu_custom_call.1} parent=5 // pred_fallthru
        _
      %p261 = scmp.lt.s32.totalorder %s20, 2
      // Predicated region
      $region33: #{tpu_custom_call.1} parent=5 // pred_check
        %p262 = pneg %p261
      $region34: #{tpu_custom_call.1} parent=5 // pred_check_branch
        %264 = sbr.rel (%p262) target = $region36
      $region35: #{tpu_custom_call.1} parent=5 // pred_region
        // Predicated region
        $region37: #{tpu_custom_call.1} parent=35 // pred_check
          %p265 = pneg %p52
        $region38: #{tpu_custom_call.1} parent=35 // pred_check_branch
          %267 = sbr.rel (%p265) target = $region40
        $region39: #{tpu_custom_call.1} parent=35 // pred_region
          %s268 = sand.u32 %s42, 1
          %s269 = scalar_lea.sflag [#allocation5], %s268
          %s270 = sand.u32 %s42, 1
          %s271 = smul.addr %s270, 8
          %s272 = scalar_lea.vmem [#allocation4], %s271
          %s274 = ssub.s32 128, 128
          %275 = vsyncadd %s269, %s274
          %s276 = smul.addr %s27, 128
          %s277 = scalar_lea.hbm %s0, %s276
          %s279 = sshll.u32 %s272, 4
          %s280 = int_to_ptr.vmem [resolvable:$true] %s279
          %282 = dma.hbm_to_vmem [thread:$0]  %s277, 128, %s280, %s269
        $region40: #{tpu_custom_call.1} parent=35 // pred_fallthru
          _
      $region36: #{tpu_custom_call.1} parent=5 // pred_fallthru
        _
      %p283 = scmp.le.s32.totalorder 1, %s20
      %p284 = scmp.lt.s32.totalorder %s20, 3
      %p285 = pnand %p283, %p284
      %p286 = pneg %p285
      // Predicated region
      $region41: #{tpu_custom_call.1} parent=5 // pred_check
        _
      $region42: #{tpu_custom_call.1} parent=5 // pred_check_branch
        %288 = sbr.rel (%p285) target = $region44
      $region43: #{tpu_custom_call.1} parent=5 // pred_region
        %s289 = ssub.s32 %s20, 1
        %s290 = sand.u32 %s45, 1
        %s291 = scalar_lea.sflag [#allocation5], %s290
        %s292 = sand.u32 %s45, 1
        %s293 = smul.addr %s292, 8
        %s294 = scalar_lea.vmem [#allocation4], %s293
        // Predicated region
        $region45: #{tpu_custom_call.1} parent=43 // pred_check
          %p295 = pneg %p58
        $region46: #{tpu_custom_call.1} parent=43 // pred_check_branch
          %297 = sbr.rel (%p295) target = $region48
        $region47: #{tpu_custom_call.1} parent=43 // pred_region
          %298 = dma.done %s291, 128
        $region48: #{tpu_custom_call.1} parent=43 // pred_fallthru
          _
        // Predicated region
        $region49: #{tpu_custom_call.1} parent=43 // pred_check
          %p299 = pneg %p79
        $region50: #{tpu_custom_call.1} parent=43 // pred_check_branch
          %301 = sbr.rel (%p299) target = $region52
        $region51: #{tpu_custom_call.1} parent=43 // pred_region
          %302 = dma.done [#allocation8], 512
        $region52: #{tpu_custom_call.1} parent=43 // pred_fallthru
          _
        // Predicated region
        $region53: #{tpu_custom_call.1} parent=43 // pred_check
          %p303 = pneg %p100
        $region54: #{tpu_custom_call.1} parent=43 // pred_check_branch
          %305 = sbr.rel (%p303) target = $region56
        $region55: #{tpu_custom_call.1} parent=43 // pred_region
          %306 = dma.done [#allocation8], 512
        $region56: #{tpu_custom_call.1} parent=43 // pred_fallthru
          _
        // Predicated region
        $region57: #{tpu_custom_call.1} parent=43 // pred_check
          %p307 = pneg %p121
        $region58: #{tpu_custom_call.1} parent=43 // pred_check_branch
          %309 = sbr.rel (%p307) target = $region60
        $region59: #{tpu_custom_call.1} parent=43 // pred_region
          %310 = dma.done [#allocation11], 512
        $region60: #{tpu_custom_call.1} parent=43 // pred_fallthru
          _
        // Predicated region
        $region61: #{tpu_custom_call.1} parent=43 // pred_check
          %p311 = pneg %p142
        $region62: #{tpu_custom_call.1} parent=43 // pred_check_branch
          %313 = sbr.rel (%p311) target = $region64
        $region63: #{tpu_custom_call.1} parent=43 // pred_region
          %314 = dma.done [#allocation11], 512
        $region64: #{tpu_custom_call.1} parent=43 // pred_fallthru
          _
        %s315 = sand.u32 %s45, 1
        %s316 = scalar_lea.sflag [#allocation5], %s315
        %s317 = sand.u32 %s45, 1
        %s318 = smul.addr %s317, 8
        %s319 = scalar_lea.vmem [#allocation4], %s318
        %p320 = pneg %p58
        %p321 = pneg %p55
        %p322 = pneg %p79
        %p323 = pneg %p76
        %p324 = pneg %p100
        %p325 = pneg %p97
        %p326 = pneg %p121
        %p327 = pneg %p118
        %p328 = pneg %p142
        %p329 = pneg %p139
        %p330 = pneg %p163
        %p331 = pneg %p160
        %p332 = pneg %p191
        %p333 = pneg %p188
        %s334 = sand.u32 %s178, 1
        %s335 = scalar_lea.sflag [#allocation6], %s334
        %s336 = sand.u32 %s178, 1
        %s337 = smul.addr %s336, 8
        %s338 = scalar_lea.vmem [#allocation13], %s337
        %p339 = scmp.eq.s32.totalorder %s30, 0
        // Predicated region
        $region65: #{tpu_custom_call.1} parent=43 // pred_check
          %p340 = pneg %p339
        $region66: #{tpu_custom_call.1} parent=43 // pred_check_branch
          %342 = sbr.rel (%p340) target = $region68
        $region67: #{tpu_custom_call.1} parent=43 // pred_region
          %v343 = vld [vmem:[%s294] sm:$0xff]
          %v344 = vld [vmem:[#allocation9] sm:$0xff]
          %v345 = vld [vmem:[#allocation9 + $0x8] sm:$0xff]
          %v346 = vld [vmem:[#allocation9 + $0x10] sm:$0xff]
          %v347 = vld [vmem:[#allocation9 + $0x18] sm:$0xff]
          %vm348 = vcmask 261120
          %v350 = vsel %vm348, %v343, 0
          %352 = vmatprep.subr.mxu0 0.0
          %353 = vmatpush1.msra.mxu0 %v344
          %354 = vmatprep.subr.mxu0 0.0
          %355 = vmatpush1.msra.mxu0 %v345
          %356 = vmatprep.subr.mxu0 0.0
          %357 = vmatpush1.msra.mxu0 %v346
          %358 = vmatprep.subr.mxu0 0.0
          %359 = vmatpush1.msra.mxu0 %v347
          %360 = vmatprep.subr.mxu0 0.0
          %361 = vmatpush1.msra.mxu0 0.0
          %362 = vmatprep.subr.mxu0 0.0
          %363 = vmatpush1.msra.mxu0 0.0
          %364 = vmatprep.subr.mxu0 0.0
          %365 = vmatpush1.msra.mxu0 0.0
          %366 = vmatprep.subr.mxu0 0.0
          %367 = vmatpush1.msra.mxu0 0.0
          %368 = vmatprep.subr.mxu0 0.0
          %369 = vmatpush1.msra.mxu0 0.0
          %370 = vmatprep.subr.mxu0 0.0
          %371 = vmatpush1.msra.mxu0 0.0
          %372 = vmatprep.subr.mxu0 0.0
          %373 = vmatpush1.msra.mxu0 0.0
          %374 = vmatprep.subr.mxu0 0.0
          %375 = vmatpush1.msra.mxu0 0.0
          %376 = vmatprep.subr.mxu0 0.0
          %377 = vmatpush1.msra.mxu0 0.0
          %378 = vmatprep.subr.mxu0 0.0
          %379 = vmatpush1.msra.mxu0 0.0
          %380 = vmatprep.subr.mxu0 0.0
          %381 = vmatpush1.msra.mxu0 0.0
          %382 = vmatprep.subr.mxu0 0.0
          %383 = vmatpush1.msra.mxu0 0.0
          %384 = vmatprep.subr.mxu0 0.0
          %385 = vmatpush1.msra.mxu0 0.0
          %386 = vmatprep.subr.mxu0 0.0
          %387 = vmatpush1.msra.mxu0 0.0
          %388 = vmatprep.subr.mxu0 0.0
          %389 = vmatpush1.msra.mxu0 0.0
          %390 = vmatprep.subr.mxu0 0.0
          %391 = vmatpush1.msra.mxu0 0.0
          %392 = vmatprep.subr.mxu0 0.0
          %393 = vmatpush1.msra.mxu0 0.0
          %394 = vmatprep.subr.mxu0 0.0
          %395 = vmatpush1.msra.mxu0 0.0
          %396 = vmatprep.subr.mxu0 0.0
          %397 = vmatpush1.msra.mxu0 0.0
          %398 = vmatprep.subr.mxu0 0.0
          %399 = vmatpush1.msra.mxu0 0.0
          %400 = vmatprep.subr.mxu0 0.0
          %401 = vmatpush1.msra.mxu0 0.0
          %402 = vmatprep.subr.mxu0 0.0
          %403 = vmatpush1.msra.mxu0 0.0
          %404 = vmatprep.subr.mxu0 0.0
          %405 = vmatpush1.msra.mxu0 0.0
          %406 = vmatprep.subr.mxu0 0.0
          %407 = vmatpush1.msra.mxu0 0.0
          %408 = vmatprep.subr.mxu0 0.0
          %409 = vmatpush1.msra.mxu0 0.0
          %410 = vmatprep.subr.mxu0 0.0
          %411 = vmatpush1.msra.mxu0 0.0
          %412 = vmatprep.subr.mxu0 0.0
          %413 = vmatpush1.msra.mxu0 0.0
          %414 = vmatprep.subr.mxu0 0.0
          %415 = vmatpush1.msra.mxu0 0.0
          %416 = vmatprep.mubr.f32.mxu0 0.0
          %417 = vmatmul.mubr.f32.gmra.mrb[0].mxu0 %v350
          %v418 = vpop.f32.mrb[0].mxu0
          %v419 = vadd.f32 0.0, %v418
          %v420 = vpop.f32.mrb[0].mxu0
          %421 = vdwg.mxu0
          %v422 = vld [vmem:[#allocation10] sm:$0xff]
          %v423 = vld [vmem:[#allocation10 + $0x8] sm:$0xff]
          %v424 = vld [vmem:[#allocation10 + $0x10] sm:$0xff]
          %v425 = vld [vmem:[#allocation10 + $0x18] sm:$0xff]
          %426 = vmatprep.subr.mxu0 0.0
          %427 = vmatpush1.msra.mxu0 %v422
          %428 = vmatprep.subr.mxu0 0.0
          %429 = vmatpush1.msra.mxu0 %v423
          %430 = vmatprep.subr.mxu0 0.0
          %431 = vmatpush1.msra.mxu0 %v424
          %432 = vmatprep.subr.mxu0 0.0
          %433 = vmatpush1.msra.mxu0 %v425
          %434 = vmatprep.subr.mxu0 0.0
          %435 = vmatpush1.msra.mxu0 0.0
          %436 = vmatprep.subr.mxu0 0.0
          %437 = vmatpush1.msra.mxu0 0.0
          %438 = vmatprep.subr.mxu0 0.0
          %439 = vmatpush1.msra.mxu0 0.0
          %440 = vmatprep.subr.mxu0 0.0
          %441 = vmatpush1.msra.mxu0 0.0
          %442 = vmatprep.subr.mxu0 0.0
          %443 = vmatpush1.msra.mxu0 0.0
          %444 = vmatprep.subr.mxu0 0.0
          %445 = vmatpush1.msra.mxu0 0.0
          %446 = vmatprep.subr.mxu0 0.0
          %447 = vmatpush1.msra.mxu0 0.0
          %448 = vmatprep.subr.mxu0 0.0
          %449 = vmatpush1.msra.mxu0 0.0
          %450 = vmatprep.subr.mxu0 0.0
          %451 = vmatpush1.msra.mxu0 0.0
          %452 = vmatprep.subr.mxu0 0.0
          %453 = vmatpush1.msra.mxu0 0.0
          %454 = vmatprep.subr.mxu0 0.0
          %455 = vmatpush1.msra.mxu0 0.0
          %456 = vmatprep.subr.mxu0 0.0
          %457 = vmatpush1.msra.mxu0 0.0
          %458 = vmatprep.subr.mxu0 0.0
          %459 = vmatpush1.msra.mxu0 0.0
          %460 = vmatprep.subr.mxu0 0.0
          %461 = vmatpush1.msra.mxu0 0.0
          %462 = vmatprep.subr.mxu0 0.0
          %463 = vmatpush1.msra.mxu0 0.0
          %464 = vmatprep.subr.mxu0 0.0
          %465 = vmatpush1.msra.mxu0 0.0
          %466 = vmatprep.subr.mxu0 0.0
          %467 = vmatpush1.msra.mxu0 0.0
          %468 = vmatprep.subr.mxu0 0.0
          %469 = vmatpush1.msra.mxu0 0.0
          %470 = vmatprep.subr.mxu0 0.0
          %471 = vmatpush1.msra.mxu0 0.0
          %472 = vmatprep.subr.mxu0 0.0
          %473 = vmatpush1.msra.mxu0 0.0
          %474 = vmatprep.subr.mxu0 0.0
          %475 = vmatpush1.msra.mxu0 0.0
          %476 = vmatprep.subr.mxu0 0.0
          %477 = vmatpush1.msra.mxu0 0.0
          %478 = vmatprep.subr.mxu0 0.0
          %479 = vmatpush1.msra.mxu0 0.0
          %480 = vmatprep.subr.mxu0 0.0
          %481 = vmatpush1.msra.mxu0 0.0
          %482 = vmatprep.subr.mxu0 0.0
          %483 = vmatpush1.msra.mxu0 0.0
          %484 = vmatprep.subr.mxu0 0.0
          %485 = vmatpush1.msra.mxu0 0.0
          %486 = vmatprep.subr.mxu0 0.0
          %487 = vmatpush1.msra.mxu0 0.0
          %488 = vmatprep.subr.mxu0 0.0
          %489 = vmatpush1.msra.mxu0 0.0
          %490 = vmatprep.mubr.f32.mxu0 0.0
          %491 = vmatmul.mubr.f32.gmra.mrb[0].mxu0 %v350
          %v492 = vpop.f32.mrb[0].mxu0
          %v493 = vadd.f32 0.0, %v492
          %v494 = vpop.f32.mrb[0].mxu0
          %495 = vdwg.mxu0
          %497 = vrot.lane.b32.xlu0 %v419, 120
          %v498 = vpop.permute.xlu0 %497
          %500 = vrot.lane.b32.xlu0 %v419, 112
          %v501 = vpop.permute.xlu0 %500
          %503 = vrot.lane.b32.xlu0 %v419, 104
          %v504 = vpop.permute.xlu0 %503
          %v506 = vcombine.low %v419, %v501
          %v507 = vcombine.high %v419, %v501
          %v509 = vunpack.c.l.s4 1983009808
          %v510 = vunpack.c.0.s8 %v509
          %v511 = vlaneseq
          %v512 = vshrl.u32 %v511, 7
          %v513 = vsub.s32 %v510, %v512
          %v514 = vrot.slane %v506, %v513
          %v516 = vunpack.c.l.s4 1983009808
          %v517 = vunpack.c.0.s8 %v516
          %v518 = vlaneseq
          %v519 = vshrl.u32 %v518, 7
          %v520 = vsub.s32 %v517, %v519
          %v521 = vrot.slane %v507, %v520
          %v522 = vcombine.low %v498, %v504
          %v523 = vcombine.high %v498, %v504
          %v525 = vunpack.c.l.s4 1983009808
          %v526 = vunpack.c.0.s8 %v525
          %v527 = vlaneseq
          %v528 = vshrl.u32 %v527, 7
          %v529 = vsub.s32 %v526, %v528
          %v530 = vrot.slane %v522, %v529
          %v532 = vunpack.c.l.s4 1983009808
          %v533 = vunpack.c.0.s8 %v532
          %v534 = vlaneseq
          %v535 = vshrl.u32 %v534, 7
          %v536 = vsub.s32 %v533, %v535
          %v537 = vrot.slane %v523, %v536
          %v538 = vcombine.low %v514, %v530
          %v539 = vcombine.high %v514, %v530
          %v541 = vunpack.c.l.s4 1934713408
          %v542 = vunpack.c.0.s8 %v541
          %v543 = vlaneseq
          %v544 = vshrl.u32 %v543, 7
          %v545 = vsub.s32 %v542, %v544
          %v546 = vrot.slane %v538, %v545
          %v548 = vunpack.c.l.s4 1934713408
          %v549 = vunpack.c.0.s8 %v548
          %v550 = vlaneseq
          %v551 = vshrl.u32 %v550, 7
          %v552 = vsub.s32 %v549, %v551
          %v553 = vrot.slane %v539, %v552
          %v554 = vcombine.low %v521, %v537
          %v555 = vcombine.high %v521, %v537
          %v557 = vunpack.c.l.s4 1934713408
          %v558 = vunpack.c.0.s8 %v557
          %v559 = vlaneseq
          %v560 = vshrl.u32 %v559, 7
          %v561 = vsub.s32 %v558, %v560
          %v562 = vrot.slane %v554, %v561
          %v564 = vunpack.c.l.s4 1934713408
          %v565 = vunpack.c.0.s8 %v564
          %v566 = vlaneseq
          %v567 = vshrl.u32 %v566, 7
          %v568 = vsub.s32 %v565, %v567
          %v569 = vrot.slane %v555, %v568
          %v570 = vcombine.high %v546, 0.0
          %v571 = vcombine.high %v553, 0.0
          %v572 = vcombine.high %v562, 0.0
          %v573 = vcombine.high %v569, 0.0
          %v574 = vcombine.low %v546, %v553
          %v576 = vunpack.c.l.s4 1983009808
          %v577 = vunpack.c.0.s8 %v576
          %v578 = vlaneseq
          %v579 = vshrl.u32 %v578, 7
          %v580 = vsub.s32 %v577, %v579
          %v581 = vrot.slane %v574, %v580
          %v582 = vcombine.low %v570, %v571
          %v584 = vunpack.c.l.s4 1983009808
          %v585 = vunpack.c.0.s8 %v584
          %v586 = vlaneseq
          %v587 = vshrl.u32 %v586, 7
          %v588 = vsub.s32 %v585, %v587
          %v589 = vrot.slane %v582, %v588
          %v590 = vcombine.low %v562, %v569
          %v592 = vunpack.c.l.s4 1983009808
          %v593 = vunpack.c.0.s8 %v592
          %v594 = vlaneseq
          %v595 = vshrl.u32 %v594, 7
          %v596 = vsub.s32 %v593, %v595
          %v597 = vrot.slane %v590, %v596
          %v598 = vcombine.low %v572, %v573
          %v600 = vunpack.c.l.s4 1983009808
          %v601 = vunpack.c.0.s8 %v600
          %v602 = vlaneseq
          %v603 = vshrl.u32 %v602, 7
          %v604 = vsub.s32 %v601, %v603
          %v605 = vrot.slane %v598, %v604
          %v606 = vcombine.low %v581, %v589
          %v607 = vcombine.high %v581, %v589
          %v609 = vunpack.c.l.s4 1934713408
          %v610 = vunpack.c.0.s8 %v609
          %v611 = vlaneseq
          %v612 = vshrl.u32 %v611, 7
          %v613 = vsub.s32 %v610, %v612
          %v614 = vrot.slane %v606, %v613
          %v616 = vunpack.c.l.s4 1934713408
          %v617 = vunpack.c.0.s8 %v616
          %v618 = vlaneseq
          %v619 = vshrl.u32 %v618, 7
          %v620 = vsub.s32 %v617, %v619
          %v621 = vrot.slane %v607, %v620
          %v622 = vcombine.low %v597, %v605
          %v623 = vcombine.high %v597, %v605
          %v625 = vunpack.c.l.s4 1934713408
          %v626 = vunpack.c.0.s8 %v625
          %v627 = vlaneseq
          %v628 = vshrl.u32 %v627, 7
          %v629 = vsub.s32 %v626, %v628
          %v630 = vrot.slane %v622, %v629
          %v632 = vunpack.c.l.s4 1934713408
          %v633 = vunpack.c.0.s8 %v632
          %v634 = vlaneseq
          %v635 = vshrl.u32 %v634, 7
          %v636 = vsub.s32 %v633, %v635
          %v637 = vrot.slane %v623, %v636
          %v638 = vcombine.low %v614, %v630
          %v639 = vcombine.high %v614, %v630
          %v640 = vcombine.low %v621, %v637
          %v641 = vcombine.high %v621, %v637
          %vm642 = vcmask 64512
          %643 = vst.msk [vmem:[#allocation2] sm:$0xff] %vm642, %v638
          %644 = vst.msk [vmem:[#allocation2 + $0x8] sm:$0xff] %vm642, %v639
          %645 = vst.msk [vmem:[#allocation2 + $0x10] sm:$0xff] %vm642, %v640
          %646 = vst.msk [vmem:[#allocation2 + $0x18] sm:$0xff] %vm642, %v641
          %648 = vrot.lane.b32.xlu0 %v493, 120
          %v649 = vpop.permute.xlu0 %648
          %651 = vrot.lane.b32.xlu0 %v493, 112
          %v652 = vpop.permute.xlu0 %651
          %654 = vrot.lane.b32.xlu0 %v493, 104
          %v655 = vpop.permute.xlu0 %654
          %v657 = vcombine.low %v493, %v652
          %v658 = vcombine.high %v493, %v652
          %v660 = vunpack.c.l.s4 1983009808
          %v661 = vunpack.c.0.s8 %v660
          %v662 = vlaneseq
          %v663 = vshrl.u32 %v662, 7
          %v664 = vsub.s32 %v661, %v663
          %v665 = vrot.slane %v657, %v664
          %v667 = vunpack.c.l.s4 1983009808
          %v668 = vunpack.c.0.s8 %v667
          %v669 = vlaneseq
          %v670 = vshrl.u32 %v669, 7
          %v671 = vsub.s32 %v668, %v670
          %v672 = vrot.slane %v658, %v671
          %v673 = vcombine.low %v649, %v655
          %v674 = vcombine.high %v649, %v655
          %v676 = vunpack.c.l.s4 1983009808
          %v677 = vunpack.c.0.s8 %v676
          %v678 = vlaneseq
          %v679 = vshrl.u32 %v678, 7
          %v680 = vsub.s32 %v677, %v679
          %v681 = vrot.slane %v673, %v680
          %v683 = vunpack.c.l.s4 1983009808
          %v684 = vunpack.c.0.s8 %v683
          %v685 = vlaneseq
          %v686 = vshrl.u32 %v685, 7
          %v687 = vsub.s32 %v684, %v686
          %v688 = vrot.slane %v674, %v687
          %v689 = vcombine.low %v665, %v681
          %v690 = vcombine.high %v665, %v681
          %v692 = vunpack.c.l.s4 1934713408
          %v693 = vunpack.c.0.s8 %v692
          %v694 = vlaneseq
          %v695 = vshrl.u32 %v694, 7
          %v696 = vsub.s32 %v693, %v695
          %v697 = vrot.slane %v689, %v696
          %v699 = vunpack.c.l.s4 1934713408
          %v700 = vunpack.c.0.s8 %v699
          %v701 = vlaneseq
          %v702 = vshrl.u32 %v701, 7
          %v703 = vsub.s32 %v700, %v702
          %v704 = vrot.slane %v690, %v703
          %v705 = vcombine.low %v672, %v688
          %v706 = vcombine.high %v672, %v688
          %v708 = vunpack.c.l.s4 1934713408
          %v709 = vunpack.c.0.s8 %v708
          %v710 = vlaneseq
          %v711 = vshrl.u32 %v710, 7
          %v712 = vsub.s32 %v709, %v711
          %v713 = vrot.slane %v705, %v712
          %v715 = vunpack.c.l.s4 1934713408
          %v716 = vunpack.c.0.s8 %v715
          %v717 = vlaneseq
          %v718 = vshrl.u32 %v717, 7
          %v719 = vsub.s32 %v716, %v718
          %v720 = vrot.slane %v706, %v719
          %v721 = vcombine.high %v697, 0.0
          %v722 = vcombine.high %v704, 0.0
          %v723 = vcombine.high %v713, 0.0
          %v724 = vcombine.high %v720, 0.0
          %v725 = vcombine.low %v697, %v704
          %v727 = vunpack.c.l.s4 1983009808
          %v728 = vunpack.c.0.s8 %v727
          %v729 = vlaneseq
          %v730 = vshrl.u32 %v729, 7
          %v731 = vsub.s32 %v728, %v730
          %v732 = vrot.slane %v725, %v731
          %v733 = vcombine.low %v721, %v722
          %v735 = vunpack.c.l.s4 1983009808
          %v736 = vunpack.c.0.s8 %v735
          %v737 = vlaneseq
          %v738 = vshrl.u32 %v737, 7
          %v739 = vsub.s32 %v736, %v738
          %v740 = vrot.slane %v733, %v739
          %v741 = vcombine.low %v713, %v720
          %v743 = vunpack.c.l.s4 1983009808
          %v744 = vunpack.c.0.s8 %v743
          %v745 = vlaneseq
          %v746 = vshrl.u32 %v745, 7
          %v747 = vsub.s32 %v744, %v746
          %v748 = vrot.slane %v741, %v747
          %v749 = vcombine.low %v723, %v724
          %v751 = vunpack.c.l.s4 1983009808
          %v752 = vunpack.c.0.s8 %v751
          %v753 = vlaneseq
          %v754 = vshrl.u32 %v753, 7
          %v755 = vsub.s32 %v752, %v754
          %v756 = vrot.slane %v749, %v755
          %v757 = vcombine.low %v732, %v740
          %v758 = vcombine.high %v732, %v740
          %v760 = vunpack.c.l.s4 1934713408
          %v761 = vunpack.c.0.s8 %v760
          %v762 = vlaneseq
          %v763 = vshrl.u32 %v762, 7
          %v764 = vsub.s32 %v761, %v763
          %v765 = vrot.slane %v757, %v764
          %v767 = vunpack.c.l.s4 1934713408
          %v768 = vunpack.c.0.s8 %v767
          %v769 = vlaneseq
          %v770 = vshrl.u32 %v769, 7
          %v771 = vsub.s32 %v768, %v770
          %v772 = vrot.slane %v758, %v771
          %v773 = vcombine.low %v748, %v756
          %v774 = vcombine.high %v748, %v756
          %v776 = vunpack.c.l.s4 1934713408
          %v777 = vunpack.c.0.s8 %v776
          %v778 = vlaneseq
          %v779 = vshrl.u32 %v778, 7
          %v780 = vsub.s32 %v777, %v779
          %v781 = vrot.slane %v773, %v780
          %v783 = vunpack.c.l.s4 1934713408
          %v784 = vunpack.c.0.s8 %v783
          %v785 = vlaneseq
          %v786 = vshrl.u32 %v785, 7
          %v787 = vsub.s32 %v784, %v786
          %v788 = vrot.slane %v774, %v787
          %v789 = vcombine.low %v765, %v781
          %v790 = vcombine.high %v765, %v781
          %v791 = vcombine.low %v772, %v788
          %v792 = vcombine.high %v772, %v788
          %793 = vst.msk [vmem:[#allocation3] sm:$0xff] %vm642, %v789
          %794 = vst.msk [vmem:[#allocation3 + $0x8] sm:$0xff] %vm642, %v790
          %795 = vst.msk [vmem:[#allocation3 + $0x10] sm:$0xff] %vm642, %v791
          %796 = vst.msk [vmem:[#allocation3 + $0x18] sm:$0xff] %vm642, %v792
        $region68: #{tpu_custom_call.1} parent=43 // pred_fallthru
          _
        %s797 = smul.u32 %s30, 8
        %s798 = scalar_lea.vmem %s294, %s797 [#allocation4]
        %v799 = vld [vmem:[%s798] sm:$0xff]
        %v800 = vld [vmem:[#allocation7] sm:$0xff]
        %v801 = vld [vmem:[#allocation7 + $0x8] sm:$0xff]
        %v802 = vld [vmem:[#allocation7 + $0x10] sm:$0xff]
        %v803 = vld [vmem:[#allocation7 + $0x18] sm:$0xff]
        %vm804 = vcmask 261120
        %v806 = vsel %vm804, %v799, 0
        %808 = vmatprep.subr.mxu0 0.0
        %809 = vmatpush1.msra.mxu0 %v800
        %810 = vmatprep.subr.mxu0 0.0
        %811 = vmatpush1.msra.mxu0 %v801
        %812 = vmatprep.subr.mxu0 0.0
        %813 = vmatpush1.msra.mxu0 %v802
        %814 = vmatprep.subr.mxu0 0.0
        %815 = vmatpush1.msra.mxu0 %v803
        %816 = vmatprep.subr.mxu0 0.0
        %817 = vmatpush1.msra.mxu0 0.0
        %818 = vmatprep.subr.mxu0 0.0
        %819 = vmatpush1.msra.mxu0 0.0
        %820 = vmatprep.subr.mxu0 0.0
        %821 = vmatpush1.msra.mxu0 0.0
        %822 = vmatprep.subr.mxu0 0.0
        %823 = vmatpush1.msra.mxu0 0.0
        %824 = vmatprep.subr.mxu0 0.0
        %825 = vmatpush1.msra.mxu0 0.0
        %826 = vmatprep.subr.mxu0 0.0
        %827 = vmatpush1.msra.mxu0 0.0
        %828 = vmatprep.subr.mxu0 0.0
        %829 = vmatpush1.msra.mxu0 0.0
        %830 = vmatprep.subr.mxu0 0.0
        %831 = vmatpush1.msra.mxu0 0.0
        %832 = vmatprep.subr.mxu0 0.0
        %833 = vmatpush1.msra.mxu0 0.0
        %834 = vmatprep.subr.mxu0 0.0
        %835 = vmatpush1.msra.mxu0 0.0
        %836 = vmatprep.subr.mxu0 0.0
        %837 = vmatpush1.msra.mxu0 0.0
        %838 = vmatprep.subr.mxu0 0.0
        %839 = vmatpush1.msra.mxu0 0.0
        %840 = vmatprep.subr.mxu0 0.0
        %841 = vmatpush1.msra.mxu0 0.0
        %842 = vmatprep.subr.mxu0 0.0
        %843 = vmatpush1.msra.mxu0 0.0
        %844 = vmatprep.subr.mxu0 0.0
        %845 = vmatpush1.msra.mxu0 0.0
        %846 = vmatprep.subr.mxu0 0.0
        %847 = vmatpush1.msra.mxu0 0.0
        %848 = vmatprep.subr.mxu0 0.0
        %849 = vmatpush1.msra.mxu0 0.0
        %850 = vmatprep.subr.mxu0 0.0
        %851 = vmatpush1.msra.mxu0 0.0
        %852 = vmatprep.subr.mxu0 0.0
        %853 = vmatpush1.msra.mxu0 0.0
        %854 = vmatprep.subr.mxu0 0.0
        %855 = vmatpush1.msra.mxu0 0.0
        %856 = vmatprep.subr.mxu0 0.0
        %857 = vmatpush1.msra.mxu0 0.0
        %858 = vmatprep.subr.mxu0 0.0
        %859 = vmatpush1.msra.mxu0 0.0
        %860 = vmatprep.subr.mxu0 0.0
        %861 = vmatpush1.msra.mxu0 0.0
        %862 = vmatprep.subr.mxu0 0.0
        %863 = vmatpush1.msra.mxu0 0.0
        %864 = vmatprep.subr.mxu0 0.0
        %865 = vmatpush1.msra.mxu0 0.0
        %866 = vmatprep.subr.mxu0 0.0
        %867 = vmatpush1.msra.mxu0 0.0
        %868 = vmatprep.subr.mxu0 0.0
        %869 = vmatpush1.msra.mxu0 0.0
        %870 = vmatprep.subr.mxu0 0.0
        %871 = vmatpush1.msra.mxu0 0.0
        %872 = vmatprep.mubr.f32.mxu0 0.0
        %873 = vmatmul.mubr.f32.gmra.mrb[0].mxu0 %v806
        %v874 = vpop.f32.mrb[0].mxu0
        %v875 = vadd.f32 0.0, %v874
        %v876 = vpop.f32.mrb[0].mxu0
        %877 = vdwg.mxu0
        %879 = vrot.lane.b32.xlu0 %v875, 120
        %v880 = vpop.permute.xlu0 %879
        %882 = vrot.lane.b32.xlu0 %v875, 112
        %v883 = vpop.permute.xlu0 %882
        %885 = vrot.lane.b32.xlu0 %v875, 104
        %v886 = vpop.permute.xlu0 %885
        %v888 = vcombine.low %v875, %v883
        %v889 = vcombine.high %v875, %v883
        %v891 = vunpack.c.l.s4 1983009808
        %v892 = vunpack.c.0.s8 %v891
        %v893 = vlaneseq
        %v894 = vshrl.u32 %v893, 7
        %v895 = vsub.s32 %v892, %v894
        %v896 = vrot.slane %v888, %v895
        %v898 = vunpack.c.l.s4 1983009808
        %v899 = vunpack.c.0.s8 %v898
        %v900 = vlaneseq
        %v901 = vshrl.u32 %v900, 7
        %v902 = vsub.s32 %v899, %v901
        %v903 = vrot.slane %v889, %v902
        %v904 = vcombine.low %v880, %v886
        %v905 = vcombine.high %v880, %v886
        %v907 = vunpack.c.l.s4 1983009808
        %v908 = vunpack.c.0.s8 %v907
        %v909 = vlaneseq
        %v910 = vshrl.u32 %v909, 7
        %v911 = vsub.s32 %v908, %v910
        %v912 = vrot.slane %v904, %v911
        %v914 = vunpack.c.l.s4 1983009808
        %v915 = vunpack.c.0.s8 %v914
        %v916 = vlaneseq
        %v917 = vshrl.u32 %v916, 7
        %v918 = vsub.s32 %v915, %v917
        %v919 = vrot.slane %v905, %v918
        %v920 = vcombine.low %v896, %v912
        %v921 = vcombine.high %v896, %v912
        %v923 = vunpack.c.l.s4 1934713408
        %v924 = vunpack.c.0.s8 %v923
        %v925 = vlaneseq
        %v926 = vshrl.u32 %v925, 7
        %v927 = vsub.s32 %v924, %v926
        %v928 = vrot.slane %v920, %v927
        %v930 = vunpack.c.l.s4 1934713408
        %v931 = vunpack.c.0.s8 %v930
        %v932 = vlaneseq
        %v933 = vshrl.u32 %v932, 7
        %v934 = vsub.s32 %v931, %v933
        %v935 = vrot.slane %v921, %v934
        %v936 = vcombine.low %v903, %v919
        %v937 = vcombine.high %v903, %v919
        %v939 = vunpack.c.l.s4 1934713408
        %v940 = vunpack.c.0.s8 %v939
        %v941 = vlaneseq
        %v942 = vshrl.u32 %v941, 7
        %v943 = vsub.s32 %v940, %v942
        %v944 = vrot.slane %v936, %v943
        %v946 = vunpack.c.l.s4 1934713408
        %v947 = vunpack.c.0.s8 %v946
        %v948 = vlaneseq
        %v949 = vshrl.u32 %v948, 7
        %v950 = vsub.s32 %v947, %v949
        %v951 = vrot.slane %v937, %v950
        %v952 = vcombine.high %v928, 0.0
        %v953 = vcombine.high %v935, 0.0
        %v954 = vcombine.high %v944, 0.0
        %v955 = vcombine.high %v951, 0.0
        %v956 = vcombine.low %v928, %v935
        %v958 = vunpack.c.l.s4 1983009808
        %v959 = vunpack.c.0.s8 %v958
        %v960 = vlaneseq
        %v961 = vshrl.u32 %v960, 7
        %v962 = vsub.s32 %v959, %v961
        %v963 = vrot.slane %v956, %v962
        %v964 = vcombine.low %v952, %v953
        %v966 = vunpack.c.l.s4 1983009808
        %v967 = vunpack.c.0.s8 %v966
        %v968 = vlaneseq
        %v969 = vshrl.u32 %v968, 7
        %v970 = vsub.s32 %v967, %v969
        %v971 = vrot.slane %v964, %v970
        %v972 = vcombine.low %v944, %v951
        %v974 = vunpack.c.l.s4 1983009808
        %v975 = vunpack.c.0.s8 %v974
        %v976 = vlaneseq
        %v977 = vshrl.u32 %v976, 7
        %v978 = vsub.s32 %v975, %v977
        %v979 = vrot.slane %v972, %v978
        %v980 = vcombine.low %v954, %v955
        %v982 = vunpack.c.l.s4 1983009808
        %v983 = vunpack.c.0.s8 %v982
        %v984 = vlaneseq
        %v985 = vshrl.u32 %v984, 7
        %v986 = vsub.s32 %v983, %v985
        %v987 = vrot.slane %v980, %v986
        %v988 = vcombine.low %v963, %v971
        %v989 = vcombine.high %v963, %v971
        %v991 = vunpack.c.l.s4 1934713408
        %v992 = vunpack.c.0.s8 %v991
        %v993 = vlaneseq
        %v994 = vshrl.u32 %v993, 7
        %v995 = vsub.s32 %v992, %v994
        %v996 = vrot.slane %v988, %v995
        %v998 = vunpack.c.l.s4 1934713408
        %v999 = vunpack.c.0.s8 %v998
        %v1000 = vlaneseq
        %v1001 = vshrl.u32 %v1000, 7
        %v1002 = vsub.s32 %v999, %v1001
        %v1003 = vrot.slane %v989, %v1002
        %v1004 = vcombine.low %v979, %v987
        %v1005 = vcombine.high %v979, %v987
        %v1007 = vunpack.c.l.s4 1934713408
        %v1008 = vunpack.c.0.s8 %v1007
        %v1009 = vlaneseq
        %v1010 = vshrl.u32 %v1009, 7
        %v1011 = vsub.s32 %v1008, %v1010
        %v1012 = vrot.slane %v1004, %v1011
        %v1014 = vunpack.c.l.s4 1934713408
        %v1015 = vunpack.c.0.s8 %v1014
        %v1016 = vlaneseq
        %v1017 = vshrl.u32 %v1016, 7
        %v1018 = vsub.s32 %v1015, %v1017
        %v1019 = vrot.slane %v1005, %v1018
        %v1020 = vcombine.low %v996, %v1012
        %v1021 = vcombine.high %v996, %v1012
        %v1022 = vcombine.low %v1003, %v1019
        %v1023 = vcombine.high %v1003, %v1019
        %v1024 = vld [vmem:[#allocation2] sm:$0xff]
        %v1025 = vld [vmem:[#allocation2 + $0x8] sm:$0xff]
        %v1026 = vld [vmem:[#allocation2 + $0x10] sm:$0xff]
        %v1027 = vld [vmem:[#allocation2 + $0x18] sm:$0xff]
        %v1028 = vld [vmem:[#allocation3] sm:$0xff]
        %v1029 = vld [vmem:[#allocation3 + $0x8] sm:$0xff]
        %v1030 = vld [vmem:[#allocation3 + $0x10] sm:$0xff]
        %v1031 = vld [vmem:[#allocation3 + $0x18] sm:$0xff]
        %vm1032 = vcmask 64512
        %v1034 = vsel %vm1032, %v1020, 0
        %v1037 = vsel %vm1032, %v1024, 0
        %1039 = vmatprep.subr.mxu0 0.0
        %1040 = vmatpush1.xpose.msra.mxu0 %v1037
        %1041 = vmatprep.subr.mxu0 0.0
        %1042 = vmatpush1.xpose.msra.mxu0 0.0
        %1043 = vmatprep.subr.mxu0 0.0
        %1044 = vmatpush1.xpose.msra.mxu0 0.0
        %1045 = vmatprep.subr.mxu0 0.0
        %1046 = vmatpush1.xpose.msra.mxu0 0.0
        %1047 = vmatprep.subr.mxu0 0.0
        %1048 = vmatpush1.xpose.msra.mxu0 0.0
        %1049 = vmatprep.subr.mxu0 0.0
        %1050 = vmatpush1.xpose.msra.mxu0 0.0
        %1051 = vmatprep.subr.mxu0 0.0
        %1052 = vmatpush1.xpose.msra.mxu0 0.0
        %1053 = vmatprep.subr.mxu0 0.0
        %1054 = vmatpush1.xpose.msra.mxu0 0.0
        %1055 = vmatprep.subr.mxu0 0.0
        %1056 = vmatpush1.xpose.msra.mxu0 0.0
        %1057 = vmatprep.subr.mxu0 0.0
        %1058 = vmatpush1.xpose.msra.mxu0 0.0
        %1059 = vmatprep.subr.mxu0 0.0
        %1060 = vmatpush1.xpose.msra.mxu0 0.0
        %1061 = vmatprep.subr.mxu0 0.0
        %1062 = vmatpush1.xpose.msra.mxu0 0.0
        %1063 = vmatprep.subr.mxu0 0.0
        %1064 = vmatpush1.xpose.msra.mxu0 0.0
        %1065 = vmatprep.subr.mxu0 0.0
        %1066 = vmatpush1.xpose.msra.mxu0 0.0
        %1067 = vmatprep.subr.mxu0 0.0
        %1068 = vmatpush1.xpose.msra.mxu0 0.0
        %1069 = vmatprep.subr.mxu0 0.0
        %1070 = vmatpush1.xpose.msra.mxu0 0.0
        %1071 = vmatprep.subr.mxu0 0.0
        %1072 = vmatpush1.xpose.msra.mxu0 0.0
        %1073 = vmatprep.subr.mxu0 0.0
        %1074 = vmatpush1.xpose.msra.mxu0 0.0
        %1075 = vmatprep.subr.mxu0 0.0
        %1076 = vmatpush1.xpose.msra.mxu0 0.0
        %1077 = vmatprep.subr.mxu0 0.0
        %1078 = vmatpush1.xpose.msra.mxu0 0.0
        %1079 = vmatprep.subr.mxu0 0.0
        %1080 = vmatpush1.xpose.msra.mxu0 0.0
        %1081 = vmatprep.subr.mxu0 0.0
        %1082 = vmatpush1.xpose.msra.mxu0 0.0
        %1083 = vmatprep.subr.mxu0 0.0
        %1084 = vmatpush1.xpose.msra.mxu0 0.0
        %1085 = vmatprep.subr.mxu0 0.0
        %1086 = vmatpush1.xpose.msra.mxu0 0.0
        %1087 = vmatprep.subr.mxu0 0.0
        %1088 = vmatpush1.xpose.msra.mxu0 0.0
        %1089 = vmatprep.subr.mxu0 0.0
        %1090 = vmatpush1.xpose.msra.mxu0 0.0
        %1091 = vmatprep.subr.mxu0 0.0
        %1092 = vmatpush1.xpose.msra.mxu0 0.0
        %1093 = vmatprep.subr.mxu0 0.0
        %1094 = vmatpush1.xpose.msra.mxu0 0.0
        %1095 = vmatprep.subr.mxu0 0.0
        %1096 = vmatpush1.xpose.msra.mxu0 0.0
        %1097 = vmatprep.subr.mxu0 0.0
        %1098 = vmatpush1.xpose.msra.mxu0 0.0
        %1099 = vmatprep.subr.mxu0 0.0
        %1100 = vmatpush1.xpose.msra.mxu0 0.0
        %1101 = vmatprep.subr.mxu0 0.0
        %1102 = vmatpush1.xpose.msra.mxu0 0.0
        %1103 = vmatprep.mubr.f32.mxu0 0.0
        %1104 = vmatmul.mubr.f32.gmra.mrb[0].mxu0 %v1034
        %v1105 = vpop.f32.mrb[0].mxu0
        %v1106 = vadd.f32 0.0, %v1105
        %v1107 = vpop.f32.mrb[0].mxu0
        %1108 = vdwg.mxu0
        %v1110 = vsel %vm1032, %v1021, 0
        %v1113 = vsel %vm1032, %v1025, 0
        %1115 = vmatprep.subr.mxu0 0.0
        %1116 = vmatpush1.xpose.msra.mxu0 %v1113
        %1117 = vmatprep.subr.mxu0 0.0
        %1118 = vmatpush1.xpose.msra.mxu0 0.0
        %1119 = vmatprep.subr.mxu0 0.0
        %1120 = vmatpush1.xpose.msra.mxu0 0.0
        %1121 = vmatprep.subr.mxu0 0.0
        %1122 = vmatpush1.xpose.msra.mxu0 0.0
        %1123 = vmatprep.subr.mxu0 0.0
        %1124 = vmatpush1.xpose.msra.mxu0 0.0
        %1125 = vmatprep.subr.mxu0 0.0
        %1126 = vmatpush1.xpose.msra.mxu0 0.0
        %1127 = vmatprep.subr.mxu0 0.0
        %1128 = vmatpush1.xpose.msra.mxu0 0.0
        %1129 = vmatprep.subr.mxu0 0.0
        %1130 = vmatpush1.xpose.msra.mxu0 0.0
        %1131 = vmatprep.subr.mxu0 0.0
        %1132 = vmatpush1.xpose.msra.mxu0 0.0
        %1133 = vmatprep.subr.mxu0 0.0
        %1134 = vmatpush1.xpose.msra.mxu0 0.0
        %1135 = vmatprep.subr.mxu0 0.0
        %1136 = vmatpush1.xpose.msra.mxu0 0.0
        %1137 = vmatprep.subr.mxu0 0.0
        %1138 = vmatpush1.xpose.msra.mxu0 0.0
        %1139 = vmatprep.subr.mxu0 0.0
        %1140 = vmatpush1.xpose.msra.mxu0 0.0
        %1141 = vmatprep.subr.mxu0 0.0
        %1142 = vmatpush1.xpose.msra.mxu0 0.0
        %1143 = vmatprep.subr.mxu0 0.0
        %1144 = vmatpush1.xpose.msra.mxu0 0.0
        %1145 = vmatprep.subr.mxu0 0.0
        %1146 = vmatpush1.xpose.msra.mxu0 0.0
        %1147 = vmatprep.subr.mxu0 0.0
        %1148 = vmatpush1.xpose.msra.mxu0 0.0
        %1149 = vmatprep.subr.mxu0 0.0
        %1150 = vmatpush1.xpose.msra.mxu0 0.0
        %1151 = vmatprep.subr.mxu0 0.0
        %1152 = vmatpush1.xpose.msra.mxu0 0.0
        %1153 = vmatprep.subr.mxu0 0.0
        %1154 = vmatpush1.xpose.msra.mxu0 0.0
        %1155 = vmatprep.subr.mxu0 0.0
        %1156 = vmatpush1.xpose.msra.mxu0 0.0
        %1157 = vmatprep.subr.mxu0 0.0
        %1158 = vmatpush1.xpose.msra.mxu0 0.0
        %1159 = vmatprep.subr.mxu0 0.0
        %1160 = vmatpush1.xpose.msra.mxu0 0.0
        %1161 = vmatprep.subr.mxu0 0.0
        %1162 = vmatpush1.xpose.msra.mxu0 0.0
        %1163 = vmatprep.subr.mxu0 0.0
        %1164 = vmatpush1.xpose.msra.mxu0 0.0
        %1165 = vmatprep.subr.mxu0 0.0
        %1166 = vmatpush1.xpose.msra.mxu0 0.0
        %1167 = vmatprep.subr.mxu0 0.0
        %1168 = vmatpush1.xpose.msra.mxu0 0.0
        %1169 = vmatprep.subr.mxu0 0.0
        %1170 = vmatpush1.xpose.msra.mxu0 0.0
        %1171 = vmatprep.subr.mxu0 0.0
        %1172 = vmatpush1.xpose.msra.mxu0 0.0
        %1173 = vmatprep.subr.mxu0 0.0
        %1174 = vmatpush1.xpose.msra.mxu0 0.0
        %1175 = vmatprep.subr.mxu0 0.0
        %1176 = vmatpush1.xpose.msra.mxu0 0.0
        %1177 = vmatprep.subr.mxu0 0.0
        %1178 = vmatpush1.xpose.msra.mxu0 0.0
        %1179 = vmatprep.mubr.f32.mxu0 0.0
        %1180 = vmatmul.mubr.f32.gmra.mrb[0].mxu0 %v1110
        %v1181 = vpop.f32.mrb[0].mxu0
        %v1182 = vadd.f32 0.0, %v1181
        %v1183 = vpop.f32.mrb[0].mxu0
        %1184 = vdwg.mxu0
        %v1186 = vsel %vm1032, %v1022, 0
        %v1189 = vsel %vm1032, %v1026, 0
        %1191 = vmatprep.subr.mxu0 0.0
        %1192 = vmatpush1.xpose.msra.mxu0 %v1189
        %1193 = vmatprep.subr.mxu0 0.0
        %1194 = vmatpush1.xpose.msra.mxu0 0.0
        %1195 = vmatprep.subr.mxu0 0.0
        %1196 = vmatpush1.xpose.msra.mxu0 0.0
        %1197 = vmatprep.subr.mxu0 0.0
        %1198 = vmatpush1.xpose.msra.mxu0 0.0
        %1199 = vmatprep.subr.mxu0 0.0
        %1200 = vmatpush1.xpose.msra.mxu0 0.0
        %1201 = vmatprep.subr.mxu0 0.0
        %1202 = vmatpush1.xpose.msra.mxu0 0.0
        %1203 = vmatprep.subr.mxu0 0.0
        %1204 = vmatpush1.xpose.msra.mxu0 0.0
        %1205 = vmatprep.subr.mxu0 0.0
        %1206 = vmatpush1.xpose.msra.mxu0 0.0
        %1207 = vmatprep.subr.mxu0 0.0
        %1208 = vmatpush1.xpose.msra.mxu0 0.0
        %1209 = vmatprep.subr.mxu0 0.0
        %1210 = vmatpush1.xpose.msra.mxu0 0.0
        %1211 = vmatprep.subr.mxu0 0.0
        %1212 = vmatpush1.xpose.msra.mxu0 0.0
        %1213 = vmatprep.subr.mxu0 0.0
        %1214 = vmatpush1.xpose.msra.mxu0 0.0
        %1215 = vmatprep.subr.mxu0 0.0
        %1216 = vmatpush1.xpose.msra.mxu0 0.0
        %1217 = vmatprep.subr.mxu0 0.0
        %1218 = vmatpush1.xpose.msra.mxu0 0.0
        %1219 = vmatprep.subr.mxu0 0.0
        %1220 = vmatpush1.xpose.msra.mxu0 0.0
        %1221 = vmatprep.subr.mxu0 0.0
        %1222 = vmatpush1.xpose.msra.mxu0 0.0
        %1223 = vmatprep.subr.mxu0 0.0
        %1224 = vmatpush1.xpose.msra.mxu0 0.0
        %1225 = vmatprep.subr.mxu0 0.0
        %1226 = vmatpush1.xpose.msra.mxu0 0.0
        %1227 = vmatprep.subr.mxu0 0.0
        %1228 = vmatpush1.xpose.msra.mxu0 0.0
        %1229 = vmatprep.subr.mxu0 0.0
        %1230 = vmatpush1.xpose.msra.mxu0 0.0
        %1231 = vmatprep.subr.mxu0 0.0
        %1232 = vmatpush1.xpose.msra.mxu0 0.0
        %1233 = vmatprep.subr.mxu0 0.0
        %1234 = vmatpush1.xpose.msra.mxu0 0.0
        %1235 = vmatprep.subr.mxu0 0.0
        %1236 = vmatpush1.xpose.msra.mxu0 0.0
        %1237 = vmatprep.subr.mxu0 0.0
        %1238 = vmatpush1.xpose.msra.mxu0 0.0
        %1239 = vmatprep.subr.mxu0 0.0
        %1240 = vmatpush1.xpose.msra.mxu0 0.0
        %1241 = vmatprep.subr.mxu0 0.0
        %1242 = vmatpush1.xpose.msra.mxu0 0.0
        %1243 = vmatprep.subr.mxu0 0.0
        %1244 = vmatpush1.xpose.msra.mxu0 0.0
        %1245 = vmatprep.subr.mxu0 0.0
        %1246 = vmatpush1.xpose.msra.mxu0 0.0
        %1247 = vmatprep.subr.mxu0 0.0
        %1248 = vmatpush1.xpose.msra.mxu0 0.0
        %1249 = vmatprep.subr.mxu0 0.0
        %1250 = vmatpush1.xpose.msra.mxu0 0.0
        %1251 = vmatprep.subr.mxu0 0.0
        %1252 = vmatpush1.xpose.msra.mxu0 0.0
        %1253 = vmatprep.subr.mxu0 0.0
        %1254 = vmatpush1.xpose.msra.mxu0 0.0
        %1255 = vmatprep.mubr.f32.mxu0 0.0
        %1256 = vmatmul.mubr.f32.gmra.mrb[0].mxu0 %v1186
        %v1257 = vpop.f32.mrb[0].mxu0
        %v1258 = vadd.f32 0.0, %v1257
        %v1259 = vpop.f32.mrb[0].mxu0
        %1260 = vdwg.mxu0
        %v1262 = vsel %vm1032, %v1023, 0
        %v1265 = vsel %vm1032, %v1027, 0
        %1267 = vmatprep.subr.mxu0 0.0
        %1268 = vmatpush1.xpose.msra.mxu0 %v1265
        %1269 = vmatprep.subr.mxu0 0.0
        %1270 = vmatpush1.xpose.msra.mxu0 0.0
        %1271 = vmatprep.subr.mxu0 0.0
        %1272 = vmatpush1.xpose.msra.mxu0 0.0
        %1273 = vmatprep.subr.mxu0 0.0
        %1274 = vmatpush1.xpose.msra.mxu0 0.0
        %1275 = vmatprep.subr.mxu0 0.0
        %1276 = vmatpush1.xpose.msra.mxu0 0.0
        %1277 = vmatprep.subr.mxu0 0.0
        %1278 = vmatpush1.xpose.msra.mxu0 0.0
        %1279 = vmatprep.subr.mxu0 0.0
        %1280 = vmatpush1.xpose.msra.mxu0 0.0
        %1281 = vmatprep.subr.mxu0 0.0
        %1282 = vmatpush1.xpose.msra.mxu0 0.0
        %1283 = vmatprep.subr.mxu0 0.0
        %1284 = vmatpush1.xpose.msra.mxu0 0.0
        %1285 = vmatprep.subr.mxu0 0.0
        %1286 = vmatpush1.xpose.msra.mxu0 0.0
        %1287 = vmatprep.subr.mxu0 0.0
        %1288 = vmatpush1.xpose.msra.mxu0 0.0
        %1289 = vmatprep.subr.mxu0 0.0
        %1290 = vmatpush1.xpose.msra.mxu0 0.0
        %1291 = vmatprep.subr.mxu0 0.0
        %1292 = vmatpush1.xpose.msra.mxu0 0.0
        %1293 = vmatprep.subr.mxu0 0.0
        %1294 = vmatpush1.xpose.msra.mxu0 0.0
        %1295 = vmatprep.subr.mxu0 0.0
        %1296 = vmatpush1.xpose.msra.mxu0 0.0
        %1297 = vmatprep.subr.mxu0 0.0
        %1298 = vmatpush1.xpose.msra.mxu0 0.0
        %1299 = vmatprep.subr.mxu0 0.0
        %1300 = vmatpush1.xpose.msra.mxu0 0.0
        %1301 = vmatprep.subr.mxu0 0.0
        %1302 = vmatpush1.xpose.msra.mxu0 0.0
        %1303 = vmatprep.subr.mxu0 0.0
        %1304 = vmatpush1.xpose.msra.mxu0 0.0
        %1305 = vmatprep.subr.mxu0 0.0
        %1306 = vmatpush1.xpose.msra.mxu0 0.0
        %1307 = vmatprep.subr.mxu0 0.0
        %1308 = vmatpush1.xpose.msra.mxu0 0.0
        %1309 = vmatprep.subr.mxu0 0.0
        %1310 = vmatpush1.xpose.msra.mxu0 0.0
        %1311 = vmatprep.subr.mxu0 0.0
        %1312 = vmatpush1.xpose.msra.mxu0 0.0
        %1313 = vmatprep.subr.mxu0 0.0
        %1314 = vmatpush1.xpose.msra.mxu0 0.0
        %1315 = vmatprep.subr.mxu0 0.0
        %1316 = vmatpush1.xpose.msra.mxu0 0.0
        %1317 = vmatprep.subr.mxu0 0.0
        %1318 = vmatpush1.xpose.msra.mxu0 0.0
        %1319 = vmatprep.subr.mxu0 0.0
        %1320 = vmatpush1.xpose.msra.mxu0 0.0
        %1321 = vmatprep.subr.mxu0 0.0
        %1322 = vmatpush1.xpose.msra.mxu0 0.0
        %1323 = vmatprep.subr.mxu0 0.0
        %1324 = vmatpush1.xpose.msra.mxu0 0.0
        %1325 = vmatprep.subr.mxu0 0.0
        %1326 = vmatpush1.xpose.msra.mxu0 0.0
        %1327 = vmatprep.subr.mxu0 0.0
        %1328 = vmatpush1.xpose.msra.mxu0 0.0
        %1329 = vmatprep.subr.mxu0 0.0
        %1330 = vmatpush1.xpose.msra.mxu0 0.0
        %1331 = vmatprep.mubr.f32.mxu0 0.0
        %1332 = vmatmul.mubr.f32.gmra.mrb[0].mxu0 %v1262
        %v1333 = vpop.f32.mrb[0].mxu0
        %v1334 = vadd.f32 0.0, %v1333
        %v1335 = vpop.f32.mrb[0].mxu0
        %1336 = vdwg.mxu0
        %v1337 = vsel %vm1032, %v1106, -inf
        %1338 = vmax.xlane.f32.xlu0 %v1337
        %v1339 = vpop.xlane.xlu0 %1338
        %v1340 = vsel %vm1032, %v1182, -inf
        %1341 = vmax.xlane.f32.xlu0 %v1340
        %v1342 = vpop.xlane.xlu0 %1341
        %v1343 = vsel %vm1032, %v1258, -inf
        %1344 = vmax.xlane.f32.xlu0 %v1343
        %v1345 = vpop.xlane.xlu0 %1344
        %v1346 = vsel %vm1032, %v1334, -inf
        %1347 = vmax.xlane.f32.xlu0 %v1346
        %v1348 = vpop.xlane.xlu0 %1347
        %v1349 = vsub.f32 -inf, %v1339
        %v1350 = vsub.f32 -inf, %v1342
        %v1351 = vsub.f32 -inf, %v1345
        %v1352 = vsub.f32 -inf, %v1348
        %v1353 = vmul.f32 %v1349, 1.442695
        %v1354 = vpow.pop %v1353
        %v1355 = vmul.f32 %v1350, 1.442695
        %v1356 = vpow.pop %v1355
        %v1357 = vmul.f32 %v1351, 1.442695
        %v1358 = vpow.pop %v1357
        %v1359 = vmul.f32 %v1352, 1.442695
        %v1360 = vpow.pop %v1359
        %v1361 = vsub.f32 %v1106, %v1339
        %v1362 = vsub.f32 %v1182, %v1342
        %v1363 = vsub.f32 %v1258, %v1345
        %v1364 = vsub.f32 %v1334, %v1348
        %v1365 = vmul.f32 %v1361, 1.442695
        %v1366 = vpow.pop %v1365
        %v1367 = vmul.f32 %v1362, 1.442695
        %v1368 = vpow.pop %v1367
        %v1369 = vmul.f32 %v1363, 1.442695
        %v1370 = vpow.pop %v1369
        %v1371 = vmul.f32 %v1364, 1.442695
        %v1372 = vpow.pop %v1371
        %v1373 = vmul.f32 %v1354, 0.0
        %v1374 = vmul.f32 %v1356, 0.0
        %v1375 = vmul.f32 %v1358, 0.0
        %v1376 = vmul.f32 %v1360, 0.0
        %v1377 = vsel %vm1032, %v1366, 0.0
        %1378 = vadd.xlane.f32.xlu0 %v1377
        %v1379 = vpop.xlane.xlu0 %1378
        %v1380 = vsel %vm1032, %v1368, 0.0
        %1381 = vadd.xlane.f32.xlu0 %v1380
        %v1382 = vpop.xlane.xlu0 %1381
        %v1383 = vsel %vm1032, %v1370, 0.0
        %1384 = vadd.xlane.f32.xlu0 %v1383
        %v1385 = vpop.xlane.xlu0 %1384
        %v1386 = vsel %vm1032, %v1372, 0.0
        %1387 = vadd.xlane.f32.xlu0 %v1386
        %v1388 = vpop.xlane.xlu0 %1387
        %v1389 = vadd.f32 %v1373, %v1379
        %v1390 = vadd.f32 %v1374, %v1382
        %v1391 = vadd.f32 %v1375, %v1385
        %v1392 = vadd.f32 %v1376, %v1388
        %v1394 = vsel %vm1032, %v1366, 0
        %1396 = vmatprep.subr.mxu0 0.0
        %1397 = vmatpush1.msra.mxu0 %v1028
        %1398 = vmatprep.subr.mxu0 0.0
        %1399 = vmatpush1.msra.mxu0 0.0
        %1400 = vmatprep.subr.mxu0 0.0
        %1401 = vmatpush1.msra.mxu0 0.0
        %1402 = vmatprep.subr.mxu0 0.0
        %1403 = vmatpush1.msra.mxu0 0.0
        %1404 = vmatprep.subr.mxu0 0.0
        %1405 = vmatpush1.msra.mxu0 0.0
        %1406 = vmatprep.subr.mxu0 0.0
        %1407 = vmatpush1.msra.mxu0 0.0
        %1408 = vmatprep.subr.mxu0 0.0
        %1409 = vmatpush1.msra.mxu0 0.0
        %1410 = vmatprep.subr.mxu0 0.0
        %1411 = vmatpush1.msra.mxu0 0.0
        %1412 = vmatprep.subr.mxu0 0.0
        %1413 = vmatpush1.msra.mxu0 0.0
        %1414 = vmatprep.subr.mxu0 0.0
        %1415 = vmatpush1.msra.mxu0 0.0
        %1416 = vmatprep.subr.mxu0 0.0
        %1417 = vmatpush1.msra.mxu0 0.0
        %1418 = vmatprep.subr.mxu0 0.0
        %1419 = vmatpush1.msra.mxu0 0.0
        %1420 = vmatprep.subr.mxu0 0.0
        %1421 = vmatpush1.msra.mxu0 0.0
        %1422 = vmatprep.subr.mxu0 0.0
        %1423 = vmatpush1.msra.mxu0 0.0
        %1424 = vmatprep.subr.mxu0 0.0
        %1425 = vmatpush1.msra.mxu0 0.0
        %1426 = vmatprep.subr.mxu0 0.0
        %1427 = vmatpush1.msra.mxu0 0.0
        %1428 = vmatprep.subr.mxu0 0.0
        %1429 = vmatpush1.msra.mxu0 0.0
        %1430 = vmatprep.subr.mxu0 0.0
        %1431 = vmatpush1.msra.mxu0 0.0
        %1432 = vmatprep.subr.mxu0 0.0
        %1433 = vmatpush1.msra.mxu0 0.0
        %1434 = vmatprep.subr.mxu0 0.0
        %1435 = vmatpush1.msra.mxu0 0.0
        %1436 = vmatprep.subr.mxu0 0.0
        %1437 = vmatpush1.msra.mxu0 0.0
        %1438 = vmatprep.subr.mxu0 0.0
        %1439 = vmatpush1.msra.mxu0 0.0
        %1440 = vmatprep.subr.mxu0 0.0
        %1441 = vmatpush1.msra.mxu0 0.0
        %1442 = vmatprep.subr.mxu0 0.0
        %1443 = vmatpush1.msra.mxu0 0.0
        %1444 = vmatprep.subr.mxu0 0.0
        %1445 = vmatpush1.msra.mxu0 0.0
        %1446 = vmatprep.subr.mxu0 0.0
        %1447 = vmatpush1.msra.mxu0 0.0
        %1448 = vmatprep.subr.mxu0 0.0
        %1449 = vmatpush1.msra.mxu0 0.0
        %1450 = vmatprep.subr.mxu0 0.0
        %1451 = vmatpush1.msra.mxu0 0.0
        %1452 = vmatprep.subr.mxu0 0.0
        %1453 = vmatpush1.msra.mxu0 0.0
        %1454 = vmatprep.subr.mxu0 0.0
        %1455 = vmatpush1.msra.mxu0 0.0
        %1456 = vmatprep.subr.mxu0 0.0
        %1457 = vmatpush1.msra.mxu0 0.0
        %1458 = vmatprep.subr.mxu0 0.0
        %1459 = vmatpush1.msra.mxu0 0.0
        %1460 = vmatprep.mubr.f32.mxu0 0.0
        %1461 = vmatmul.mubr.f32.gmra.mrb[0].mxu0 %v1394
        %v1462 = vpop.f32.mrb[0].mxu0
        %v1463 = vadd.f32 0.0, %v1462
        %v1464 = vpop.f32.mrb[0].mxu0
        %1465 = vdwg.mxu0
        %v1467 = vsel %vm1032, %v1368, 0
        %1469 = vmatprep.subr.mxu0 0.0
        %1470 = vmatpush1.msra.mxu0 %v1029
        %1471 = vmatprep.subr.mxu0 0.0
        %1472 = vmatpush1.msra.mxu0 0.0
        %1473 = vmatprep.subr.mxu0 0.0
        %1474 = vmatpush1.msra.mxu0 0.0
        %1475 = vmatprep.subr.mxu0 0.0
        %1476 = vmatpush1.msra.mxu0 0.0
        %1477 = vmatprep.subr.mxu0 0.0
        %1478 = vmatpush1.msra.mxu0 0.0
        %1479 = vmatprep.subr.mxu0 0.0
        %1480 = vmatpush1.msra.mxu0 0.0
        %1481 = vmatprep.subr.mxu0 0.0
        %1482 = vmatpush1.msra.mxu0 0.0
        %1483 = vmatprep.subr.mxu0 0.0
        %1484 = vmatpush1.msra.mxu0 0.0
        %1485 = vmatprep.subr.mxu0 0.0
        %1486 = vmatpush1.msra.mxu0 0.0
        %1487 = vmatprep.subr.mxu0 0.0
        %1488 = vmatpush1.msra.mxu0 0.0
        %1489 = vmatprep.subr.mxu0 0.0
        %1490 = vmatpush1.msra.mxu0 0.0
        %1491 = vmatprep.subr.mxu0 0.0
        %1492 = vmatpush1.msra.mxu0 0.0
        %1493 = vmatprep.subr.mxu0 0.0
        %1494 = vmatpush1.msra.mxu0 0.0
        %1495 = vmatprep.subr.mxu0 0.0
        %1496 = vmatpush1.msra.mxu0 0.0
        %1497 = vmatprep.subr.mxu0 0.0
        %1498 = vmatpush1.msra.mxu0 0.0
        %1499 = vmatprep.subr.mxu0 0.0
        %1500 = vmatpush1.msra.mxu0 0.0
        %1501 = vmatprep.subr.mxu0 0.0
        %1502 = vmatpush1.msra.mxu0 0.0
        %1503 = vmatprep.subr.mxu0 0.0
        %1504 = vmatpush1.msra.mxu0 0.0
        %1505 = vmatprep.subr.mxu0 0.0
        %1506 = vmatpush1.msra.mxu0 0.0
        %1507 = vmatprep.subr.mxu0 0.0
        %1508 = vmatpush1.msra.mxu0 0.0
        %1509 = vmatprep.subr.mxu0 0.0
        %1510 = vmatpush1.msra.mxu0 0.0
        %1511 = vmatprep.subr.mxu0 0.0
        %1512 = vmatpush1.msra.mxu0 0.0
        %1513 = vmatprep.subr.mxu0 0.0
        %1514 = vmatpush1.msra.mxu0 0.0
        %1515 = vmatprep.subr.mxu0 0.0
        %1516 = vmatpush1.msra.mxu0 0.0
        %1517 = vmatprep.subr.mxu0 0.0
        %1518 = vmatpush1.msra.mxu0 0.0
        %1519 = vmatprep.subr.mxu0 0.0
        %1520 = vmatpush1.msra.mxu0 0.0
        %1521 = vmatprep.subr.mxu0 0.0
        %1522 = vmatpush1.msra.mxu0 0.0
        %1523 = vmatprep.subr.mxu0 0.0
        %1524 = vmatpush1.msra.mxu0 0.0
        %1525 = vmatprep.subr.mxu0 0.0
        %1526 = vmatpush1.msra.mxu0 0.0
        %1527 = vmatprep.subr.mxu0 0.0
        %1528 = vmatpush1.msra.mxu0 0.0
        %1529 = vmatprep.subr.mxu0 0.0
        %1530 = vmatpush1.msra.mxu0 0.0
        %1531 = vmatprep.subr.mxu0 0.0
        %1532 = vmatpush1.msra.mxu0 0.0
        %1533 = vmatprep.mubr.f32.mxu0 0.0
        %1534 = vmatmul.mubr.f32.gmra.mrb[0].mxu0 %v1467
        %v1535 = vpop.f32.mrb[0].mxu0
        %v1536 = vadd.f32 0.0, %v1535
        %v1537 = vpop.f32.mrb[0].mxu0
        %1538 = vdwg.mxu0
        %v1540 = vsel %vm1032, %v1370, 0
        %1542 = vmatprep.subr.mxu0 0.0
        %1543 = vmatpush1.msra.mxu0 %v1030
        %1544 = vmatprep.subr.mxu0 0.0
        %1545 = vmatpush1.msra.mxu0 0.0
        %1546 = vmatprep.subr.mxu0 0.0
        %1547 = vmatpush1.msra.mxu0 0.0
        %1548 = vmatprep.subr.mxu0 0.0
        %1549 = vmatpush1.msra.mxu0 0.0
        %1550 = vmatprep.subr.mxu0 0.0
        %1551 = vmatpush1.msra.mxu0 0.0
        %1552 = vmatprep.subr.mxu0 0.0
        %1553 = vmatpush1.msra.mxu0 0.0
        %1554 = vmatprep.subr.mxu0 0.0
        %1555 = vmatpush1.msra.mxu0 0.0
        %1556 = vmatprep.subr.mxu0 0.0
        %1557 = vmatpush1.msra.mxu0 0.0
        %1558 = vmatprep.subr.mxu0 0.0
        %1559 = vmatpush1.msra.mxu0 0.0
        %1560 = vmatprep.subr.mxu0 0.0
        %1561 = vmatpush1.msra.mxu0 0.0
        %1562 = vmatprep.subr.mxu0 0.0
        %1563 = vmatpush1.msra.mxu0 0.0
        %1564 = vmatprep.subr.mxu0 0.0
        %1565 = vmatpush1.msra.mxu0 0.0
        %1566 = vmatprep.subr.mxu0 0.0
        %1567 = vmatpush1.msra.mxu0 0.0
        %1568 = vmatprep.subr.mxu0 0.0
        %1569 = vmatpush1.msra.mxu0 0.0
        %1570 = vmatprep.subr.mxu0 0.0
        %1571 = vmatpush1.msra.mxu0 0.0
        %1572 = vmatprep.subr.mxu0 0.0
        %1573 = vmatpush1.msra.mxu0 0.0
        %1574 = vmatprep.subr.mxu0 0.0
        %1575 = vmatpush1.msra.mxu0 0.0
        %1576 = vmatprep.subr.mxu0 0.0
        %1577 = vmatpush1.msra.mxu0 0.0
        %1578 = vmatprep.subr.mxu0 0.0
        %1579 = vmatpush1.msra.mxu0 0.0
        %1580 = vmatprep.subr.mxu0 0.0
        %1581 = vmatpush1.msra.mxu0 0.0
        %1582 = vmatprep.subr.mxu0 0.0
        %1583 = vmatpush1.msra.mxu0 0.0
        %1584 = vmatprep.subr.mxu0 0.0
        %1585 = vmatpush1.msra.mxu0 0.0
        %1586 = vmatprep.subr.mxu0 0.0
        %1587 = vmatpush1.msra.mxu0 0.0
        %1588 = vmatprep.subr.mxu0 0.0
        %1589 = vmatpush1.msra.mxu0 0.0
        %1590 = vmatprep.subr.mxu0 0.0
        %1591 = vmatpush1.msra.mxu0 0.0
        %1592 = vmatprep.subr.mxu0 0.0
        %1593 = vmatpush1.msra.mxu0 0.0
        %1594 = vmatprep.subr.mxu0 0.0
        %1595 = vmatpush1.msra.mxu0 0.0
        %1596 = vmatprep.subr.mxu0 0.0
        %1597 = vmatpush1.msra.mxu0 0.0
        %1598 = vmatprep.subr.mxu0 0.0
        %1599 = vmatpush1.msra.mxu0 0.0
        %1600 = vmatprep.subr.mxu0 0.0
        %1601 = vmatpush1.msra.mxu0 0.0
        %1602 = vmatprep.subr.mxu0 0.0
        %1603 = vmatpush1.msra.mxu0 0.0
        %1604 = vmatprep.subr.mxu0 0.0
        %1605 = vmatpush1.msra.mxu0 0.0
        %1606 = vmatprep.mubr.f32.mxu0 0.0
        %1607 = vmatmul.mubr.f32.gmra.mrb[0].mxu0 %v1540
        %v1608 = vpop.f32.mrb[0].mxu0
        %v1609 = vadd.f32 0.0, %v1608
        %v1610 = vpop.f32.mrb[0].mxu0
        %1611 = vdwg.mxu0
        %v1613 = vsel %vm1032, %v1372, 0
        %1615 = vmatprep.subr.mxu0 0.0
        %1616 = vmatpush1.msra.mxu0 %v1031
        %1617 = vmatprep.subr.mxu0 0.0
        %1618 = vmatpush1.msra.mxu0 0.0
        %1619 = vmatprep.subr.mxu0 0.0
        %1620 = vmatpush1.msra.mxu0 0.0
        %1621 = vmatprep.subr.mxu0 0.0
        %1622 = vmatpush1.msra.mxu0 0.0
        %1623 = vmatprep.subr.mxu0 0.0
        %1624 = vmatpush1.msra.mxu0 0.0
        %1625 = vmatprep.subr.mxu0 0.0
        %1626 = vmatpush1.msra.mxu0 0.0
        %1627 = vmatprep.subr.mxu0 0.0
        %1628 = vmatpush1.msra.mxu0 0.0
        %1629 = vmatprep.subr.mxu0 0.0
        %1630 = vmatpush1.msra.mxu0 0.0
        %1631 = vmatprep.subr.mxu0 0.0
        %1632 = vmatpush1.msra.mxu0 0.0
        %1633 = vmatprep.subr.mxu0 0.0
        %1634 = vmatpush1.msra.mxu0 0.0
        %1635 = vmatprep.subr.mxu0 0.0
        %1636 = vmatpush1.msra.mxu0 0.0
        %1637 = vmatprep.subr.mxu0 0.0
        %1638 = vmatpush1.msra.mxu0 0.0
        %1639 = vmatprep.subr.mxu0 0.0
        %1640 = vmatpush1.msra.mxu0 0.0
        %1641 = vmatprep.subr.mxu0 0.0
        %1642 = vmatpush1.msra.mxu0 0.0
        %1643 = vmatprep.subr.mxu0 0.0
        %1644 = vmatpush1.msra.mxu0 0.0
        %1645 = vmatprep.subr.mxu0 0.0
        %1646 = vmatpush1.msra.mxu0 0.0
        %1647 = vmatprep.subr.mxu0 0.0
        %1648 = vmatpush1.msra.mxu0 0.0
        %1649 = vmatprep.subr.mxu0 0.0
        %1650 = vmatpush1.msra.mxu0 0.0
        %1651 = vmatprep.subr.mxu0 0.0
        %1652 = vmatpush1.msra.mxu0 0.0
        %1653 = vmatprep.subr.mxu0 0.0
        %1654 = vmatpush1.msra.mxu0 0.0
        %1655 = vmatprep.subr.mxu0 0.0
        %1656 = vmatpush1.msra.mxu0 0.0
        %1657 = vmatprep.subr.mxu0 0.0
        %1658 = vmatpush1.msra.mxu0 0.0
        %1659 = vmatprep.subr.mxu0 0.0
        %1660 = vmatpush1.msra.mxu0 0.0
        %1661 = vmatprep.subr.mxu0 0.0
        %1662 = vmatpush1.msra.mxu0 0.0
        %1663 = vmatprep.subr.mxu0 0.0
        %1664 = vmatpush1.msra.mxu0 0.0
        %1665 = vmatprep.subr.mxu0 0.0
        %1666 = vmatpush1.msra.mxu0 0.0
        %1667 = vmatprep.subr.mxu0 0.0
        %1668 = vmatpush1.msra.mxu0 0.0
        %1669 = vmatprep.subr.mxu0 0.0
        %1670 = vmatpush1.msra.mxu0 0.0
        %1671 = vmatprep.subr.mxu0 0.0
        %1672 = vmatpush1.msra.mxu0 0.0
        %1673 = vmatprep.subr.mxu0 0.0
        %1674 = vmatpush1.msra.mxu0 0.0
        %1675 = vmatprep.subr.mxu0 0.0
        %1676 = vmatpush1.msra.mxu0 0.0
        %1677 = vmatprep.subr.mxu0 0.0
        %1678 = vmatpush1.msra.mxu0 0.0
        %1679 = vmatprep.mubr.f32.mxu0 0.0
        %1680 = vmatmul.mubr.f32.gmra.mrb[0].mxu0 %v1613
        %v1681 = vpop.f32.mrb[0].mxu0
        %v1682 = vadd.f32 0.0, %v1681
        %v1683 = vpop.f32.mrb[0].mxu0
        %1684 = vdwg.mxu0
        %v1685 = vadd.f32 %v1373, %v1463
        %v1686 = vadd.f32 %v1374, %v1536
        %v1687 = vadd.f32 %v1375, %v1609
        %v1688 = vadd.f32 %v1376, %v1682
        %v1689 = vrcp.pop %v1389
        %v1690 = vmul.f32 %v1685, %v1689
        %v1691 = vrcp.pop %v1390
        %v1692 = vmul.f32 %v1686, %v1691
        %v1693 = vrcp.pop %v1391
        %v1694 = vmul.f32 %v1687, %v1693
        %v1695 = vrcp.pop %v1392
        %v1696 = vmul.f32 %v1688, %v1695
        %v1697 = vcombine.low %v1690, %v1694
        %v1698 = vcombine.high %v1690, %v1694
        %v1700 = vunpack.c.l.s4 1983009808
        %v1701 = vunpack.c.0.s8 %v1700
        %v1702 = vlaneseq
        %v1703 = vshrl.u32 %v1702, 7
        %v1704 = vsub.s32 %v1701, %v1703
        %v1705 = vrot.slane %v1697, %v1704
        %v1707 = vunpack.c.l.s4 1983009808
        %v1708 = vunpack.c.0.s8 %v1707
        %v1709 = vlaneseq
        %v1710 = vshrl.u32 %v1709, 7
        %v1711 = vsub.s32 %v1708, %v1710
        %v1712 = vrot.slane %v1698, %v1711
        %v1713 = vcombine.low %v1692, %v1696
        %v1714 = vcombine.high %v1692, %v1696
        %v1716 = vunpack.c.l.s4 1983009808
        %v1717 = vunpack.c.0.s8 %v1716
        %v1718 = vlaneseq
        %v1719 = vshrl.u32 %v1718, 7
        %v1720 = vsub.s32 %v1717, %v1719
        %v1721 = vrot.slane %v1713, %v1720
        %v1723 = vunpack.c.l.s4 1983009808
        %v1724 = vunpack.c.0.s8 %v1723
        %v1725 = vlaneseq
        %v1726 = vshrl.u32 %v1725, 7
        %v1727 = vsub.s32 %v1724, %v1726
        %v1728 = vrot.slane %v1714, %v1727
        %v1729 = vcombine.low %v1705, %v1721
        %v1730 = vcombine.high %v1705, %v1721
        %v1732 = vunpack.c.l.s4 1934713408
        %v1733 = vunpack.c.0.s8 %v1732
        %v1734 = vlaneseq
        %v1735 = vshrl.u32 %v1734, 7
        %v1736 = vsub.s32 %v1733, %v1735
        %v1737 = vrot.slane %v1729, %v1736
        %v1739 = vunpack.c.l.s4 1934713408
        %v1740 = vunpack.c.0.s8 %v1739
        %v1741 = vlaneseq
        %v1742 = vshrl.u32 %v1741, 7
        %v1743 = vsub.s32 %v1740, %v1742
        %v1744 = vrot.slane %v1730, %v1743
        %v1745 = vcombine.low %v1712, %v1728
        %v1746 = vcombine.high %v1712, %v1728
        %v1748 = vunpack.c.l.s4 1934713408
        %v1749 = vunpack.c.0.s8 %v1748
        %v1750 = vlaneseq
        %v1751 = vshrl.u32 %v1750, 7
        %v1752 = vsub.s32 %v1749, %v1751
        %v1753 = vrot.slane %v1745, %v1752
        %v1755 = vunpack.c.l.s4 1934713408
        %v1756 = vunpack.c.0.s8 %v1755
        %v1757 = vlaneseq
        %v1758 = vshrl.u32 %v1757, 7
        %v1759 = vsub.s32 %v1756, %v1758
        %v1760 = vrot.slane %v1746, %v1759
        %v1761 = vcombine.high %v1737, 0.0
        %v1762 = vcombine.high %v1744, 0.0
        %v1763 = vcombine.high %v1753, 0.0
        %v1764 = vcombine.high %v1760, 0.0
        %v1765 = vcombine.low %v1737, %v1744
        %v1767 = vunpack.c.l.s4 1983009808
        %v1768 = vunpack.c.0.s8 %v1767
        %v1769 = vlaneseq
        %v1770 = vshrl.u32 %v1769, 7
        %v1771 = vsub.s32 %v1768, %v1770
        %v1772 = vrot.slane %v1765, %v1771
        %v1773 = vcombine.low %v1761, %v1762
        %v1775 = vunpack.c.l.s4 1983009808
        %v1776 = vunpack.c.0.s8 %v1775
        %v1777 = vlaneseq
        %v1778 = vshrl.u32 %v1777, 7
        %v1779 = vsub.s32 %v1776, %v1778
        %v1780 = vrot.slane %v1773, %v1779
        %v1781 = vcombine.low %v1753, %v1760
        %v1783 = vunpack.c.l.s4 1983009808
        %v1784 = vunpack.c.0.s8 %v1783
        %v1785 = vlaneseq
        %v1786 = vshrl.u32 %v1785, 7
        %v1787 = vsub.s32 %v1784, %v1786
        %v1788 = vrot.slane %v1781, %v1787
        %v1789 = vcombine.low %v1763, %v1764
        %v1791 = vunpack.c.l.s4 1983009808
        %v1792 = vunpack.c.0.s8 %v1791
        %v1793 = vlaneseq
        %v1794 = vshrl.u32 %v1793, 7
        %v1795 = vsub.s32 %v1792, %v1794
        %v1796 = vrot.slane %v1789, %v1795
        %v1797 = vcombine.low %v1772, %v1780
        %v1798 = vcombine.high %v1772, %v1780
        %v1800 = vunpack.c.l.s4 1934713408
        %v1801 = vunpack.c.0.s8 %v1800
        %v1802 = vlaneseq
        %v1803 = vshrl.u32 %v1802, 7
        %v1804 = vsub.s32 %v1801, %v1803
        %v1805 = vrot.slane %v1797, %v1804
        %v1807 = vunpack.c.l.s4 1934713408
        %v1808 = vunpack.c.0.s8 %v1807
        %v1809 = vlaneseq
        %v1810 = vshrl.u32 %v1809, 7
        %v1811 = vsub.s32 %v1808, %v1810
        %v1812 = vrot.slane %v1798, %v1811
        %v1813 = vcombine.low %v1788, %v1796
        %v1814 = vcombine.high %v1788, %v1796
        %v1816 = vunpack.c.l.s4 1934713408
        %v1817 = vunpack.c.0.s8 %v1816
        %v1818 = vlaneseq
        %v1819 = vshrl.u32 %v1818, 7
        %v1820 = vsub.s32 %v1817, %v1819
        %v1821 = vrot.slane %v1813, %v1820
        %v1823 = vunpack.c.l.s4 1934713408
        %v1824 = vunpack.c.0.s8 %v1823
        %v1825 = vlaneseq
        %v1826 = vshrl.u32 %v1825, 7
        %v1827 = vsub.s32 %v1824, %v1826
        %v1828 = vrot.slane %v1814, %v1827
        %v1829 = vcombine.low %v1805, %v1821
        %v1830 = vcombine.high %v1805, %v1821
        %v1831 = vcombine.low %v1812, %v1828
        %v1832 = vcombine.high %v1812, %v1828
        %1834 = vrot.lane.b32.xlu0 %v1830, 8
        %v1835 = vpop.permute.xlu0 %1834
        %1838 = vrot.lane.b32.xlu0 %v1831, 16
        %v1839 = vpop.permute.xlu0 %1838
        %1842 = vrot.lane.b32.xlu0 %v1832, 24
        %v1843 = vpop.permute.xlu0 %1842
        %v1845 = vsel %vm1032, %v1829, %v1835
        %vm1846 = vcmask 130048
        %v1847 = vsel %vm1846, %v1845, %v1839
        %vm1848 = vcmask 195584
        %v1849 = vsel %vm1848, %v1847, %v1843
        %v1850 = vld [vmem:[#allocation12] sm:$0xff]
        %v1851 = vld [vmem:[#allocation12 + $0x8] sm:$0xff]
        %v1852 = vld [vmem:[#allocation12 + $0x10] sm:$0xff]
        %v1853 = vld [vmem:[#allocation12 + $0x18] sm:$0xff]
        %v1854 = vld [vmem:[%s5] sm:$0x1]
        %v1856 = vlaneseq
        %v1857 = vshrl.u32 %v1856, 7
        %v1858 = vsub.s32 0, %v1857
        %v1859 = vrot.slane %v1854, %v1858
        %v1862 = vsel %vm804, %v1849, 0
        %1864 = vmatprep.subr.mxu0 0.0
        %1865 = vmatpush1.msra.mxu0 %v1850
        %1866 = vmatprep.subr.mxu0 0.0
        %1867 = vmatpush1.msra.mxu0 %v1851
        %1868 = vmatprep.subr.mxu0 0.0
        %1869 = vmatpush1.msra.mxu0 %v1852
        %1870 = vmatprep.subr.mxu0 0.0
        %1871 = vmatpush1.msra.mxu0 %v1853
        %1872 = vmatprep.subr.mxu0 0.0
        %1873 = vmatpush1.msra.mxu0 0.0
        %1874 = vmatprep.subr.mxu0 0.0
        %1875 = vmatpush1.msra.mxu0 0.0
        %1876 = vmatprep.subr.mxu0 0.0
        %1877 = vmatpush1.msra.mxu0 0.0
        %1878 = vmatprep.subr.mxu0 0.0
        %1879 = vmatpush1.msra.mxu0 0.0
        %1880 = vmatprep.subr.mxu0 0.0
        %1881 = vmatpush1.msra.mxu0 0.0
        %1882 = vmatprep.subr.mxu0 0.0
        %1883 = vmatpush1.msra.mxu0 0.0
        %1884 = vmatprep.subr.mxu0 0.0
        %1885 = vmatpush1.msra.mxu0 0.0
        %1886 = vmatprep.subr.mxu0 0.0
        %1887 = vmatpush1.msra.mxu0 0.0
        %1888 = vmatprep.subr.mxu0 0.0
        %1889 = vmatpush1.msra.mxu0 0.0
        %1890 = vmatprep.subr.mxu0 0.0
        %1891 = vmatpush1.msra.mxu0 0.0
        %1892 = vmatprep.subr.mxu0 0.0
        %1893 = vmatpush1.msra.mxu0 0.0
        %1894 = vmatprep.subr.mxu0 0.0
        %1895 = vmatpush1.msra.mxu0 0.0
        %1896 = vmatprep.subr.mxu0 0.0
        %1897 = vmatpush1.msra.mxu0 0.0
        %1898 = vmatprep.subr.mxu0 0.0
        %1899 = vmatpush1.msra.mxu0 0.0
        %1900 = vmatprep.subr.mxu0 0.0
        %1901 = vmatpush1.msra.mxu0 0.0
        %1902 = vmatprep.subr.mxu0 0.0
        %1903 = vmatpush1.msra.mxu0 0.0
        %1904 = vmatprep.subr.mxu0 0.0
        %1905 = vmatpush1.msra.mxu0 0.0
        %1906 = vmatprep.subr.mxu0 0.0
        %1907 = vmatpush1.msra.mxu0 0.0
        %1908 = vmatprep.subr.mxu0 0.0
        %1909 = vmatpush1.msra.mxu0 0.0
        %1910 = vmatprep.subr.mxu0 0.0
        %1911 = vmatpush1.msra.mxu0 0.0
        %1912 = vmatprep.subr.mxu0 0.0
        %1913 = vmatpush1.msra.mxu0 0.0
        %1914 = vmatprep.subr.mxu0 0.0
        %1915 = vmatpush1.msra.mxu0 0.0
        %1916 = vmatprep.subr.mxu0 0.0
        %1917 = vmatpush1.msra.mxu0 0.0
        %1918 = vmatprep.subr.mxu0 0.0
        %1919 = vmatpush1.msra.mxu0 0.0
        %1920 = vmatprep.subr.mxu0 0.0
        %1921 = vmatpush1.msra.mxu0 0.0
        %1922 = vmatprep.subr.mxu0 0.0
        %1923 = vmatpush1.msra.mxu0 0.0
        %1924 = vmatprep.subr.mxu0 0.0
        %1925 = vmatpush1.msra.mxu0 0.0
        %1926 = vmatprep.subr.mxu0 0.0
        %1927 = vmatpush1.msra.mxu0 0.0
        %1928 = vmatprep.mubr.f32.mxu0 0.0
        %1929 = vmatmul.mubr.f32.gmra.mrb[0].mxu0 %v1862
        %v1930 = vpop.f32.mrb[0].mxu0
        %v1931 = vadd.f32 %v1859, %v1930
        %v1932 = vpop.f32.mrb[0].mxu0
        %1933 = vdwg.mxu0
        %1934 = vst.msk [vmem:[%s338] sm:$0xff] %vm804, %v1931
        %s1935 = sand.u32 %s178, 1
        %s1936 = scalar_lea.sflag [#allocation6], %s1935
        %s1937 = sand.u32 %s178, 1
        %s1938 = smul.addr %s1937, 8
        %s1939 = scalar_lea.vmem [#allocation13], %s1938
        // Predicated region
        $region69: #{tpu_custom_call.1} parent=43 // pred_check
          %p1940 = pneg %p188
        $region70: #{tpu_custom_call.1} parent=43 // pred_check_branch
          %1942 = sbr.rel (%p1940) target = $region72
        $region71: #{tpu_custom_call.1} parent=43 // pred_region
          %s1944 = ssub.s32 128, 128
          %1945 = vsyncadd %s1936, %s1944
          %s1946 = sadd.s32 %s30, %s29
          %s1947 = smul.addr %s1946, 128
          %s1948 = scalar_lea.hbm %s6, %s1947
          %s1950 = sshll.u32 %s1939, 4
          %s1951 = int_to_ptr.vmem [resolvable:$true] %s1950
          %1953 = dma.vmem_to_hbm [thread:$0]  %s1951, 128, %s1948, %s1936
        $region72: #{tpu_custom_call.1} parent=43 // pred_fallthru
          _
      $region44: #{tpu_custom_call.1} parent=5 // pred_fallthru
        _
      %p1954 = scmp.le.s32.totalorder 2, %s20
      // Predicated region
      $region73: #{tpu_custom_call.1} parent=5 // pred_check
        %p1955 = pneg %p1954
      $region74: #{tpu_custom_call.1} parent=5 // pred_check_branch
        %1957 = sbr.rel (%p1955) target = $region76
      $region75: #{tpu_custom_call.1} parent=5 // pred_region
        %s1958 = ssub.s32 %s20, 2
        // Predicated region
        $region77: #{tpu_custom_call.1} parent=75 // pred_check
          %p1959 = pneg %p194
        $region78: #{tpu_custom_call.1} parent=75 // pred_check_branch
          %1961 = sbr.rel (%p1959) target = $region80
        $region79: #{tpu_custom_call.1} parent=75 // pred_region
          %s1962 = sand.u32 %s179, 1
          %s1963 = scalar_lea.sflag [#allocation6], %s1962
          %s1964 = sand.u32 %s179, 1
          %s1965 = smul.addr %s1964, 8
          %s1966 = scalar_lea.vmem [#allocation13], %s1965
          %1967 = dma.done %s1963, 128
        $region80: #{tpu_custom_call.1} parent=75 // pred_fallthru
          _
      $region76: #{tpu_custom_call.1} parent=5 // pred_fallthru
        _
    $region6: #{tpu_custom_call.1} parent=1 // loop_footer
      %s24 = sadd.s32 1, %s20
    $region7: #{tpu_custom_call.1} parent=1 // loop_footer_branch
      %19 = sbr.rel target = $region3
    $region8: #{tpu_custom_call.1} parent=1 // loop_exit
      _
    %1968 = vsyncpa [#allocation5], 1
    %s1969 = scalar_lea.sflag [#allocation5], 1
    %1970 = vsyncpa %s1969, 1
    %1971 = vsyncpa [#allocation8], 1
    %1972 = vsyncpa [#allocation11], 1
    %1973 = vsyncpa [#allocation6], 1
    %s1974 = scalar_lea.sflag [#allocation6], 1
    %1975 = vsyncpa %s1974, 1

</llo_original>
